<compile_context>
chip_gen: v7x
topology: tpu7x:2x2x1
jax: 0.10.0
libtpu: 0.0.40
codegen_flags: <defaults>
</compile_context>

<pallas_src>
import functools
import math

import jax
import jax.numpy as jnp
from jax.experimental import pallas as pl
from jax.experimental.pallas import tpu as pltpu

# ----------------------------- mini-BERT config ------------------------------
VOCAB = 100
MAX_POS = 16
TYPE_VOCAB = 2
HIDDEN = 32
NUM_HEADS = 2
HEAD_DIM = HIDDEN // NUM_HEADS
INTER = 64
NUM_LAYERS = 2
NUM_CLASSES = 3
LN_EPS = 1e-12

LANE = 128
QKV_LANES = 3 * NUM_HEADS * LANE          # head-major, one lane tile per (head, q/k/v)

# ----------------------- packed vector-slab row layout -----------------------
V_POS = 0                                  # MAX_POS rows: pos_emb + type_emb[0]
V_EMB_LN_G = V_POS + MAX_POS
V_EMB_LN_B = V_EMB_LN_G + 1
V_LAYER0 = V_EMB_LN_B + 1
V_PER_LAYER = 13
VL_BQKV = 0                                # 6 rows: (q,k,v) per head, lanes[0:HEAD_DIM]
VL_BO = 6
VL_LN1_G = 7
VL_LN1_B = 8
VL_B1 = 9                                  # lanes[0:INTER]
VL_B2 = 10
VL_LN2_G = 11
VL_LN2_B = 12
V_POOL_B = V_LAYER0 + NUM_LAYERS * V_PER_LAYER
V_FC_B = V_POOL_B + 1
N_VEC = V_FC_B + 1                         # 46

# ----------------------- packed weight-slab row layout -----------------------
W_PER_LAYER = HIDDEN + HIDDEN + INTER      # wo + w1 + w2 = 128 rows
WL_WO = 0
WL_W1 = HIDDEN
WL_W2 = 2 * HIDDEN
W_POOL = NUM_LAYERS * W_PER_LAYER
W_FC = W_POOL + HIDDEN
N_WROWS = W_FC + HIDDEN                    # 320

_VMEM = pl.BlockSpec(memory_space=pltpu.MemorySpace.VMEM)


# --------------------------- in-kernel math helpers ---------------------------
def _layernorm(x, g, b):
    mean = jnp.mean(x, axis=-1, keepdims=True)
    cen = x - mean
    var = jnp.mean(cen * cen, axis=-1, keepdims=True)
    return cen * jax.lax.rsqrt(var + LN_EPS) * g + b


def _gelu(y):
    # TODO(synk): HF BERT uses exact erf-GELU; tanh approximation used here.
    c = jnp.float32(math.sqrt(2.0 / math.pi))
    return 0.5 * y * (1.0 + jnp.tanh(c * (y + 0.044715 * y * y * y)))


# ------------------------------- fused kernel ---------------------------------
def _bert_fwd_kernel(ids_ref, mask_ref, wemb_ref, vec_ref, wqkv_ref, w_ref,
                     out_ref, x_scr, *, batch, seq):
    f32 = jnp.float32
    bf16 = jnp.bfloat16
    scale = f32(1.0 / math.sqrt(HEAD_DIM))

    # ---- embeddings, fully in-kernel: one-hot gather + (pos+type) rows + LN
    ids = ids_ref[...]                                                   # (B*S, 1) int32
    onehot = (jax.lax.broadcasted_iota(jnp.int32, (batch * seq, VOCAB), 1)
              == ids).astype(f32)
    we = jnp.dot(onehot, wemb_ref[...], preferred_element_type=f32)      # (B*S, H)
    pt = vec_ref[V_POS:V_POS + seq, :HIDDEN]                             # (S, H)
    pt_all = jnp.concatenate([pt] * batch, axis=0)                       # (B*S, H)
    # TODO(synk): token_type_ids assumed all-zero (segment 0), as in the original.
    x = _layernorm(we + pt_all,
                   vec_ref[V_EMB_LN_G:V_EMB_LN_G + 1, :HIDDEN],
                   vec_ref[V_EMB_LN_B:V_EMB_LN_B + 1, :HIDDEN])

    # additive attention-mask bias, computed in-kernel
    mask_bias = (1.0 - mask_ref[...].astype(f32)) * f32(-10000.0)        # (B, S)

    for l in range(NUM_LAYERS):
        v0 = V_LAYER0 + l * V_PER_LAYER
        w0 = l * W_PER_LAYER

        # fused QKV matmul (bf16 weights); head-major padded layout => every
        # per-head slice starts at a 128-lane tile boundary.
        wqkv = wqkv_ref[l * HIDDEN:(l + 1) * HIDDEN, :]                  # (H, 768) bf16
        qkv = jnp.dot(x.astype(bf16), wqkv, preferred_element_type=f32)  # (B*S, 768)

        for h in range(NUM_HEADS):
            qt = (h * 3 + 0) * LANE
            kt = (h * 3 + 1) * LANE
            vt = (h * 3 + 2) * LANE
            br = v0 + VL_BQKV + h * 3
            q_h = qkv[:, qt:qt + HEAD_DIM] + vec_ref[br + 0:br + 1, :HEAD_DIM]
            k_h = qkv[:, kt:kt + HEAD_DIM] + vec_ref[br + 1:br + 2, :HEAD_DIM]
            v_h = qkv[:, vt:vt + HEAD_DIM] + vec_ref[br + 2:br + 3, :HEAD_DIM]
            for b in range(batch):
                rows = slice(b * seq, (b + 1) * seq)
                qb, kb, vb = q_h[rows], k_h[rows], v_h[rows]             # (S, Dh)
                s = jax.lax.dot_general(
                    qb, kb, (((1,), (1,)), ((), ())),
                    preferred_element_type=f32) * scale                  # (S, S)
                s = s + mask_bias[b:b + 1, :]
                s = s - jnp.max(s, axis=-1, keepdims=True)
                p = jnp.exp(s)
                p = p * pl.reciprocal(jnp.sum(p, axis=-1, keepdims=True),
                                      approx=True)
                ctx = jnp.dot(p, vb, preferred_element_type=f32)         # (S, Dh)
                # static-offset scratch write instead of lane/sublane concats
                x_scr[rows, h * HEAD_DIM:(h + 1) * HEAD_DIM] = ctx

        # output projection (single fused matmul over the assembled contexts)
        wo = w_ref[w0 + WL_WO:w0 + WL_WO + HIDDEN, :HIDDEN]
        attn = (jnp.dot(x_scr[...].astype(bf16), wo, preferred_element_type=f32)
                + vec_ref[v0 + VL_BO:v0 + VL_BO + 1, :HIDDEN])
        x = _layernorm(x + attn,
                       vec_ref[v0 + VL_LN1_G:v0 + VL_LN1_G + 1, :HIDDEN],
                       vec_ref[v0 + VL_LN1_B:v0 + VL_LN1_B + 1, :HIDDEN])

        # FFN (GELU) + fused residual + LayerNorm
        w1 = w_ref[w0 + WL_W1:w0 + WL_W1 + HIDDEN, :INTER]
        h1 = (jnp.dot(x.astype(bf16), w1, preferred_element_type=f32)
              + vec_ref[v0 + VL_B1:v0 + VL_B1 + 1, :INTER])
        h1 = _gelu(h1)
        w2 = w_ref[w0 + WL_W2:w0 + WL_W2 + INTER, :HIDDEN]
        h2 = (jnp.dot(h1.astype(bf16), w2, preferred_element_type=f32)
              + vec_ref[v0 + VL_B2:v0 + VL_B2 + 1, :HIDDEN])
        x = _layernorm(x + h2,
                       vec_ref[v0 + VL_LN2_G:v0 + VL_LN2_G + 1, :HIDDEN],
                       vec_ref[v0 + VL_LN2_B:v0 + VL_LN2_B + 1, :HIDDEN])

    # [CLS] pooling: strided read from the VMEM scratch (no sublane gather/concat)
    x_scr[...] = x
    cls = x_scr[pl.ds(0, batch, stride=seq), :]                          # (B, H)
    pw = w_ref[W_POOL:W_POOL + HIDDEN, :HIDDEN]
    pooled = jnp.tanh(jnp.dot(cls.astype(bf16), pw, preferred_element_type=f32)
                      + vec_ref[V_POOL_B:V_POOL_B + 1, :HIDDEN])
    fw = w_ref[W_FC:W_FC + HIDDEN, :NUM_CLASSES]
    out_ref[...] = (jnp.dot(pooled.astype(bf16), fw, preferred_element_type=f32)
                    + vec_ref[V_FC_B:V_FC_B + 1, :NUM_CLASSES])


# ------------------------------ model wrapper ---------------------------------
def bert_sequence_classifier(packed, input_ids, attention_mask):
    B, S = input_ids.shape
    ids = input_ids.reshape(B * S, 1).astype(jnp.int32)   # bitcast-style reshape
    mask = attention_mask.astype(jnp.int32)
    return pl.pallas_call(
        functools.partial(_bert_fwd_kernel, batch=B, seq=S),
        out_shape=jax.ShapeDtypeStruct((B, NUM_CLASSES), jnp.float32),
        in_specs=[_VMEM] * 6,
        out_specs=_VMEM,
        scratch_shapes=[pltpu.VMEM((B * S, HIDDEN), jnp.float32)],
    )(ids, mask, packed["word_emb"], packed["vec"], packed["wqkv"], packed["w"])


# ----------------------- one-time parameter packing ---------------------------
def pack_params(params):
    f32, bf16 = jnp.float32, jnp.bfloat16

    def row(v):
        v = jnp.asarray(v, f32).reshape(1, -1)
        return jnp.pad(v, ((0, 0), (0, LANE - v.shape[1])))

    # vector slab (N_VEC, 128) f32
    vec_rows = []
    pos_type = params["pos_emb"] + params["type_emb"][0][None, :]        # (MAX_POS, H)
    vec_rows += [row(pos_type[i]) for i in range(MAX_POS)]
    vec_rows += [row(params["emb_ln_g"]), row(params["emb_ln_b"])]
    for lyr in params["layers"]:
        bq, bk, bv = jnp.split(lyr["bqkv"].reshape(-1), 3)
        for h in range(NUM_HEADS):
            for bvec in (bq, bk, bv):
                vec_rows.append(row(bvec[h * HEAD_DIM:(h + 1) * HEAD_DIM]))
        vec_rows += [row(lyr["bo"]), row(lyr["ln1_g"]), row(lyr["ln1_b"]),
                     row(lyr["b1"]), row(lyr["b2"]),
                     row(lyr["ln2_g"]), row(lyr["ln2_b"])]
    vec_rows += [row(params["pooler_b"]), row(params["fc_b"])]
    vec = jnp.concatenate(vec_rows, axis=0)
    assert vec.shape == (N_VEC, LANE)

    # QKV slab (L*H, 6*128) bf16: head-major, one lane tile per (head, q/k/v)
    wqkv_blocks = []
    for lyr in params["layers"]:
        wq, wk, wv = jnp.split(jnp.asarray(lyr["wqkv"], f32), 3, axis=1)
        blk = jnp.zeros((HIDDEN, QKV_LANES), f32)
        for h in range(NUM_HEADS):
            for c, w in enumerate((wq, wk, wv)):
                t = h * 3 + c
                blk = blk.at[:, t * LANE:t * LANE + HEAD_DIM].set(
                    w[:, h * HEAD_DIM:(h + 1) * HEAD_DIM])
        wqkv_blocks.append(blk)
    wqkv = jnp.concatenate(wqkv_blocks, axis=0).astype(bf16)
    assert wqkv.shape == (NUM_LAYERS * HIDDEN, QKV_LANES)

    # general weight slab (N_WROWS, 128) bf16
    def wpad(w):
        w = jnp.asarray(w, f32)
        return jnp.pad(w, ((0, 0), (0, LANE - w.shape[1])))

    w_rows = []
    for lyr in params["layers"]:
        w_rows += [wpad(lyr["wo"]), wpad(lyr["w1"]), wpad(lyr["w2"])]
    w_rows += [wpad(params["pooler_w"]), wpad(params["fc_w"])]
    w = jnp.concatenate(w_rows, axis=0).astype(bf16)
    assert w.shape == (N_WROWS, LANE)

    return {"word_emb": jnp.asarray(params["word_emb"], f32),
            "vec": vec, "wqkv": wqkv, "w": w}


# ------------------------- deterministic param init ---------------------------
def init_params(key):
    def nrm(k, shape):
        return jax.random.normal(k, shape, jnp.float32) * 0.02

    keys = iter(jax.random.split(key, 64))
    params = {
        "word_emb": nrm(next(keys), (VOCAB, HIDDEN)),
        "pos_emb": nrm(next(keys), (MAX_POS, HIDDEN)),
        "type_emb": nrm(next(keys), (TYPE_VOCAB, HIDDEN)),
        "emb_ln_g": jnp.ones((1, HIDDEN), jnp.float32),
        "emb_ln_b": jnp.zeros((1, HIDDEN), jnp.float32),
        "pooler_w": nrm(next(keys), (HIDDEN, HIDDEN)),
        "pooler_b": jnp.zeros((1, HIDDEN), jnp.float32),
        "fc_w": nrm(next(keys), (HIDDEN, NUM_CLASSES)),
        "fc_b": jnp.zeros((1, NUM_CLASSES), jnp.float32),
        "layers": [],
    }
    for _ in range(NUM_LAYERS):
        params["layers"].append({
            "wqkv": nrm(next(keys), (HIDDEN, 3 * HIDDEN)),   # [Wq | Wk | Wv]
            "bqkv": jnp.zeros((1, 3 * HIDDEN), jnp.float32),
            "wo": nrm(next(keys), (HIDDEN, HIDDEN)),
            "bo": jnp.zeros((1, HIDDEN), jnp.float32),
            "ln1_g": jnp.ones((1, HIDDEN), jnp.float32),
            "ln1_b": jnp.zeros((1, HIDDEN), jnp.float32),
            "w1": nrm(next(keys), (HIDDEN, INTER)),
            "b1": jnp.zeros((1, INTER), jnp.float32),
            "w2": nrm(next(keys), (INTER, HIDDEN)),
            "b2": jnp.zeros((1, HIDDEN), jnp.float32),
            "ln2_g": jnp.ones((1, HIDDEN), jnp.float32),
            "ln2_b": jnp.zeros((1, HIDDEN), jnp.float32),
        })
    return params


# ----------------------------------- main -------------------------------------
if __name__ == "__main__":
    B, S = 2, 8
    key = jax.random.PRNGKey(0)
    kp, kids = jax.random.split(key)
    params = init_params(kp)
    packed = pack_params(params)          # one-time packing (outside the jitted path)

    input_ids = jax.random.randint(kids, (B, S), 0, VOCAB, dtype=jnp.int32)
    attention_mask = jnp.array(
        [[1, 1, 1, 1, 1, 1, 1, 1],
         [1, 1, 1, 1, 1, 0, 0, 0]], dtype=jnp.int32)

    logits = jax.jit(bert_sequence_classifier)(packed, input_ids, attention_mask)
    logits = jax.block_until_ready(logits)
    assert logits.shape == (B, NUM_CLASSES)
    assert bool(jnp.all(jnp.isfinite(logits)))
    print("KERNEL_OK")
</pallas_src>

<mosaic_0001>
module attributes {stable_mosaic.version = 11 : i64} {
  func.func @_bert_fwd_kernel(%arg0: memref<16x1xi32, #tpu.memory_space<vmem>>, %arg1: memref<2x8xi32, #tpu.memory_space<vmem>>, %arg2: memref<100x32xf32, #tpu.memory_space<vmem>>, %arg3: memref<46x128xf32, #tpu.memory_space<vmem>>, %arg4: memref<64x768xbf16, #tpu.memory_space<vmem>>, %arg5: memref<320x128xbf16, #tpu.memory_space<vmem>>, %arg6: memref<2x3xf32, #tpu.memory_space<vmem>>, %arg7: memref<16x32xf32, #tpu.memory_space<vmem>>) attributes {dimension_semantics = [], scalar_prefetch = 0 : i64, scratch_operands = 1 : i64, tpu.core_type = #tpu.core_type<tc>} {
    %c0 = arith.constant 0 : index
    %c0_0 = arith.constant 0 : index
    %0 = vector.load %arg0[%c0, %c0_0] : memref<16x1xi32, #tpu.memory_space<vmem>>, vector<16x1xi32>
    %1 = tpu.iota {dimensions = array<i32: 1>} : vector<16x100xi32>
    %2 = vector.broadcast %0 : vector<16x1xi32> to vector<16x100xi32>
    %3 = arith.cmpi eq, %1, %2 : vector<16x100xi32>
    %4 = arith.extui %3 : vector<16x100xi1> to vector<16x100xi32>
    %5 = arith.sitofp %4 : vector<16x100xi32> to vector<16x100xf32>
    %c0_1 = arith.constant 0 : index
    %c0_2 = arith.constant 0 : index
    %6 = vector.load %arg2[%c0_1, %c0_2] : memref<100x32xf32, #tpu.memory_space<vmem>>, vector<100x32xf32>
    %cst = arith.constant dense<0.000000e+00> : vector<16x32xf32>
    %7 = tpu.matmul %5, %6, %cst {dimension_numbers = #tpu.dot_dimension_numbers<[1], [0], [0], [1], [0, 0, 1, 1], [], []>} : vector<16x100xf32>, vector<100x32xf32>, vector<16x32xf32> -> vector<16x32xf32>
    %c0_3 = arith.constant 0 : index
    %c0_4 = arith.constant 0 : index
    %8 = vector.load %arg3[%c0_3, %c0_4] : memref<46x128xf32, #tpu.memory_space<vmem>>, vector<8x32xf32>
    %9 = tpu.concatenate %8, %8 in 0 : vector<8x32xf32>, vector<8x32xf32> -> vector<16x32xf32>
    %10 = arith.addf %7, %9 : vector<16x32xf32>
    %c16 = arith.constant 16 : index
    %c0_5 = arith.constant 0 : index
    %11 = vector.load %arg3[%c16, %c0_5] : memref<46x128xf32, #tpu.memory_space<vmem>>, vector<1x32xf32>
    %c17 = arith.constant 17 : index
    %c0_6 = arith.constant 0 : index
    %12 = vector.load %arg3[%c17, %c0_6] : memref<46x128xf32, #tpu.memory_space<vmem>>, vector<1x32xf32>
    %cst_7 = arith.constant dense<0.000000e+00> : vector<16xf32>
    %13 = vector.multi_reduction <add>, %10, %cst_7 [1] : vector<16x32xf32> to vector<16xf32>
    %14 = vector.shape_cast %13 : vector<16xf32> to vector<16x1xf32>
    %cst_8 = arith.constant 3.200000e+01 : f32
    %15 = vector.broadcast %cst_8 : f32 to vector<16x1xf32>
    %16 = arith.divf %14, %15 : vector<16x1xf32>
    %17 = vector.broadcast %16 : vector<16x1xf32> to vector<16x32xf32>
    %18 = arith.subf %10, %17 : vector<16x32xf32>
    %19 = arith.mulf %18, %18 : vector<16x32xf32>
    %cst_9 = arith.constant dense<0.000000e+00> : vector<16xf32>
    %20 = vector.multi_reduction <add>, %19, %cst_9 [1] : vector<16x32xf32> to vector<16xf32>
    %21 = vector.shape_cast %20 : vector<16xf32> to vector<16x1xf32>
    %cst_10 = arith.constant 3.200000e+01 : f32
    %22 = vector.broadcast %cst_10 : f32 to vector<16x1xf32>
    %23 = arith.divf %21, %22 : vector<16x1xf32>
    %cst_11 = arith.constant 9.99999996E-13 : f32
    %24 = vector.broadcast %cst_11 : f32 to vector<16x1xf32>
    %25 = arith.addf %23, %24 : vector<16x1xf32>
    %26 = math.rsqrt %25 : vector<16x1xf32>
    %27 = vector.broadcast %26 : vector<16x1xf32> to vector<16x32xf32>
    %28 = arith.mulf %18, %27 : vector<16x32xf32>
    %29 = vector.broadcast %11 : vector<1x32xf32> to vector<16x32xf32>
    %30 = arith.mulf %28, %29 : vector<16x32xf32>
    %31 = vector.broadcast %12 : vector<1x32xf32> to vector<16x32xf32>
    %32 = arith.addf %30, %31 : vector<16x32xf32>
    %c0_12 = arith.constant 0 : index
    %c0_13 = arith.constant 0 : index
    %33 = vector.load %arg1[%c0_12, %c0_13] : memref<2x8xi32, #tpu.memory_space<vmem>>, vector<2x8xi32>
    %34 = arith.sitofp %33 : vector<2x8xi32> to vector<2x8xf32>
    %cst_14 = arith.constant 1.000000e+00 : f32
    %35 = vector.broadcast %cst_14 : f32 to vector<2x8xf32>
    %36 = arith.subf %35, %34 : vector<2x8xf32>
    %cst_15 = arith.constant -1.000000e+04 : f32
    %37 = vector.broadcast %cst_15 : f32 to vector<2x8xf32>
    %38 = arith.mulf %36, %37 : vector<2x8xf32>
    %c0_16 = arith.constant 0 : index
    %c0_17 = arith.constant 0 : index
    %39 = vector.load %arg4[%c0_16, %c0_17] : memref<64x768xbf16, #tpu.memory_space<vmem>>, vector<32x768xbf16>
    %40 = arith.truncf %32 : vector<16x32xf32> to vector<16x32xbf16>
    %cst_18 = arith.constant dense<0.000000e+00> : vector<16x768xf32>
    %41 = tpu.matmul %40, %39, %cst_18 {dimension_numbers = #tpu.dot_dimension_numbers<[1], [0], [0], [1], [0, 0, 1, 1], [], []>} : vector<16x32xbf16>, vector<32x768xbf16>, vector<16x768xf32> -> vector<16x768xf32>
    %42 = vector.extract_strided_slice %41 {offsets = [0, 0], sizes = [16, 16], strides = [1, 1]} : vector<16x768xf32> to vector<16x16xf32>
    %c18 = arith.constant 18 : index
    %c0_19 = arith.constant 0 : index
    %43 = vector.load %arg3[%c18, %c0_19] : memref<46x128xf32, #tpu.memory_space<vmem>>, vector<1x16xf32>
    %44 = vector.broadcast %43 : vector<1x16xf32> to vector<16x16xf32>
    %45 = arith.addf %42, %44 : vector<16x16xf32>
    %46 = vector.extract_strided_slice %41 {offsets = [0, 128], sizes = [16, 16], strides = [1, 1]} : vector<16x768xf32> to vector<16x16xf32>
    %c19 = arith.constant 19 : index
    %c0_20 = arith.constant 0 : index
    %47 = vector.load %arg3[%c19, %c0_20] : memref<46x128xf32, #tpu.memory_space<vmem>>, vector<1x16xf32>
    %48 = vector.broadcast %47 : vector<1x16xf32> to vector<16x16xf32>
    %49 = arith.addf %46, %48 : vector<16x16xf32>
    %50 = vector.extract_strided_slice %41 {offsets = [0, 256], sizes = [16, 16], strides = [1, 1]} : vector<16x768xf32> to vector<16x16xf32>
    %c20 = arith.constant 20 : index
    %c0_21 = arith.constant 0 : index
    %51 = vector.load %arg3[%c20, %c0_21] : memref<46x128xf32, #tpu.memory_space<vmem>>, vector<1x16xf32>
    %52 = vector.broadcast %51 : vector<1x16xf32> to vector<16x16xf32>
    %53 = arith.addf %50, %52 : vector<16x16xf32>
    %54 = vector.extract_strided_slice %45 {offsets = [0, 0], sizes = [8, 16], strides = [1, 1]} : vector<16x16xf32> to vector<8x16xf32>
    %55 = vector.extract_strided_slice %49 {offsets = [0, 0], sizes = [8, 16], strides = [1, 1]} : vector<16x16xf32> to vector<8x16xf32>
    %56 = vector.extract_strided_slice %53 {offsets = [0, 0], sizes = [8, 16], strides = [1, 1]} : vector<16x16xf32> to vector<8x16xf32>
    %cst_22 = arith.constant dense<0.000000e+00> : vector<8x8xf32>
    %57 = tpu.matmul %54, %55, %cst_22 {dimension_numbers = #tpu.dot_dimension_numbers<[1], [1], [0], [0], [0, 0, 1, 0], [], []>} : vector<8x16xf32>, vector<8x16xf32>, vector<8x8xf32> -> vector<8x8xf32>
    %cst_23 = arith.constant 2.500000e-01 : f32
    %58 = vector.broadcast %cst_23 : f32 to vector<8x8xf32>
    %59 = arith.mulf %57, %58 : vector<8x8xf32>
    %60 = vector.extract_strided_slice %38 {offsets = [0, 0], sizes = [1, 8], strides = [1, 1]} : vector<2x8xf32> to vector<1x8xf32>
    %61 = vector.broadcast %60 : vector<1x8xf32> to vector<8x8xf32>
    %62 = arith.addf %59, %61 : vector<8x8xf32>
    %cst_24 = arith.constant dense<0xFF800000> : vector<8xf32>
    %63 = vector.multi_reduction <maximumf>, %62, %cst_24 [1] : vector<8x8xf32> to vector<8xf32>
    %64 = vector.shape_cast %63 : vector<8xf32> to vector<8x1xf32>
    %65 = vector.broadcast %64 : vector<8x1xf32> to vector<8x8xf32>
    %66 = arith.subf %62, %65 : vector<8x8xf32>
    %67 = math.exp %66 : vector<8x8xf32>
    %cst_25 = arith.constant dense<0.000000e+00> : vector<8xf32>
    %68 = vector.multi_reduction <add>, %67, %cst_25 [1] : vector<8x8xf32> to vector<8xf32>
    %69 = vector.shape_cast %68 : vector<8xf32> to vector<8x1xf32>
    %70 = tpu.reciprocal %69 {approx = true} : vector<8x1xf32> -> vector<8x1xf32>
    %71 = vector.broadcast %70 : vector<8x1xf32> to vector<8x8xf32>
    %72 = arith.mulf %67, %71 : vector<8x8xf32>
    %cst_26 = arith.constant dense<0.000000e+00> : vector<8x16xf32>
    %73 = tpu.matmul %72, %56, %cst_26 {dimension_numbers = #tpu.dot_dimension_numbers<[1], [0], [0], [1], [0, 0, 1, 1], [], []>} : vector<8x8xf32>, vector<8x16xf32>, vector<8x16xf32> -> vector<8x16xf32>
    %c0_27 = arith.constant 0 : index
    %c0_28 = arith.constant 0 : index
    %74 = vector.load %arg7[%c0_27, %c0_28] : memref<16x32xf32, #tpu.memory_space<vmem>>, vector<8x16xf32>
    tpu.vector_store %arg7[%c0_27, %c0_28], %73 {strides = array<i32>} : memref<16x32xf32, #tpu.memory_space<vmem>>, vector<8x16xf32>,
    %75 = vector.extract_strided_slice %45 {offsets = [8, 0], sizes = [8, 16], strides = [1, 1]} : vector<16x16xf32> to vector<8x16xf32>
    %76 = vector.extract_strided_slice %49 {offsets = [8, 0], sizes = [8, 16], strides = [1, 1]} : vector<16x16xf32> to vector<8x16xf32>
    %77 = vector.extract_strided_slice %53 {offsets = [8, 0], sizes = [8, 16], strides = [1, 1]} : vector<16x16xf32> to vector<8x16xf32>
    %cst_29 = arith.constant dense<0.000000e+00> : vector<8x8xf32>
    %78 = tpu.matmul %75, %76, %cst_29 {dimension_numbers = #tpu.dot_dimension_numbers<[1], [1], [0], [0], [0, 0, 1, 0], [], []>} : vector<8x16xf32>, vector<8x16xf32>, vector<8x8xf32> -> vector<8x8xf32>
    %cst_30 = arith.constant 2.500000e-01 : f32
    %79 = vector.broadcast %cst_30 : f32 to vector<8x8xf32>
    %80 = arith.mulf %78, %79 : vector<8x8xf32>
    %81 = vector.extract_strided_slice %38 {offsets = [1, 0], sizes = [1, 8], strides = [1, 1]} : vector<2x8xf32> to vector<1x8xf32>
    %82 = vector.broadcast %81 : vector<1x8xf32> to vector<8x8xf32>
    %83 = arith.addf %80, %82 : vector<8x8xf32>
    %cst_31 = arith.constant dense<0xFF800000> : vector<8xf32>
    %84 = vector.multi_reduction <maximumf>, %83, %cst_31 [1] : vector<8x8xf32> to vector<8xf32>
    %85 = vector.shape_cast %84 : vector<8xf32> to vector<8x1xf32>
    %86 = vector.broadcast %85 : vector<8x1xf32> to vector<8x8xf32>
    %87 = arith.subf %83, %86 : vector<8x8xf32>
    %88 = math.exp %87 : vector<8x8xf32>
    %cst_32 = arith.constant dense<0.000000e+00> : vector<8xf32>
    %89 = vector.multi_reduction <add>, %88, %cst_32 [1] : vector<8x8xf32> to vector<8xf32>
    %90 = vector.shape_cast %89 : vector<8xf32> to vector<8x1xf32>
    %91 = tpu.reciprocal %90 {approx = true} : vector<8x1xf32> -> vector<8x1xf32>
    %92 = vector.broadcast %91 : vector<8x1xf32> to vector<8x8xf32>
    %93 = arith.mulf %88, %92 : vector<8x8xf32>
    %cst_33 = arith.constant dense<0.000000e+00> : vector<8x16xf32>
    %94 = tpu.matmul %93, %77, %cst_33 {dimension_numbers = #tpu.dot_dimension_numbers<[1], [0], [0], [1], [0, 0, 1, 1], [], []>} : vector<8x8xf32>, vector<8x16xf32>, vector<8x16xf32> -> vector<8x16xf32>
    %c8 = arith.constant 8 : index
    %c0_34 = arith.constant 0 : index
    %95 = vector.load %arg7[%c8, %c0_34] : memref<16x32xf32, #tpu.memory_space<vmem>>, vector<8x16xf32>
    tpu.vector_store %arg7[%c8, %c0_34], %94 {strides = array<i32>} : memref<16x32xf32, #tpu.memory_space<vmem>>, vector<8x16xf32>,
    %96 = vector.extract_strided_slice %41 {offsets = [0, 384], sizes = [16, 16], strides = [1, 1]} : vector<16x768xf32> to vector<16x16xf32>
    %c21 = arith.constant 21 : index
    %c0_35 = arith.constant 0 : index
    %97 = vector.load %arg3[%c21, %c0_35] : memref<46x128xf32, #tpu.memory_space<vmem>>, vector<1x16xf32>
    %98 = vector.broadcast %97 : vector<1x16xf32> to vector<16x16xf32>
    %99 = arith.addf %96, %98 : vector<16x16xf32>
    %100 = vector.extract_strided_slice %41 {offsets = [0, 512], sizes = [16, 16], strides = [1, 1]} : vector<16x768xf32> to vector<16x16xf32>
    %c22 = arith.constant 22 : index
    %c0_36 = arith.constant 0 : index
    %101 = vector.load %arg3[%c22, %c0_36] : memref<46x128xf32, #tpu.memory_space<vmem>>, vector<1x16xf32>
    %102 = vector.broadcast %101 : vector<1x16xf32> to vector<16x16xf32>
    %103 = arith.addf %100, %102 : vector<16x16xf32>
    %104 = vector.extract_strided_slice %41 {offsets = [0, 640], sizes = [16, 16], strides = [1, 1]} : vector<16x768xf32> to vector<16x16xf32>
    %c23 = arith.constant 23 : index
    %c0_37 = arith.constant 0 : index
    %105 = vector.load %arg3[%c23, %c0_37] : memref<46x128xf32, #tpu.memory_space<vmem>>, vector<1x16xf32>
    %106 = vector.broadcast %105 : vector<1x16xf32> to vector<16x16xf32>
    %107 = arith.addf %104, %106 : vector<16x16xf32>
    %108 = vector.extract_strided_slice %99 {offsets = [0, 0], sizes = [8, 16], strides = [1, 1]} : vector<16x16xf32> to vector<8x16xf32>
    %109 = vector.extract_strided_slice %103 {offsets = [0, 0], sizes = [8, 16], strides = [1, 1]} : vector<16x16xf32> to vector<8x16xf32>
    %110 = vector.extract_strided_slice %107 {offsets = [0, 0], sizes = [8, 16], strides = [1, 1]} : vector<16x16xf32> to vector<8x16xf32>
    %cst_38 = arith.constant dense<0.000000e+00> : vector<8x8xf32>
    %111 = tpu.matmul %108, %109, %cst_38 {dimension_numbers = #tpu.dot_dimension_numbers<[1], [1], [0], [0], [0, 0, 1, 0], [], []>} : vector<8x16xf32>, vector<8x16xf32>, vector<8x8xf32> -> vector<8x8xf32>
    %cst_39 = arith.constant 2.500000e-01 : f32
    %112 = vector.broadcast %cst_39 : f32 to vector<8x8xf32>
    %113 = arith.mulf %111, %112 : vector<8x8xf32>
    %114 = vector.extract_strided_slice %38 {offsets = [0, 0], sizes = [1, 8], strides = [1, 1]} : vector<2x8xf32> to vector<1x8xf32>
    %115 = vector.broadcast %114 : vector<1x8xf32> to vector<8x8xf32>
    %116 = arith.addf %113, %115 : vector<8x8xf32>
    %cst_40 = arith.constant dense<0xFF800000> : vector<8xf32>
    %117 = vector.multi_reduction <maximumf>, %116, %cst_40 [1] : vector<8x8xf32> to vector<8xf32>
    %118 = vector.shape_cast %117 : vector<8xf32> to vector<8x1xf32>
    %119 = vector.broadcast %118 : vector<8x1xf32> to vector<8x8xf32>
    %120 = arith.subf %116, %119 : vector<8x8xf32>
    %121 = math.exp %120 : vector<8x8xf32>
    %cst_41 = arith.constant dense<0.000000e+00> : vector<8xf32>
    %122 = vector.multi_reduction <add>, %121, %cst_41 [1] : vector<8x8xf32> to vector<8xf32>
    %123 = vector.shape_cast %122 : vector<8xf32> to vector<8x1xf32>
    %124 = tpu.reciprocal %123 {approx = true} : vector<8x1xf32> -> vector<8x1xf32>
    %125 = vector.broadcast %124 : vector<8x1xf32> to vector<8x8xf32>
    %126 = arith.mulf %121, %125 : vector<8x8xf32>
    %cst_42 = arith.constant dense<0.000000e+00> : vector<8x16xf32>
    %127 = tpu.matmul %126, %110, %cst_42 {dimension_numbers = #tpu.dot_dimension_numbers<[1], [0], [0], [1], [0, 0, 1, 1], [], []>} : vector<8x8xf32>, vector<8x16xf32>, vector<8x16xf32> -> vector<8x16xf32>
    %c0_43 = arith.constant 0 : index
    %c16_44 = arith.constant 16 : index
    %128 = vector.load %arg7[%c0_43, %c16_44] : memref<16x32xf32, #tpu.memory_space<vmem>>, vector<8x16xf32>
    tpu.vector_store %arg7[%c0_43, %c16_44], %127 {strides = array<i32>} : memref<16x32xf32, #tpu.memory_space<vmem>>, vector<8x16xf32>,
    %129 = vector.extract_strided_slice %99 {offsets = [8, 0], sizes = [8, 16], strides = [1, 1]} : vector<16x16xf32> to vector<8x16xf32>
    %130 = vector.extract_strided_slice %103 {offsets = [8, 0], sizes = [8, 16], strides = [1, 1]} : vector<16x16xf32> to vector<8x16xf32>
    %131 = vector.extract_strided_slice %107 {offsets = [8, 0], sizes = [8, 16], strides = [1, 1]} : vector<16x16xf32> to vector<8x16xf32>
    %cst_45 = arith.constant dense<0.000000e+00> : vector<8x8xf32>
    %132 = tpu.matmul %129, %130, %cst_45 {dimension_numbers = #tpu.dot_dimension_numbers<[1], [1], [0], [0], [0, 0, 1, 0], [], []>} : vector<8x16xf32>, vector<8x16xf32>, vector<8x8xf32> -> vector<8x8xf32>
    %cst_46 = arith.constant 2.500000e-01 : f32
    %133 = vector.broadcast %cst_46 : f32 to vector<8x8xf32>
    %134 = arith.mulf %132, %133 : vector<8x8xf32>
    %135 = vector.extract_strided_slice %38 {offsets = [1, 0], sizes = [1, 8], strides = [1, 1]} : vector<2x8xf32> to vector<1x8xf32>
    %136 = vector.broadcast %135 : vector<1x8xf32> to vector<8x8xf32>
    %137 = arith.addf %134, %136 : vector<8x8xf32>
    %cst_47 = arith.constant dense<0xFF800000> : vector<8xf32>
    %138 = vector.multi_reduction <maximumf>, %137, %cst_47 [1] : vector<8x8xf32> to vector<8xf32>
    %139 = vector.shape_cast %138 : vector<8xf32> to vector<8x1xf32>
    %140 = vector.broadcast %139 : vector<8x1xf32> to vector<8x8xf32>
    %141 = arith.subf %137, %140 : vector<8x8xf32>
    %142 = math.exp %141 : vector<8x8xf32>
    %cst_48 = arith.constant dense<0.000000e+00> : vector<8xf32>
    %143 = vector.multi_reduction <add>, %142, %cst_48 [1] : vector<8x8xf32> to vector<8xf32>
    %144 = vector.shape_cast %143 : vector<8xf32> to vector<8x1xf32>
    %145 = tpu.reciprocal %144 {approx = true} : vector<8x1xf32> -> vector<8x1xf32>
    %146 = vector.broadcast %145 : vector<8x1xf32> to vector<8x8xf32>
    %147 = arith.mulf %142, %146 : vector<8x8xf32>
    %cst_49 = arith.constant dense<0.000000e+00> : vector<8x16xf32>
    %148 = tpu.matmul %147, %131, %cst_49 {dimension_numbers = #tpu.dot_dimension_numbers<[1], [0], [0], [1], [0, 0, 1, 1], [], []>} : vector<8x8xf32>, vector<8x16xf32>, vector<8x16xf32> -> vector<8x16xf32>
    %c8_50 = arith.constant 8 : index
    %c16_51 = arith.constant 16 : index
    %149 = vector.load %arg7[%c8_50, %c16_51] : memref<16x32xf32, #tpu.memory_space<vmem>>, vector<8x16xf32>
    tpu.vector_store %arg7[%c8_50, %c16_51], %148 {strides = array<i32>} : memref<16x32xf32, #tpu.memory_space<vmem>>, vector<8x16xf32>,
    %c0_52 = arith.constant 0 : index
    %c0_53 = arith.constant 0 : index
    %150 = vector.load %arg5[%c0_52, %c0_53] : memref<320x128xbf16, #tpu.memory_space<vmem>>, vector<32x32xbf16>
    %c0_54 = arith.constant 0 : index
    %c0_55 = arith.constant 0 : index
    %151 = vector.load %arg7[%c0_54, %c0_55] : memref<16x32xf32, #tpu.memory_space<vmem>>, vector<16x32xf32>
    %152 = arith.truncf %151 : vector<16x32xf32> to vector<16x32xbf16>
    %cst_56 = arith.constant dense<0.000000e+00> : vector<16x32xf32>
    %153 = tpu.matmul %152, %150, %cst_56 {dimension_numbers = #tpu.dot_dimension_numbers<[1], [0], [0], [1], [0, 0, 1, 1], [], []>} : vector<16x32xbf16>, vector<32x32xbf16>, vector<16x32xf32> -> vector<16x32xf32>
    %c24 = arith.constant 24 : index
    %c0_57 = arith.constant 0 : index
    %154 = vector.load %arg3[%c24, %c0_57] : memref<46x128xf32, #tpu.memory_space<vmem>>, vector<1x32xf32>
    %155 = vector.broadcast %154 : vector<1x32xf32> to vector<16x32xf32>
    %156 = arith.addf %153, %155 : vector<16x32xf32>
    %157 = arith.addf %32, %156 : vector<16x32xf32>
    %c25 = arith.constant 25 : index
    %c0_58 = arith.constant 0 : index
    %158 = vector.load %arg3[%c25, %c0_58] : memref<46x128xf32, #tpu.memory_space<vmem>>, vector<1x32xf32>
    %c26 = arith.constant 26 : index
    %c0_59 = arith.constant 0 : index
    %159 = vector.load %arg3[%c26, %c0_59] : memref<46x128xf32, #tpu.memory_space<vmem>>, vector<1x32xf32>
    %cst_60 = arith.constant dense<0.000000e+00> : vector<16xf32>
    %160 = vector.multi_reduction <add>, %157, %cst_60 [1] : vector<16x32xf32> to vector<16xf32>
    %161 = vector.shape_cast %160 : vector<16xf32> to vector<16x1xf32>
    %cst_61 = arith.constant 3.200000e+01 : f32
    %162 = vector.broadcast %cst_61 : f32 to vector<16x1xf32>
    %163 = arith.divf %161, %162 : vector<16x1xf32>
    %164 = vector.broadcast %163 : vector<16x1xf32> to vector<16x32xf32>
    %165 = arith.subf %157, %164 : vector<16x32xf32>
    %166 = arith.mulf %165, %165 : vector<16x32xf32>
    %cst_62 = arith.constant dense<0.000000e+00> : vector<16xf32>
    %167 = vector.multi_reduction <add>, %166, %cst_62 [1] : vector<16x32xf32> to vector<16xf32>
    %168 = vector.shape_cast %167 : vector<16xf32> to vector<16x1xf32>
    %cst_63 = arith.constant 3.200000e+01 : f32
    %169 = vector.broadcast %cst_63 : f32 to vector<16x1xf32>
    %170 = arith.divf %168, %169 : vector<16x1xf32>
    %cst_64 = arith.constant 9.99999996E-13 : f32
    %171 = vector.broadcast %cst_64 : f32 to vector<16x1xf32>
    %172 = arith.addf %170, %171 : vector<16x1xf32>
    %173 = math.rsqrt %172 : vector<16x1xf32>
    %174 = vector.broadcast %173 : vector<16x1xf32> to vector<16x32xf32>
    %175 = arith.mulf %165, %174 : vector<16x32xf32>
    %176 = vector.broadcast %158 : vector<1x32xf32> to vector<16x32xf32>
    %177 = arith.mulf %175, %176 : vector<16x32xf32>
    %178 = vector.broadcast %159 : vector<1x32xf32> to vector<16x32xf32>
    %179 = arith.addf %177, %178 : vector<16x32xf32>
    %c32 = arith.constant 32 : index
    %c0_65 = arith.constant 0 : index
    %180 = vector.load %arg5[%c32, %c0_65] : memref<320x128xbf16, #tpu.memory_space<vmem>>, vector<32x64xbf16>
    %181 = arith.truncf %179 : vector<16x32xf32> to vector<16x32xbf16>
    %cst_66 = arith.constant dense<0.000000e+00> : vector<16x64xf32>
    %182 = tpu.matmul %181, %180, %cst_66 {dimension_numbers = #tpu.dot_dimension_numbers<[1], [0], [0], [1], [0, 0, 1, 1], [], []>} : vector<16x32xbf16>, vector<32x64xbf16>, vector<16x64xf32> -> vector<16x64xf32>
    %c27 = arith.constant 27 : index
    %c0_67 = arith.constant 0 : index
    %183 = vector.load %arg3[%c27, %c0_67] : memref<46x128xf32, #tpu.memory_space<vmem>>, vector<1x64xf32>
    %184 = vector.broadcast %183 : vector<1x64xf32> to vector<16x64xf32>
    %185 = arith.addf %182, %184 : vector<16x64xf32>
    %cst_68 = arith.constant 5.000000e-01 : f32
    %186 = vector.broadcast %cst_68 : f32 to vector<16x64xf32>
    %187 = arith.mulf %186, %185 : vector<16x64xf32>
    %cst_69 = arith.constant 4.471500e-02 : f32
    %188 = vector.broadcast %cst_69 : f32 to vector<16x64xf32>
    %189 = arith.mulf %188, %185 : vector<16x64xf32>
    %190 = arith.mulf %189, %185 : vector<16x64xf32>
    %191 = arith.mulf %190, %185 : vector<16x64xf32>
    %192 = arith.addf %185, %191 : vector<16x64xf32>
    %cst_70 = arith.constant 0.797884583 : f32
    %193 = vector.broadcast %cst_70 : f32 to vector<16x64xf32>
    %194 = arith.mulf %193, %192 : vector<16x64xf32>
    %195 = math.tanh %194 : vector<16x64xf32>
    %cst_71 = arith.constant 1.000000e+00 : f32
    %196 = vector.broadcast %cst_71 : f32 to vector<16x64xf32>
    %197 = arith.addf %196, %195 : vector<16x64xf32>
    %198 = arith.mulf %187, %197 : vector<16x64xf32>
    %c64 = arith.constant 64 : index
    %c0_72 = arith.constant 0 : index
    %199 = vector.load %arg5[%c64, %c0_72] : memref<320x128xbf16, #tpu.memory_space<vmem>>, vector<64x32xbf16>
    %200 = arith.truncf %198 : vector<16x64xf32> to vector<16x64xbf16>
    %cst_73 = arith.constant dense<0.000000e+00> : vector<16x32xf32>
    %201 = tpu.matmul %200, %199, %cst_73 {dimension_numbers = #tpu.dot_dimension_numbers<[1], [0], [0], [1], [0, 0, 1, 1], [], []>} : vector<16x64xbf16>, vector<64x32xbf16>, vector<16x32xf32> -> vector<16x32xf32>
    %c28 = arith.constant 28 : index
    %c0_74 = arith.constant 0 : index
    %202 = vector.load %arg3[%c28, %c0_74] : memref<46x128xf32, #tpu.memory_space<vmem>>, vector<1x32xf32>
    %203 = vector.broadcast %202 : vector<1x32xf32> to vector<16x32xf32>
    %204 = arith.addf %201, %203 : vector<16x32xf32>
    %205 = arith.addf %179, %204 : vector<16x32xf32>
    %c29 = arith.constant 29 : index
    %c0_75 = arith.constant 0 : index
    %206 = vector.load %arg3[%c29, %c0_75] : memref<46x128xf32, #tpu.memory_space<vmem>>, vector<1x32xf32>
    %c30 = arith.constant 30 : index
    %c0_76 = arith.constant 0 : index
    %207 = vector.load %arg3[%c30, %c0_76] : memref<46x128xf32, #tpu.memory_space<vmem>>, vector<1x32xf32>
    %cst_77 = arith.constant dense<0.000000e+00> : vector<16xf32>
    %208 = vector.multi_reduction <add>, %205, %cst_77 [1] : vector<16x32xf32> to vector<16xf32>
    %209 = vector.shape_cast %208 : vector<16xf32> to vector<16x1xf32>
    %cst_78 = arith.constant 3.200000e+01 : f32
    %210 = vector.broadcast %cst_78 : f32 to vector<16x1xf32>
    %211 = arith.divf %209, %210 : vector<16x1xf32>
    %212 = vector.broadcast %211 : vector<16x1xf32> to vector<16x32xf32>
    %213 = arith.subf %205, %212 : vector<16x32xf32>
    %214 = arith.mulf %213, %213 : vector<16x32xf32>
    %cst_79 = arith.constant dense<0.000000e+00> : vector<16xf32>
    %215 = vector.multi_reduction <add>, %214, %cst_79 [1] : vector<16x32xf32> to vector<16xf32>
    %216 = vector.shape_cast %215 : vector<16xf32> to vector<16x1xf32>
    %cst_80 = arith.constant 3.200000e+01 : f32
    %217 = vector.broadcast %cst_80 : f32 to vector<16x1xf32>
    %218 = arith.divf %216, %217 : vector<16x1xf32>
    %cst_81 = arith.constant 9.99999996E-13 : f32
    %219 = vector.broadcast %cst_81 : f32 to vector<16x1xf32>
    %220 = arith.addf %218, %219 : vector<16x1xf32>
    %221 = math.rsqrt %220 : vector<16x1xf32>
    %222 = vector.broadcast %221 : vector<16x1xf32> to vector<16x32xf32>
    %223 = arith.mulf %213, %222 : vector<16x32xf32>
    %224 = vector.broadcast %206 : vector<1x32xf32> to vector<16x32xf32>
    %225 = arith.mulf %223, %224 : vector<16x32xf32>
    %226 = vector.broadcast %207 : vector<1x32xf32> to vector<16x32xf32>
    %227 = arith.addf %225, %226 : vector<16x32xf32>
    %c32_82 = arith.constant 32 : index
    %c0_83 = arith.constant 0 : index
    %228 = vector.load %arg4[%c32_82, %c0_83] : memref<64x768xbf16, #tpu.memory_space<vmem>>, vector<32x768xbf16>
    %229 = arith.truncf %227 : vector<16x32xf32> to vector<16x32xbf16>
    %cst_84 = arith.constant dense<0.000000e+00> : vector<16x768xf32>
    %230 = tpu.matmul %229, %228, %cst_84 {dimension_numbers = #tpu.dot_dimension_numbers<[1], [0], [0], [1], [0, 0, 1, 1], [], []>} : vector<16x32xbf16>, vector<32x768xbf16>, vector<16x768xf32> -> vector<16x768xf32>
    %231 = vector.extract_strided_slice %230 {offsets = [0, 0], sizes = [16, 16], strides = [1, 1]} : vector<16x768xf32> to vector<16x16xf32>
    %c31 = arith.constant 31 : index
    %c0_85 = arith.constant 0 : index
    %232 = vector.load %arg3[%c31, %c0_85] : memref<46x128xf32, #tpu.memory_space<vmem>>, vector<1x16xf32>
    %233 = vector.broadcast %232 : vector<1x16xf32> to vector<16x16xf32>
    %234 = arith.addf %231, %233 : vector<16x16xf32>
    %235 = vector.extract_strided_slice %230 {offsets = [0, 128], sizes = [16, 16], strides = [1, 1]} : vector<16x768xf32> to vector<16x16xf32>
    %c32_86 = arith.constant 32 : index
    %c0_87 = arith.constant 0 : index
    %236 = vector.load %arg3[%c32_86, %c0_87] : memref<46x128xf32, #tpu.memory_space<vmem>>, vector<1x16xf32>
    %237 = vector.broadcast %236 : vector<1x16xf32> to vector<16x16xf32>
    %238 = arith.addf %235, %237 : vector<16x16xf32>
    %239 = vector.extract_strided_slice %230 {offsets = [0, 256], sizes = [16, 16], strides = [1, 1]} : vector<16x768xf32> to vector<16x16xf32>
    %c33 = arith.constant 33 : index
    %c0_88 = arith.constant 0 : index
    %240 = vector.load %arg3[%c33, %c0_88] : memref<46x128xf32, #tpu.memory_space<vmem>>, vector<1x16xf32>
    %241 = vector.broadcast %240 : vector<1x16xf32> to vector<16x16xf32>
    %242 = arith.addf %239, %241 : vector<16x16xf32>
    %243 = vector.extract_strided_slice %234 {offsets = [0, 0], sizes = [8, 16], strides = [1, 1]} : vector<16x16xf32> to vector<8x16xf32>
    %244 = vector.extract_strided_slice %238 {offsets = [0, 0], sizes = [8, 16], strides = [1, 1]} : vector<16x16xf32> to vector<8x16xf32>
    %245 = vector.extract_strided_slice %242 {offsets = [0, 0], sizes = [8, 16], strides = [1, 1]} : vector<16x16xf32> to vector<8x16xf32>
    %cst_89 = arith.constant dense<0.000000e+00> : vector<8x8xf32>
    %246 = tpu.matmul %243, %244, %cst_89 {dimension_numbers = #tpu.dot_dimension_numbers<[1], [1], [0], [0], [0, 0, 1, 0], [], []>} : vector<8x16xf32>, vector<8x16xf32>, vector<8x8xf32> -> vector<8x8xf32>
    %cst_90 = arith.constant 2.500000e-01 : f32
    %247 = vector.broadcast %cst_90 : f32 to vector<8x8xf32>
    %248 = arith.mulf %246, %247 : vector<8x8xf32>
    %249 = vector.extract_strided_slice %38 {offsets = [0, 0], sizes = [1, 8], strides = [1, 1]} : vector<2x8xf32> to vector<1x8xf32>
    %250 = vector.broadcast %249 : vector<1x8xf32> to vector<8x8xf32>
    %251 = arith.addf %248, %250 : vector<8x8xf32>
    %cst_91 = arith.constant dense<0xFF800000> : vector<8xf32>
    %252 = vector.multi_reduction <maximumf>, %251, %cst_91 [1] : vector<8x8xf32> to vector<8xf32>
    %253 = vector.shape_cast %252 : vector<8xf32> to vector<8x1xf32>
    %254 = vector.broadcast %253 : vector<8x1xf32> to vector<8x8xf32>
    %255 = arith.subf %251, %254 : vector<8x8xf32>
    %256 = math.exp %255 : vector<8x8xf32>
    %cst_92 = arith.constant dense<0.000000e+00> : vector<8xf32>
    %257 = vector.multi_reduction <add>, %256, %cst_92 [1] : vector<8x8xf32> to vector<8xf32>
    %258 = vector.shape_cast %257 : vector<8xf32> to vector<8x1xf32>
    %259 = tpu.reciprocal %258 {approx = true} : vector<8x1xf32> -> vector<8x1xf32>
    %260 = vector.broadcast %259 : vector<8x1xf32> to vector<8x8xf32>
    %261 = arith.mulf %256, %260 : vector<8x8xf32>
    %cst_93 = arith.constant dense<0.000000e+00> : vector<8x16xf32>
    %262 = tpu.matmul %261, %245, %cst_93 {dimension_numbers = #tpu.dot_dimension_numbers<[1], [0], [0], [1], [0, 0, 1, 1], [], []>} : vector<8x8xf32>, vector<8x16xf32>, vector<8x16xf32> -> vector<8x16xf32>
    %c0_94 = arith.constant 0 : index
    %c0_95 = arith.constant 0 : index
    %263 = vector.load %arg7[%c0_94, %c0_95] : memref<16x32xf32, #tpu.memory_space<vmem>>, vector<8x16xf32>
    tpu.vector_store %arg7[%c0_94, %c0_95], %262 {strides = array<i32>} : memref<16x32xf32, #tpu.memory_space<vmem>>, vector<8x16xf32>,
    %264 = vector.extract_strided_slice %234 {offsets = [8, 0], sizes = [8, 16], strides = [1, 1]} : vector<16x16xf32> to vector<8x16xf32>
    %265 = vector.extract_strided_slice %238 {offsets = [8, 0], sizes = [8, 16], strides = [1, 1]} : vector<16x16xf32> to vector<8x16xf32>
    %266 = vector.extract_strided_slice %242 {offsets = [8, 0], sizes = [8, 16], strides = [1, 1]} : vector<16x16xf32> to vector<8x16xf32>
    %cst_96 = arith.constant dense<0.000000e+00> : vector<8x8xf32>
    %267 = tpu.matmul %264, %265, %cst_96 {dimension_numbers = #tpu.dot_dimension_numbers<[1], [1], [0], [0], [0, 0, 1, 0], [], []>} : vector<8x16xf32>, vector<8x16xf32>, vector<8x8xf32> -> vector<8x8xf32>
    %cst_97 = arith.constant 2.500000e-01 : f32
    %268 = vector.broadcast %cst_97 : f32 to vector<8x8xf32>
    %269 = arith.mulf %267, %268 : vector<8x8xf32>
    %270 = vector.extract_strided_slice %38 {offsets = [1, 0], sizes = [1, 8], strides = [1, 1]} : vector<2x8xf32> to vector<1x8xf32>
    %271 = vector.broadcast %270 : vector<1x8xf32> to vector<8x8xf32>
    %272 = arith.addf %269, %271 : vector<8x8xf32>
    %cst_98 = arith.constant dense<0xFF800000> : vector<8xf32>
    %273 = vector.multi_reduction <maximumf>, %272, %cst_98 [1] : vector<8x8xf32> to vector<8xf32>
    %274 = vector.shape_cast %273 : vector<8xf32> to vector<8x1xf32>
    %275 = vector.broadcast %274 : vector<8x1xf32> to vector<8x8xf32>
    %276 = arith.subf %272, %275 : vector<8x8xf32>
    %277 = math.exp %276 : vector<8x8xf32>
    %cst_99 = arith.constant dense<0.000000e+00> : vector<8xf32>
    %278 = vector.multi_reduction <add>, %277, %cst_99 [1] : vector<8x8xf32> to vector<8xf32>
    %279 = vector.shape_cast %278 : vector<8xf32> to vector<8x1xf32>
    %280 = tpu.reciprocal %279 {approx = true} : vector<8x1xf32> -> vector<8x1xf32>
    %281 = vector.broadcast %280 : vector<8x1xf32> to vector<8x8xf32>
    %282 = arith.mulf %277, %281 : vector<8x8xf32>
    %cst_100 = arith.constant dense<0.000000e+00> : vector<8x16xf32>
    %283 = tpu.matmul %282, %266, %cst_100 {dimension_numbers = #tpu.dot_dimension_numbers<[1], [0], [0], [1], [0, 0, 1, 1], [], []>} : vector<8x8xf32>, vector<8x16xf32>, vector<8x16xf32> -> vector<8x16xf32>
    %c8_101 = arith.constant 8 : index
    %c0_102 = arith.constant 0 : index
    %284 = vector.load %arg7[%c8_101, %c0_102] : memref<16x32xf32, #tpu.memory_space<vmem>>, vector<8x16xf32>
    tpu.vector_store %arg7[%c8_101, %c0_102], %283 {strides = array<i32>} : memref<16x32xf32, #tpu.memory_space<vmem>>, vector<8x16xf32>,
    %285 = vector.extract_strided_slice %230 {offsets = [0, 384], sizes = [16, 16], strides = [1, 1]} : vector<16x768xf32> to vector<16x16xf32>
    %c34 = arith.constant 34 : index
    %c0_103 = arith.constant 0 : index
    %286 = vector.load %arg3[%c34, %c0_103] : memref<46x128xf32, #tpu.memory_space<vmem>>, vector<1x16xf32>
    %287 = vector.broadcast %286 : vector<1x16xf32> to vector<16x16xf32>
    %288 = arith.addf %285, %287 : vector<16x16xf32>
    %289 = vector.extract_strided_slice %230 {offsets = [0, 512], sizes = [16, 16], strides = [1, 1]} : vector<16x768xf32> to vector<16x16xf32>
    %c35 = arith.constant 35 : index
    %c0_104 = arith.constant 0 : index
    %290 = vector.load %arg3[%c35, %c0_104] : memref<46x128xf32, #tpu.memory_space<vmem>>, vector<1x16xf32>
    %291 = vector.broadcast %290 : vector<1x16xf32> to vector<16x16xf32>
    %292 = arith.addf %289, %291 : vector<16x16xf32>
    %293 = vector.extract_strided_slice %230 {offsets = [0, 640], sizes = [16, 16], strides = [1, 1]} : vector<16x768xf32> to vector<16x16xf32>
    %c36 = arith.constant 36 : index
    %c0_105 = arith.constant 0 : index
    %294 = vector.load %arg3[%c36, %c0_105] : memref<46x128xf32, #tpu.memory_space<vmem>>, vector<1x16xf32>
    %295 = vector.broadcast %294 : vector<1x16xf32> to vector<16x16xf32>
    %296 = arith.addf %293, %295 : vector<16x16xf32>
    %297 = vector.extract_strided_slice %288 {offsets = [0, 0], sizes = [8, 16], strides = [1, 1]} : vector<16x16xf32> to vector<8x16xf32>
    %298 = vector.extract_strided_slice %292 {offsets = [0, 0], sizes = [8, 16], strides = [1, 1]} : vector<16x16xf32> to vector<8x16xf32>
    %299 = vector.extract_strided_slice %296 {offsets = [0, 0], sizes = [8, 16], strides = [1, 1]} : vector<16x16xf32> to vector<8x16xf32>
    %cst_106 = arith.constant dense<0.000000e+00> : vector<8x8xf32>
    %300 = tpu.matmul %297, %298, %cst_106 {dimension_numbers = #tpu.dot_dimension_numbers<[1], [1], [0], [0], [0, 0, 1, 0], [], []>} : vector<8x16xf32>, vector<8x16xf32>, vector<8x8xf32> -> vector<8x8xf32>
    %cst_107 = arith.constant 2.500000e-01 : f32
    %301 = vector.broadcast %cst_107 : f32 to vector<8x8xf32>
    %302 = arith.mulf %300, %301 : vector<8x8xf32>
    %303 = vector.extract_strided_slice %38 {offsets = [0, 0], sizes = [1, 8], strides = [1, 1]} : vector<2x8xf32> to vector<1x8xf32>
    %304 = vector.broadcast %303 : vector<1x8xf32> to vector<8x8xf32>
    %305 = arith.addf %302, %304 : vector<8x8xf32>
    %cst_108 = arith.constant dense<0xFF800000> : vector<8xf32>
    %306 = vector.multi_reduction <maximumf>, %305, %cst_108 [1] : vector<8x8xf32> to vector<8xf32>
    %307 = vector.shape_cast %306 : vector<8xf32> to vector<8x1xf32>
    %308 = vector.broadcast %307 : vector<8x1xf32> to vector<8x8xf32>
    %309 = arith.subf %305, %308 : vector<8x8xf32>
    %310 = math.exp %309 : vector<8x8xf32>
    %cst_109 = arith.constant dense<0.000000e+00> : vector<8xf32>
    %311 = vector.multi_reduction <add>, %310, %cst_109 [1] : vector<8x8xf32> to vector<8xf32>
    %312 = vector.shape_cast %311 : vector<8xf32> to vector<8x1xf32>
    %313 = tpu.reciprocal %312 {approx = true} : vector<8x1xf32> -> vector<8x1xf32>
    %314 = vector.broadcast %313 : vector<8x1xf32> to vector<8x8xf32>
    %315 = arith.mulf %310, %314 : vector<8x8xf32>
    %cst_110 = arith.constant dense<0.000000e+00> : vector<8x16xf32>
    %316 = tpu.matmul %315, %299, %cst_110 {dimension_numbers = #tpu.dot_dimension_numbers<[1], [0], [0], [1], [0, 0, 1, 1], [], []>} : vector<8x8xf32>, vector<8x16xf32>, vector<8x16xf32> -> vector<8x16xf32>
    %c0_111 = arith.constant 0 : index
    %c16_112 = arith.constant 16 : index
    %317 = vector.load %arg7[%c0_111, %c16_112] : memref<16x32xf32, #tpu.memory_space<vmem>>, vector<8x16xf32>
    tpu.vector_store %arg7[%c0_111, %c16_112], %316 {strides = array<i32>} : memref<16x32xf32, #tpu.memory_space<vmem>>, vector<8x16xf32>,
    %318 = vector.extract_strided_slice %288 {offsets = [8, 0], sizes = [8, 16], strides = [1, 1]} : vector<16x16xf32> to vector<8x16xf32>
    %319 = vector.extract_strided_slice %292 {offsets = [8, 0], sizes = [8, 16], strides = [1, 1]} : vector<16x16xf32> to vector<8x16xf32>
    %320 = vector.extract_strided_slice %296 {offsets = [8, 0], sizes = [8, 16], strides = [1, 1]} : vector<16x16xf32> to vector<8x16xf32>
    %cst_113 = arith.constant dense<0.000000e+00> : vector<8x8xf32>
    %321 = tpu.matmul %318, %319, %cst_113 {dimension_numbers = #tpu.dot_dimension_numbers<[1], [1], [0], [0], [0, 0, 1, 0], [], []>} : vector<8x16xf32>, vector<8x16xf32>, vector<8x8xf32> -> vector<8x8xf32>
    %cst_114 = arith.constant 2.500000e-01 : f32
    %322 = vector.broadcast %cst_114 : f32 to vector<8x8xf32>
    %323 = arith.mulf %321, %322 : vector<8x8xf32>
    %324 = vector.extract_strided_slice %38 {offsets = [1, 0], sizes = [1, 8], strides = [1, 1]} : vector<2x8xf32> to vector<1x8xf32>
    %325 = vector.broadcast %324 : vector<1x8xf32> to vector<8x8xf32>
    %326 = arith.addf %323, %325 : vector<8x8xf32>
    %cst_115 = arith.constant dense<0xFF800000> : vector<8xf32>
    %327 = vector.multi_reduction <maximumf>, %326, %cst_115 [1] : vector<8x8xf32> to vector<8xf32>
    %328 = vector.shape_cast %327 : vector<8xf32> to vector<8x1xf32>
    %329 = vector.broadcast %328 : vector<8x1xf32> to vector<8x8xf32>
    %330 = arith.subf %326, %329 : vector<8x8xf32>
    %331 = math.exp %330 : vector<8x8xf32>
    %cst_116 = arith.constant dense<0.000000e+00> : vector<8xf32>
    %332 = vector.multi_reduction <add>, %331, %cst_116 [1] : vector<8x8xf32> to vector<8xf32>
    %333 = vector.shape_cast %332 : vector<8xf32> to vector<8x1xf32>
    %334 = tpu.reciprocal %333 {approx = true} : vector<8x1xf32> -> vector<8x1xf32>
    %335 = vector.broadcast %334 : vector<8x1xf32> to vector<8x8xf32>
    %336 = arith.mulf %331, %335 : vector<8x8xf32>
    %cst_117 = arith.constant dense<0.000000e+00> : vector<8x16xf32>
    %337 = tpu.matmul %336, %320, %cst_117 {dimension_numbers = #tpu.dot_dimension_numbers<[1], [0], [0], [1], [0, 0, 1, 1], [], []>} : vector<8x8xf32>, vector<8x16xf32>, vector<8x16xf32> -> vector<8x16xf32>
    %c8_118 = arith.constant 8 : index
    %c16_119 = arith.constant 16 : index
    %338 = vector.load %arg7[%c8_118, %c16_119] : memref<16x32xf32, #tpu.memory_space<vmem>>, vector<8x16xf32>
    tpu.vector_store %arg7[%c8_118, %c16_119], %337 {strides = array<i32>} : memref<16x32xf32, #tpu.memory_space<vmem>>, vector<8x16xf32>,
    %c128 = arith.constant 128 : index
    %c0_120 = arith.constant 0 : index
    %339 = vector.load %arg5[%c128, %c0_120] : memref<320x128xbf16, #tpu.memory_space<vmem>>, vector<32x32xbf16>
    %c0_121 = arith.constant 0 : index
    %c0_122 = arith.constant 0 : index
    %340 = vector.load %arg7[%c0_121, %c0_122] : memref<16x32xf32, #tpu.memory_space<vmem>>, vector<16x32xf32>
    %341 = arith.truncf %340 : vector<16x32xf32> to vector<16x32xbf16>
    %cst_123 = arith.constant dense<0.000000e+00> : vector<16x32xf32>
    %342 = tpu.matmul %341, %339, %cst_123 {dimension_numbers = #tpu.dot_dimension_numbers<[1], [0], [0], [1], [0, 0, 1, 1], [], []>} : vector<16x32xbf16>, vector<32x32xbf16>, vector<16x32xf32> -> vector<16x32xf32>
    %c37 = arith.constant 37 : index
    %c0_124 = arith.constant 0 : index
    %343 = vector.load %arg3[%c37, %c0_124] : memref<46x128xf32, #tpu.memory_space<vmem>>, vector<1x32xf32>
    %344 = vector.broadcast %343 : vector<1x32xf32> to vector<16x32xf32>
    %345 = arith.addf %342, %344 : vector<16x32xf32>
    %346 = arith.addf %227, %345 : vector<16x32xf32>
    %c38 = arith.constant 38 : index
    %c0_125 = arith.constant 0 : index
    %347 = vector.load %arg3[%c38, %c0_125] : memref<46x128xf32, #tpu.memory_space<vmem>>, vector<1x32xf32>
    %c39 = arith.constant 39 : index
    %c0_126 = arith.constant 0 : index
    %348 = vector.load %arg3[%c39, %c0_126] : memref<46x128xf32, #tpu.memory_space<vmem>>, vector<1x32xf32>
    %cst_127 = arith.constant dense<0.000000e+00> : vector<16xf32>
    %349 = vector.multi_reduction <add>, %346, %cst_127 [1] : vector<16x32xf32> to vector<16xf32>
    %350 = vector.shape_cast %349 : vector<16xf32> to vector<16x1xf32>
    %cst_128 = arith.constant 3.200000e+01 : f32
    %351 = vector.broadcast %cst_128 : f32 to vector<16x1xf32>
    %352 = arith.divf %350, %351 : vector<16x1xf32>
    %353 = vector.broadcast %352 : vector<16x1xf32> to vector<16x32xf32>
    %354 = arith.subf %346, %353 : vector<16x32xf32>
    %355 = arith.mulf %354, %354 : vector<16x32xf32>
    %cst_129 = arith.constant dense<0.000000e+00> : vector<16xf32>
    %356 = vector.multi_reduction <add>, %355, %cst_129 [1] : vector<16x32xf32> to vector<16xf32>
    %357 = vector.shape_cast %356 : vector<16xf32> to vector<16x1xf32>
    %cst_130 = arith.constant 3.200000e+01 : f32
    %358 = vector.broadcast %cst_130 : f32 to vector<16x1xf32>
    %359 = arith.divf %357, %358 : vector<16x1xf32>
    %cst_131 = arith.constant 9.99999996E-13 : f32
    %360 = vector.broadcast %cst_131 : f32 to vector<16x1xf32>
    %361 = arith.addf %359, %360 : vector<16x1xf32>
    %362 = math.rsqrt %361 : vector<16x1xf32>
    %363 = vector.broadcast %362 : vector<16x1xf32> to vector<16x32xf32>
    %364 = arith.mulf %354, %363 : vector<16x32xf32>
    %365 = vector.broadcast %347 : vector<1x32xf32> to vector<16x32xf32>
    %366 = arith.mulf %364, %365 : vector<16x32xf32>
    %367 = vector.broadcast %348 : vector<1x32xf32> to vector<16x32xf32>
    %368 = arith.addf %366, %367 : vector<16x32xf32>
    %c160 = arith.constant 160 : index
    %c0_132 = arith.constant 0 : index
    %369 = vector.load %arg5[%c160, %c0_132] : memref<320x128xbf16, #tpu.memory_space<vmem>>, vector<32x64xbf16>
    %370 = arith.truncf %368 : vector<16x32xf32> to vector<16x32xbf16>
    %cst_133 = arith.constant dense<0.000000e+00> : vector<16x64xf32>
    %371 = tpu.matmul %370, %369, %cst_133 {dimension_numbers = #tpu.dot_dimension_numbers<[1], [0], [0], [1], [0, 0, 1, 1], [], []>} : vector<16x32xbf16>, vector<32x64xbf16>, vector<16x64xf32> -> vector<16x64xf32>
    %c40 = arith.constant 40 : index
    %c0_134 = arith.constant 0 : index
    %372 = vector.load %arg3[%c40, %c0_134] : memref<46x128xf32, #tpu.memory_space<vmem>>, vector<1x64xf32>
    %373 = vector.broadcast %372 : vector<1x64xf32> to vector<16x64xf32>
    %374 = arith.addf %371, %373 : vector<16x64xf32>
    %cst_135 = arith.constant 5.000000e-01 : f32
    %375 = vector.broadcast %cst_135 : f32 to vector<16x64xf32>
    %376 = arith.mulf %375, %374 : vector<16x64xf32>
    %cst_136 = arith.constant 4.471500e-02 : f32
    %377 = vector.broadcast %cst_136 : f32 to vector<16x64xf32>
    %378 = arith.mulf %377, %374 : vector<16x64xf32>
    %379 = arith.mulf %378, %374 : vector<16x64xf32>
    %380 = arith.mulf %379, %374 : vector<16x64xf32>
    %381 = arith.addf %374, %380 : vector<16x64xf32>
    %cst_137 = arith.constant 0.797884583 : f32
    %382 = vector.broadcast %cst_137 : f32 to vector<16x64xf32>
    %383 = arith.mulf %382, %381 : vector<16x64xf32>
    %384 = math.tanh %383 : vector<16x64xf32>
    %cst_138 = arith.constant 1.000000e+00 : f32
    %385 = vector.broadcast %cst_138 : f32 to vector<16x64xf32>
    %386 = arith.addf %385, %384 : vector<16x64xf32>
    %387 = arith.mulf %376, %386 : vector<16x64xf32>
    %c192 = arith.constant 192 : index
    %c0_139 = arith.constant 0 : index
    %388 = vector.load %arg5[%c192, %c0_139] : memref<320x128xbf16, #tpu.memory_space<vmem>>, vector<64x32xbf16>
    %389 = arith.truncf %387 : vector<16x64xf32> to vector<16x64xbf16>
    %cst_140 = arith.constant dense<0.000000e+00> : vector<16x32xf32>
    %390 = tpu.matmul %389, %388, %cst_140 {dimension_numbers = #tpu.dot_dimension_numbers<[1], [0], [0], [1], [0, 0, 1, 1], [], []>} : vector<16x64xbf16>, vector<64x32xbf16>, vector<16x32xf32> -> vector<16x32xf32>
    %c41 = arith.constant 41 : index
    %c0_141 = arith.constant 0 : index
    %391 = vector.load %arg3[%c41, %c0_141] : memref<46x128xf32, #tpu.memory_space<vmem>>, vector<1x32xf32>
    %392 = vector.broadcast %391 : vector<1x32xf32> to vector<16x32xf32>
    %393 = arith.addf %390, %392 : vector<16x32xf32>
    %394 = arith.addf %368, %393 : vector<16x32xf32>
    %c42 = arith.constant 42 : index
    %c0_142 = arith.constant 0 : index
    %395 = vector.load %arg3[%c42, %c0_142] : memref<46x128xf32, #tpu.memory_space<vmem>>, vector<1x32xf32>
    %c43 = arith.constant 43 : index
    %c0_143 = arith.constant 0 : index
    %396 = vector.load %arg3[%c43, %c0_143] : memref<46x128xf32, #tpu.memory_space<vmem>>, vector<1x32xf32>
    %cst_144 = arith.constant dense<0.000000e+00> : vector<16xf32>
    %397 = vector.multi_reduction <add>, %394, %cst_144 [1] : vector<16x32xf32> to vector<16xf32>
    %398 = vector.shape_cast %397 : vector<16xf32> to vector<16x1xf32>
    %cst_145 = arith.constant 3.200000e+01 : f32
    %399 = vector.broadcast %cst_145 : f32 to vector<16x1xf32>
    %400 = arith.divf %398, %399 : vector<16x1xf32>
    %401 = vector.broadcast %400 : vector<16x1xf32> to vector<16x32xf32>
    %402 = arith.subf %394, %401 : vector<16x32xf32>
    %403 = arith.mulf %402, %402 : vector<16x32xf32>
    %cst_146 = arith.constant dense<0.000000e+00> : vector<16xf32>
    %404 = vector.multi_reduction <add>, %403, %cst_146 [1] : vector<16x32xf32> to vector<16xf32>
    %405 = vector.shape_cast %404 : vector<16xf32> to vector<16x1xf32>
    %cst_147 = arith.constant 3.200000e+01 : f32
    %406 = vector.broadcast %cst_147 : f32 to vector<16x1xf32>
    %407 = arith.divf %405, %406 : vector<16x1xf32>
    %cst_148 = arith.constant 9.99999996E-13 : f32
    %408 = vector.broadcast %cst_148 : f32 to vector<16x1xf32>
    %409 = arith.addf %407, %408 : vector<16x1xf32>
    %410 = math.rsqrt %409 : vector<16x1xf32>
    %411 = vector.broadcast %410 : vector<16x1xf32> to vector<16x32xf32>
    %412 = arith.mulf %402, %411 : vector<16x32xf32>
    %413 = vector.broadcast %395 : vector<1x32xf32> to vector<16x32xf32>
    %414 = arith.mulf %412, %413 : vector<16x32xf32>
    %415 = vector.broadcast %396 : vector<1x32xf32> to vector<16x32xf32>
    %416 = arith.addf %414, %415 : vector<16x32xf32>
    %c0_149 = arith.constant 0 : index
    %c0_150 = arith.constant 0 : index
    %417 = vector.load %arg7[%c0_149, %c0_150] : memref<16x32xf32, #tpu.memory_space<vmem>>, vector<16x32xf32>
    tpu.vector_store %arg7[%c0_149, %c0_150], %416 {strides = array<i32>} : memref<16x32xf32, #tpu.memory_space<vmem>>, vector<16x32xf32>,
    %c0_151 = arith.constant 0 : index
    %c0_152 = arith.constant 0 : index
    %418 = tpu.strided_load %arg7[%c0_151, %c0_152] {strides = array<i32: 8, 1>} : memref<16x32xf32, #tpu.memory_space<vmem>>, vector<2x32xf32>
    %c256 = arith.constant 256 : index
    %c0_153 = arith.constant 0 : index
    %419 = vector.load %arg5[%c256, %c0_153] : memref<320x128xbf16, #tpu.memory_space<vmem>>, vector<32x32xbf16>
    %420 = arith.truncf %418 : vector<2x32xf32> to vector<2x32xbf16>
    %cst_154 = arith.constant dense<0.000000e+00> : vector<2x32xf32>
    %421 = tpu.matmul %420, %419, %cst_154 {dimension_numbers = #tpu.dot_dimension_numbers<[1], [0], [0], [1], [0, 0, 1, 1], [], []>} : vector<2x32xbf16>, vector<32x32xbf16>, vector<2x32xf32> -> vector<2x32xf32>
    %c44 = arith.constant 44 : index
    %c0_155 = arith.constant 0 : index
    %422 = vector.load %arg3[%c44, %c0_155] : memref<46x128xf32, #tpu.memory_space<vmem>>, vector<1x32xf32>
    %423 = vector.broadcast %422 : vector<1x32xf32> to vector<2x32xf32>
    %424 = arith.addf %421, %423 : vector<2x32xf32>
    %425 = math.tanh %424 : vector<2x32xf32>
    %c288 = arith.constant 288 : index
    %c0_156 = arith.constant 0 : index
    %426 = vector.load %arg5[%c288, %c0_156] : memref<320x128xbf16, #tpu.memory_space<vmem>>, vector<32x3xbf16>
    %427 = arith.truncf %425 : vector<2x32xf32> to vector<2x32xbf16>
    %cst_157 = arith.constant dense<0.000000e+00> : vector<2x3xf32>
    %428 = tpu.matmul %427, %426, %cst_157 {dimension_numbers = #tpu.dot_dimension_numbers<[1], [0], [0], [1], [0, 0, 1, 1], [], []>} : vector<2x32xbf16>, vector<32x3xbf16>, vector<2x3xf32> -> vector<2x3xf32>
    %c45 = arith.constant 45 : index
    %c0_158 = arith.constant 0 : index
    %429 = vector.load %arg3[%c45, %c0_158] : memref<46x128xf32, #tpu.memory_space<vmem>>, vector<1x3xf32>
    %430 = vector.broadcast %429 : vector<1x3xf32> to vector<2x3xf32>
    %431 = arith.addf %428, %430 : vector<2x3xf32>
    %c0_159 = arith.constant 0 : index
    %c0_160 = arith.constant 0 : index
    %432 = vector.load %arg6[%c0_159, %c0_160] : memref<2x3xf32, #tpu.memory_space<vmem>>, vector<2x3xf32>
    tpu.vector_store %arg6[%c0_159, %c0_160], %431 {strides = array<i32>} : memref<2x3xf32, #tpu.memory_space<vmem>>, vector<2x3xf32>,
    return
  }
}

</mosaic_0001>

<llo_original>
// kernel: bert_sequence_classifier.1
$region0: #{bert_sequence_classifier.1}
  #allocation0 [shape = 'u32[]', space=smem, size = 0x4, offset = 0x4, fixed_abs, tag = 'smem constant byte address 0x4 - core index']
  #allocation1 [shape = 'u32[144,128]{1,0:T(1,128)}', space=vmem, size = 0x12000, scoped, tag = 'internal scratch']
  #allocation2 [shape = 'f32[16,32]{1,0:T(8,128)}', space=vmem, size = 0x2000, scoped, tag = 'scratch operand']
  %s0 = inlined_call_operand.vmem [shape: s32[16,1], index: 0, kind: input, shape index: {}]
  %s1 = inlined_call_operand.vmem [shape: s32[2,8], index: 1, kind: input, shape index: {}]
  %s2 = inlined_call_operand.vmem [shape: f32[100,32], index: 2, kind: input, shape index: {}]
  %s3 = inlined_call_operand.vmem [shape: f32[46,128], index: 3, kind: input, shape index: {}]
  %s4 = inlined_call_operand.hbm [shape: bf16[64,768], index: 4, kind: input, shape index: {}]
  %s5 = inlined_call_operand.hbm [shape: bf16[320,128], index: 5, kind: input, shape index: {}]
  %s6 = inlined_call_operand.hbm [shape: f32[2,3], index: 6, kind: output, shape index: {}]
  %s7 = sld [smem:[#allocation0]]
  $region42: #{bert_sequence_classifier.1} parent=0
    _
  %s9 = ssub.s32 1, %s7
  %s10 = scalar_select 0, %s9, %s7
  $region1: #{bert_sequence_classifier.1} parent=0
    #allocation3 [shape = 'u8[98304]{0}', space=vmem, size = 0x18000, scoped, tag = 'input window, operand 4, single buffered']
    #allocation4 [shape = 's32[1]{0}', space=sflag, size = 0x4, scoped, tag = 'scoped memory for bert_sequence_classifier.1']
    #allocation5 [shape = 's32[1]{0}', space=sflag, size = 0x4, scoped, tag = 'scoped memory for bert_sequence_classifier.1']
    #allocation6 [shape = 'u8[81920]{0}', space=vmem, size = 0x14000, scoped, tag = 'input window, operand 5, single buffered']
    #allocation7 [shape = 's32[1]{0}', space=sflag, size = 0x4, scoped, tag = 'scoped memory for bert_sequence_classifier.1']
    #allocation8 [shape = 'u8[1024]{0}', space=vmem, size = 0x400, scoped, tag = 'output window, operand 0, single buffered']
    %11 = vsyncpa [#allocation4], 0
    %12 = vsyncpa [#allocation7], 0
    %13 = vsyncpa [#allocation5], 0
    // Predicated region
    $region2: #{bert_sequence_classifier.1} parent=1 // pred_check
      _
    $region3: #{bert_sequence_classifier.1} parent=1 // pred_check_branch
      %15 = sbr.rel (0) target = $region5
    $region4: #{bert_sequence_classifier.1} parent=1 // pred_region
      _
    $region5: #{bert_sequence_classifier.1} parent=1 // pred_fallthru
      _
    // Predicated region
    $region6: #{bert_sequence_classifier.1} parent=1 // pred_check
      _
    $region7: #{bert_sequence_classifier.1} parent=1 // pred_check_branch
      %17 = sbr.rel (0) target = $region9
    $region8: #{bert_sequence_classifier.1} parent=1 // pred_region
      _
    $region9: #{bert_sequence_classifier.1} parent=1 // pred_fallthru
      _
    // Predicated region
    $region10: #{bert_sequence_classifier.1} parent=1 // pred_check
      _
    $region11: #{bert_sequence_classifier.1} parent=1 // pred_check_branch
      %19 = sbr.rel (0) target = $region13
    $region12: #{bert_sequence_classifier.1} parent=1 // pred_region
      _
    $region13: #{bert_sequence_classifier.1} parent=1 // pred_fallthru
      _
    // Predicated region
    $region14: #{bert_sequence_classifier.1} parent=1 // pred_check
      _
    $region15: #{bert_sequence_classifier.1} parent=1 // pred_check_branch
      %21 = sbr.rel (0) target = $region17
    $region16: #{bert_sequence_classifier.1} parent=1 // pred_region
      _
    $region17: #{bert_sequence_classifier.1} parent=1 // pred_fallthru
      _
    // Predicated region
    $region18: #{bert_sequence_classifier.1} parent=1 // pred_check
      _
    $region19: #{bert_sequence_classifier.1} parent=1 // pred_check_branch
      %23 = sbr.rel (0) target = $region21
    $region20: #{bert_sequence_classifier.1} parent=1 // pred_region
      %s25 = ssub.s32 3072, 3072
      %26 = vsyncadd [#allocation4], %s25
      %s27 = sshll.u32 [#allocation3], 4
      %s28 = int_to_ptr.vmem [resolvable:$true] %s27
      %33 = dma.hbm_to_vmem [thread:$0]  %s4, 3072, %s28, [#allocation4], 384, 384, 24
    $region21: #{bert_sequence_classifier.1} parent=1 // pred_fallthru
      _
    // Predicated region
    $region22: #{bert_sequence_classifier.1} parent=1 // pred_check
      _
    $region23: #{bert_sequence_classifier.1} parent=1 // pred_check_branch
      %35 = sbr.rel (0) target = $region25
    $region24: #{bert_sequence_classifier.1} parent=1 // pred_region
      %s37 = ssub.s32 2560, 2560
      %38 = vsyncadd [#allocation7], %s37
      %s39 = sshll.u32 [#allocation6], 4
      %s40 = int_to_ptr.vmem [resolvable:$true] %s39
      %45 = dma.hbm_to_vmem [thread:$0]  %s5, 2560, %s40, [#allocation7], 64, 64, 4
    $region25: #{bert_sequence_classifier.1} parent=1 // pred_fallthru
      _
    // Predicated region
    $region26: #{bert_sequence_classifier.1} parent=1 // pred_check
      _
    $region27: #{bert_sequence_classifier.1} parent=1 // pred_check_branch
      %47 = sbr.rel (0) target = $region29
    $region28: #{bert_sequence_classifier.1} parent=1 // pred_region
      %48 = dma.done [#allocation4], 3072
    $region29: #{bert_sequence_classifier.1} parent=1 // pred_fallthru
      _
    // Predicated region
    $region30: #{bert_sequence_classifier.1} parent=1 // pred_check
      _
    $region31: #{bert_sequence_classifier.1} parent=1 // pred_check_branch
      %50 = sbr.rel (0) target = $region33
    $region32: #{bert_sequence_classifier.1} parent=1 // pred_region
      %51 = dma.done [#allocation7], 2560
    $region33: #{bert_sequence_classifier.1} parent=1 // pred_fallthru
      _
    %v53 = vld [vmem:[%s0] sm:$0xff]
    %v54 = vld [vmem:[%s0 + $0x8] sm:$0xff]
    %v55 = vlaneseq
    %v56 = vand.u32 %v55, 127
    %57 = vset.pattern.permute.xlu0 0
    %58 = vperm.xlu0 %57, %v53
    %v59 = vpop.permute.xlu0 %58
    %60 = vset.pattern.permute.xlu0 0
    %61 = vperm.xlu0 %60, %v54
    %v62 = vpop.permute.xlu0 %61
    %vm63 = vcmp.eq.s32.totalorder %v56, %v59
    %vm64 = vcmp.eq.s32.totalorder %v56, %v62
    %v65 = vsel %vm63, 1, 0
    %v66 = vsel %vm64, 1, 0
    %v67 = vcvt.s32.f32 %v65
    %v68 = vcvt.s32.f32 %v66
    %v69 = vld [vmem:[%s2] sm:$0xff]
    %v70 = vld [vmem:[%s2 + $0x8] sm:$0xff]
    %v71 = vld [vmem:[%s2 + $0x10] sm:$0xff]
    %v72 = vld [vmem:[%s2 + $0x18] sm:$0xff]
    %v73 = vld [vmem:[%s2 + $0x20] sm:$0xff]
    %v74 = vld [vmem:[%s2 + $0x28] sm:$0xff]
    %v75 = vld [vmem:[%s2 + $0x30] sm:$0xff]
    %v76 = vld [vmem:[%s2 + $0x38] sm:$0xff]
    %v77 = vld [vmem:[%s2 + $0x40] sm:$0xff]
    %v78 = vld [vmem:[%s2 + $0x48] sm:$0xff]
    %v79 = vld [vmem:[%s2 + $0x50] sm:$0xff]
    %v80 = vld [vmem:[%s2 + $0x58] sm:$0xff]
    %v81 = vld [vmem:[%s2 + $0x60] sm:$0xf]
    %v82 = vld [vmem:[%s3] sm:$0xff]
    %vm83 = vcmask 818176
    %v85 = vsel %vm83, %v67, 0
    %v88 = vsel %vm83, %v68, 0
    %vm90 = vcmask 1043456
    %v92 = vsel %vm90, %v81, 0
    %94 = vmatprep.subr.mxu0 0.0
    %95 = vmatpush1.msra.mxu0 %v69
    %96 = vmatprep.subr.mxu0 0.0
    %97 = vmatpush1.msra.mxu0 %v70
    %98 = vmatprep.subr.mxu0 0.0
    %99 = vmatpush1.msra.mxu0 %v71
    %100 = vmatprep.subr.mxu0 0.0
    %101 = vmatpush1.msra.mxu0 %v72
    %102 = vmatprep.subr.mxu0 0.0
    %103 = vmatpush1.msra.mxu0 %v73
    %104 = vmatprep.subr.mxu0 0.0
    %105 = vmatpush1.msra.mxu0 %v74
    %106 = vmatprep.subr.mxu0 0.0
    %107 = vmatpush1.msra.mxu0 %v75
    %108 = vmatprep.subr.mxu0 0.0
    %109 = vmatpush1.msra.mxu0 %v76
    %110 = vmatprep.subr.mxu0 0.0
    %111 = vmatpush1.msra.mxu0 %v77
    %112 = vmatprep.subr.mxu0 0.0
    %113 = vmatpush1.msra.mxu0 %v78
    %114 = vmatprep.subr.mxu0 0.0
    %115 = vmatpush1.msra.mxu0 %v79
    %116 = vmatprep.subr.mxu0 0.0
    %117 = vmatpush1.msra.mxu0 %v80
    %118 = vmatprep.subr.mxu0 0.0
    %119 = vmatpush1.msra.mxu0 %v92
    %120 = vmatprep.subr.mxu0 0.0
    %121 = vmatpush1.msra.mxu0 0.0
    %122 = vmatprep.subr.mxu0 0.0
    %123 = vmatpush1.msra.mxu0 0.0
    %124 = vmatprep.subr.mxu0 0.0
    %125 = vmatpush1.msra.mxu0 0.0
    %126 = vmatprep.subr.mxu0 0.0
    %127 = vmatpush1.msra.mxu0 0.0
    %128 = vmatprep.subr.mxu0 0.0
    %129 = vmatpush1.msra.mxu0 0.0
    %130 = vmatprep.subr.mxu0 0.0
    %131 = vmatpush1.msra.mxu0 0.0
    %132 = vmatprep.subr.mxu0 0.0
    %133 = vmatpush1.msra.mxu0 0.0
    %134 = vmatprep.subr.mxu0 0.0
    %135 = vmatpush1.msra.mxu0 0.0
    %136 = vmatprep.subr.mxu0 0.0
    %137 = vmatpush1.msra.mxu0 0.0
    %138 = vmatprep.subr.mxu0 0.0
    %139 = vmatpush1.msra.mxu0 0.0
    %140 = vmatprep.subr.mxu0 0.0
    %141 = vmatpush1.msra.mxu0 0.0
    %142 = vmatprep.subr.mxu0 0.0
    %143 = vmatpush1.msra.mxu0 0.0
    %144 = vmatprep.subr.mxu0 0.0
    %145 = vmatpush1.msra.mxu0 0.0
    %146 = vmatprep.subr.mxu0 0.0
    %147 = vmatpush1.msra.mxu0 0.0
    %148 = vmatprep.subr.mxu0 0.0
    %149 = vmatpush1.msra.mxu0 0.0
    %150 = vmatprep.subr.mxu0 0.0
    %151 = vmatpush1.msra.mxu0 0.0
    %152 = vmatprep.subr.mxu0 0.0
    %153 = vmatpush1.msra.mxu0 0.0
    %154 = vmatprep.subr.mxu0 0.0
    %155 = vmatpush1.msra.mxu0 0.0
    %156 = vmatprep.subr.mxu0 0.0
    %157 = vmatpush1.msra.mxu0 0.0
    %158 = vmatprep.mubr.f32.mxu0 0.0
    %159 = vmatmul.mubr.f32.gmra.mrb[0].mxu0 %v85
    %v160 = vpop.f32.mrb[0].mxu0
    %v161 = vadd.f32 %v82, %v160
    %v162 = vpop.f32.mrb[0].mxu0
    %163 = vmatprep.mubr.f32.mxu0 0.0
    %164 = vmatmul.mubr.f32.gmra.mrb[0].mxu0 %v88
    %v165 = vpop.f32.mrb[0].mxu0
    %v166 = vadd.f32 %v82, %v165
    %v167 = vpop.f32.mrb[0].mxu0
    %168 = vdwg.mxu0
    %v169 = vld [vmem:[%s3 + $0x10] sm:$0x1]
    %v170 = vld [vmem:[%s3 + $0x11] sm:$0x1]
    %vm171 = vcmask 261120
    %v172 = vsel %vm171, %v161, 0.0
    %173 = vadd.xlane.f32.xlu0 %v172
    %v174 = vpop.xlane.xlu0 %173
    %v175 = vsel %vm171, %v166, 0.0
    %176 = vadd.xlane.f32.xlu0 %v175
    %v177 = vpop.xlane.xlu0 %176
    %v178 = vrcp.pop 32.0
    %v179 = vmul.f32 %v174, %v178
    %v180 = vmul.f32 %v177, %v178
    %v181 = vsub.f32 %v161, %v179
    %v182 = vsub.f32 %v166, %v180
    %v183 = vmul.f32 %v181, %v181
    %v184 = vmul.f32 %v182, %v182
    %v185 = vsel %vm171, %v183, 0.0
    %186 = vadd.xlane.f32.xlu0 %v185
    %v187 = vpop.xlane.xlu0 %186
    %v188 = vsel %vm171, %v184, 0.0
    %189 = vadd.xlane.f32.xlu0 %v188
    %v190 = vpop.xlane.xlu0 %189
    %v191 = vmul.f32 %v187, %v178
    %v192 = vmul.f32 %v190, %v178
    %v193 = vadd.f32 %v191, 1e-12
    %v194 = vadd.f32 %v192, 1e-12
    %v195 = vrsqrt.pop %v193
    %v196 = vrsqrt.pop %v194
    %v197 = vmul.f32 %v181, %v195
    %v198 = vmul.f32 %v182, %v196
    %v199 = vlaneseq
    %v200 = vshrl.u32 %v199, 7
    %v201 = vsub.s32 0, %v200
    %v202 = vrot.slane %v169, %v201
    %v203 = vmul.f32 %v197, %v202
    %v204 = vmul.f32 %v198, %v202
    %v205 = vlaneseq
    %v206 = vshrl.u32 %v205, 7
    %v207 = vsub.s32 0, %v206
    %v208 = vrot.slane %v170, %v207
    %v209 = vadd.f32 %v203, %v208
    %v210 = vadd.f32 %v204, %v208
    %v211 = vld [vmem:[%s1] sm:$0x3]
    %v212 = vcvt.s32.f32 %v211
    %v213 = vsub.f32 1.0, %v212
    %v214 = vmul.f32 %v213, -10000.0
    %v215 = vld [vmem:[#allocation3] sm:$0xff]
    %v216 = vld [vmem:[#allocation3 + $0x8] sm:$0xff]
    %v217 = vld [vmem:[#allocation3 + $0x10] sm:$0xff]
    %v218 = vld [vmem:[#allocation3 + $0x18] sm:$0xff]
    %v219 = vld [vmem:[#allocation3 + $0x20] sm:$0xff]
    %v220 = vld [vmem:[#allocation3 + $0x28] sm:$0xff]
    %v221 = vld [vmem:[#allocation3 + $0x30] sm:$0xff]
    %v222 = vld [vmem:[#allocation3 + $0x38] sm:$0xff]
    %v223 = vld [vmem:[#allocation3 + $0x40] sm:$0xff]
    %v224 = vld [vmem:[#allocation3 + $0x48] sm:$0xff]
    %v225 = vld [vmem:[#allocation3 + $0x50] sm:$0xff]
    %v226 = vld [vmem:[#allocation3 + $0x58] sm:$0xff]
    %v227 = vpack.c.bf16 %v210, %v209
    %v240 = vunpack.c.l.b16 %v215
    %v241 = vunpack.c.h.b16 %v215
    %v242 = vunpack.c.l.b16 %v216
    %v243 = vunpack.c.h.b16 %v216
    %v244 = vunpack.c.l.b16 %v217
    %v245 = vunpack.c.h.b16 %v217
    %v246 = vunpack.c.l.b16 %v218
    %v247 = vunpack.c.h.b16 %v218
    %v248 = vunpack.c.l.b16 %v219
    %v249 = vunpack.c.h.b16 %v219
    %v250 = vunpack.c.l.b16 %v220
    %v251 = vunpack.c.h.b16 %v220
    %v252 = vunpack.c.l.b16 %v221
    %v253 = vunpack.c.h.b16 %v221
    %v254 = vunpack.c.l.b16 %v222
    %v255 = vunpack.c.h.b16 %v222
    %v256 = vunpack.c.l.b16 %v223
    %v257 = vunpack.c.h.b16 %v223
    %v258 = vunpack.c.l.b16 %v224
    %v259 = vunpack.c.h.b16 %v224
    %v260 = vunpack.c.l.b16 %v225
    %v261 = vunpack.c.h.b16 %v225
    %v262 = vunpack.c.l.b16 %v226
    %v263 = vunpack.c.h.b16 %v226
    %v264 = vpack.c.b16 %v246, %v240
    %v265 = vpack.c.b16 %v247, %v241
    %v266 = vpack.c.b16 %v248, %v242
    %v267 = vpack.c.b16 %v249, %v243
    %v268 = vpack.c.b16 %v250, %v244
    %v269 = vpack.c.b16 %v251, %v245
    %v270 = vpack.c.b16 %v258, %v252
    %v271 = vpack.c.b16 %v259, %v253
    %v272 = vpack.c.b16 %v260, %v254
    %v273 = vpack.c.b16 %v261, %v255
    %v274 = vpack.c.b16 %v262, %v256
    %v275 = vpack.c.b16 %v263, %v257
    %v289 = vsel %vm171, %v227, 0
    %291 = vmatprep.subr.bf16.mxu0 %v265
    %292 = vmatpush1.bf16.msra.mxu0 %v264
    %293 = vmatprep.subr.bf16.mxu0 %v271
    %294 = vmatpush1.bf16.msra.mxu0 %v270
    %295 = vmatprep.subr.bf16.mxu0 0
    %296 = vmatpush1.bf16.msra.mxu0 0
    %297 = vmatprep.subr.bf16.mxu0 0
    %298 = vmatpush1.bf16.msra.mxu0 0
    %299 = vmatprep.subr.bf16.mxu0 0
    %300 = vmatpush1.bf16.msra.mxu0 0
    %301 = vmatprep.subr.bf16.mxu0 0
    %302 = vmatpush1.bf16.msra.mxu0 0
    %303 = vmatprep.subr.bf16.mxu0 0
    %304 = vmatpush1.bf16.msra.mxu0 0
    %305 = vmatprep.subr.bf16.mxu0 0
    %306 = vmatpush1.bf16.msra.mxu0 0
    %307 = vmatprep.subr.bf16.mxu0 0
    %308 = vmatpush1.bf16.msra.mxu0 0
    %309 = vmatprep.subr.bf16.mxu0 0
    %310 = vmatpush1.bf16.msra.mxu0 0
    %311 = vmatprep.subr.bf16.mxu0 0
    %312 = vmatpush1.bf16.msra.mxu0 0
    %313 = vmatprep.subr.bf16.mxu0 0
    %314 = vmatpush1.bf16.msra.mxu0 0
    %315 = vmatprep.subr.bf16.mxu0 0
    %316 = vmatpush1.bf16.msra.mxu0 0
    %317 = vmatprep.subr.bf16.mxu0 0
    %318 = vmatpush1.bf16.msra.mxu0 0
    %319 = vmatprep.subr.bf16.mxu0 0
    %320 = vmatpush1.bf16.msra.mxu0 0
    %321 = vmatprep.subr.bf16.mxu0 0
    %322 = vmatpush1.bf16.msra.mxu0 0
    %323 = vmatprep.mubr.bf16.mxu0 0
    %324 = vmatmul.mubr.bf16.gmra.mrb[0].mxu0 %v289
    %v325 = vpop.f32.mrb[0].mxu0
    %v326 = vadd.f32 0.0, %v325
    %v327 = vpop.f32.mrb[0].mxu0
    %v328 = vadd.f32 0.0, %v327
    %v329 = vpop.f32.mrb[0].mxu0
    %v330 = vadd.f32 0.0, %v329
    %v331 = vpop.f32.mrb[0].mxu0
    %v332 = vadd.f32 0.0, %v331
    %333 = vdwg.mxu0
    %334 = vmatprep.subr.bf16.mxu0 %v267
    %335 = vmatpush1.bf16.msra.mxu0 %v266
    %336 = vmatprep.subr.bf16.mxu0 %v273
    %337 = vmatpush1.bf16.msra.mxu0 %v272
    %338 = vmatprep.subr.bf16.mxu0 0
    %339 = vmatpush1.bf16.msra.mxu0 0
    %340 = vmatprep.subr.bf16.mxu0 0
    %341 = vmatpush1.bf16.msra.mxu0 0
    %342 = vmatprep.subr.bf16.mxu0 0
    %343 = vmatpush1.bf16.msra.mxu0 0
    %344 = vmatprep.subr.bf16.mxu0 0
    %345 = vmatpush1.bf16.msra.mxu0 0
    %346 = vmatprep.subr.bf16.mxu0 0
    %347 = vmatpush1.bf16.msra.mxu0 0
    %348 = vmatprep.subr.bf16.mxu0 0
    %349 = vmatpush1.bf16.msra.mxu0 0
    %350 = vmatprep.subr.bf16.mxu0 0
    %351 = vmatpush1.bf16.msra.mxu0 0
    %352 = vmatprep.subr.bf16.mxu0 0
    %353 = vmatpush1.bf16.msra.mxu0 0
    %354 = vmatprep.subr.bf16.mxu0 0
    %355 = vmatpush1.bf16.msra.mxu0 0
    %356 = vmatprep.subr.bf16.mxu0 0
    %357 = vmatpush1.bf16.msra.mxu0 0
    %358 = vmatprep.subr.bf16.mxu0 0
    %359 = vmatpush1.bf16.msra.mxu0 0
    %360 = vmatprep.subr.bf16.mxu0 0
    %361 = vmatpush1.bf16.msra.mxu0 0
    %362 = vmatprep.subr.bf16.mxu0 0
    %363 = vmatpush1.bf16.msra.mxu0 0
    %364 = vmatprep.subr.bf16.mxu0 0
    %365 = vmatpush1.bf16.msra.mxu0 0
    %366 = vmatprep.mubr.bf16.mxu0 0
    %367 = vmatmul.mubr.bf16.gmra.mrb[0].mxu0 %v289
    %v368 = vpop.f32.mrb[0].mxu0
    %v369 = vadd.f32 0.0, %v368
    %v370 = vpop.f32.mrb[0].mxu0
    %v371 = vadd.f32 0.0, %v370
    %v372 = vpop.f32.mrb[0].mxu0
    %v373 = vadd.f32 0.0, %v372
    %v374 = vpop.f32.mrb[0].mxu0
    %v375 = vadd.f32 0.0, %v374
    %376 = vdwg.mxu0
    %377 = vmatprep.subr.bf16.mxu0 %v269
    %378 = vmatpush1.bf16.msra.mxu0 %v268
    %379 = vmatprep.subr.bf16.mxu0 %v275
    %380 = vmatpush1.bf16.msra.mxu0 %v274
    %381 = vmatprep.subr.bf16.mxu0 0
    %382 = vmatpush1.bf16.msra.mxu0 0
    %383 = vmatprep.subr.bf16.mxu0 0
    %384 = vmatpush1.bf16.msra.mxu0 0
    %385 = vmatprep.subr.bf16.mxu0 0
    %386 = vmatpush1.bf16.msra.mxu0 0
    %387 = vmatprep.subr.bf16.mxu0 0
    %388 = vmatpush1.bf16.msra.mxu0 0
    %389 = vmatprep.subr.bf16.mxu0 0
    %390 = vmatpush1.bf16.msra.mxu0 0
    %391 = vmatprep.subr.bf16.mxu0 0
    %392 = vmatpush1.bf16.msra.mxu0 0
    %393 = vmatprep.subr.bf16.mxu0 0
    %394 = vmatpush1.bf16.msra.mxu0 0
    %395 = vmatprep.subr.bf16.mxu0 0
    %396 = vmatpush1.bf16.msra.mxu0 0
    %397 = vmatprep.subr.bf16.mxu0 0
    %398 = vmatpush1.bf16.msra.mxu0 0
    %399 = vmatprep.subr.bf16.mxu0 0
    %400 = vmatpush1.bf16.msra.mxu0 0
    %401 = vmatprep.subr.bf16.mxu0 0
    %402 = vmatpush1.bf16.msra.mxu0 0
    %403 = vmatprep.subr.bf16.mxu0 0
    %404 = vmatpush1.bf16.msra.mxu0 0
    %405 = vmatprep.subr.bf16.mxu0 0
    %406 = vmatpush1.bf16.msra.mxu0 0
    %407 = vmatprep.subr.bf16.mxu0 0
    %408 = vmatpush1.bf16.msra.mxu0 0
    %409 = vmatprep.mubr.bf16.mxu0 0
    %410 = vmatmul.mubr.bf16.gmra.mrb[0].mxu0 %v289
    %v411 = vpop.f32.mrb[0].mxu0
    %v412 = vadd.f32 0.0, %v411
    %v413 = vpop.f32.mrb[0].mxu0
    %v414 = vadd.f32 0.0, %v413
    %v415 = vpop.f32.mrb[0].mxu0
    %v416 = vadd.f32 0.0, %v415
    %v417 = vpop.f32.mrb[0].mxu0
    %v418 = vadd.f32 0.0, %v417
    %419 = vdwg.mxu0
    %v420 = vld [vmem:[%s3 + $0x12] sm:$0x1]
    %v421 = vlaneseq
    %v422 = vshrl.u32 %v421, 7
    %v423 = vsub.s32 0, %v422
    %v424 = vrot.slane %v420, %v423
    %v425 = vadd.f32 %v326, %v424
    %v426 = vadd.f32 %v330, %v424
    %v427 = vld [vmem:[%s3 + $0x13] sm:$0x1]
    %v428 = vlaneseq
    %v429 = vshrl.u32 %v428, 7
    %v430 = vsub.s32 0, %v429
    %v431 = vrot.slane %v427, %v430
    %v432 = vadd.f32 %v328, %v431
    %v433 = vadd.f32 %v332, %v431
    %v434 = vld [vmem:[%s3 + $0x14] sm:$0x1]
    %v435 = vlaneseq
    %v436 = vshrl.u32 %v435, 7
    %v437 = vsub.s32 0, %v436
    %v438 = vrot.slane %v434, %v437
    %v439 = vadd.f32 %v369, %v438
    %v440 = vadd.f32 %v373, %v438
    %vm441 = vcmask 130048
    %v443 = vsel %vm441, %v425, 0
    %v446 = vsel %vm441, %v432, 0
    %448 = vmatprep.subr.mxu0 0.0
    %449 = vmatpush1.xpose.msra.mxu0 %v446
    %450 = vmatprep.subr.mxu0 0.0
    %451 = vmatpush1.xpose.msra.mxu0 0.0
    %452 = vmatprep.subr.mxu0 0.0
    %453 = vmatpush1.xpose.msra.mxu0 0.0
    %454 = vmatprep.subr.mxu0 0.0
    %455 = vmatpush1.xpose.msra.mxu0 0.0
    %456 = vmatprep.subr.mxu0 0.0
    %457 = vmatpush1.xpose.msra.mxu0 0.0
    %458 = vmatprep.subr.mxu0 0.0
    %459 = vmatpush1.xpose.msra.mxu0 0.0
    %460 = vmatprep.subr.mxu0 0.0
    %461 = vmatpush1.xpose.msra.mxu0 0.0
    %462 = vmatprep.subr.mxu0 0.0
    %463 = vmatpush1.xpose.msra.mxu0 0.0
    %464 = vmatprep.subr.mxu0 0.0
    %465 = vmatpush1.xpose.msra.mxu0 0.0
    %466 = vmatprep.subr.mxu0 0.0
    %467 = vmatpush1.xpose.msra.mxu0 0.0
    %468 = vmatprep.subr.mxu0 0.0
    %469 = vmatpush1.xpose.msra.mxu0 0.0
    %470 = vmatprep.subr.mxu0 0.0
    %471 = vmatpush1.xpose.msra.mxu0 0.0
    %472 = vmatprep.subr.mxu0 0.0
    %473 = vmatpush1.xpose.msra.mxu0 0.0
    %474 = vmatprep.subr.mxu0 0.0
    %475 = vmatpush1.xpose.msra.mxu0 0.0
    %476 = vmatprep.subr.mxu0 0.0
    %477 = vmatpush1.xpose.msra.mxu0 0.0
    %478 = vmatprep.subr.mxu0 0.0
    %479 = vmatpush1.xpose.msra.mxu0 0.0
    %480 = vmatprep.subr.mxu0 0.0
    %481 = vmatpush1.xpose.msra.mxu0 0.0
    %482 = vmatprep.subr.mxu0 0.0
    %483 = vmatpush1.xpose.msra.mxu0 0.0
    %484 = vmatprep.subr.mxu0 0.0
    %485 = vmatpush1.xpose.msra.mxu0 0.0
    %486 = vmatprep.subr.mxu0 0.0
    %487 = vmatpush1.xpose.msra.mxu0 0.0
    %488 = vmatprep.subr.mxu0 0.0
    %489 = vmatpush1.xpose.msra.mxu0 0.0
    %490 = vmatprep.subr.mxu0 0.0
    %491 = vmatpush1.xpose.msra.mxu0 0.0
    %492 = vmatprep.subr.mxu0 0.0
    %493 = vmatpush1.xpose.msra.mxu0 0.0
    %494 = vmatprep.subr.mxu0 0.0
    %495 = vmatpush1.xpose.msra.mxu0 0.0
    %496 = vmatprep.subr.mxu0 0.0
    %497 = vmatpush1.xpose.msra.mxu0 0.0
    %498 = vmatprep.subr.mxu0 0.0
    %499 = vmatpush1.xpose.msra.mxu0 0.0
    %500 = vmatprep.subr.mxu0 0.0
    %501 = vmatpush1.xpose.msra.mxu0 0.0
    %502 = vmatprep.subr.mxu0 0.0
    %503 = vmatpush1.xpose.msra.mxu0 0.0
    %504 = vmatprep.subr.mxu0 0.0
    %505 = vmatpush1.xpose.msra.mxu0 0.0
    %506 = vmatprep.subr.mxu0 0.0
    %507 = vmatpush1.xpose.msra.mxu0 0.0
    %508 = vmatprep.subr.mxu0 0.0
    %509 = vmatpush1.xpose.msra.mxu0 0.0
    %510 = vmatprep.subr.mxu0 0.0
    %511 = vmatpush1.xpose.msra.mxu0 0.0
    %512 = vmatprep.mubr.f32.mxu0 0.0
    %513 = vmatmul.mubr.f32.gmra.mrb[0].mxu0 %v443
    %v514 = vpop.f32.mrb[0].mxu0
    %v515 = vadd.f32 0.0, %v514
    %v516 = vpop.f32.mrb[0].mxu0
    %517 = vdwg.mxu0
    %v518 = vmul.f32 %v515, 0.25
    %v519 = vlaneseq
    %v520 = vshrl.u32 %v519, 7
    %v521 = vsub.s32 0, %v520
    %v522 = vrot.slane %v214, %v521
    %v523 = vadd.f32 %v518, %v522
    %vm524 = vcmask 64512
    %v525 = vsel %vm524, %v523, -inf
    %526 = vmax.xlane.f32.xlu0 %v525
    %v527 = vpop.xlane.xlu0 %526
    %v528 = vsub.f32 %v523, %v527
    %v529 = vmul.f32 %v528, 1.442695
    %v530 = vpow.pop %v529
    %v531 = vsel %vm524, %v530, 0.0
    %532 = vadd.xlane.f32.xlu0 %v531
    %v533 = vpop.xlane.xlu0 %532
    %v534 = vrcp.pop %v533
    %v535 = vmul.f32 %v530, %v534
    %v537 = vsel %vm524, %v535, 0
    %539 = vmatprep.subr.mxu0 0.0
    %540 = vmatpush1.msra.mxu0 %v439
    %541 = vmatprep.subr.mxu0 0.0
    %542 = vmatpush1.msra.mxu0 0.0
    %543 = vmatprep.subr.mxu0 0.0
    %544 = vmatpush1.msra.mxu0 0.0
    %545 = vmatprep.subr.mxu0 0.0
    %546 = vmatpush1.msra.mxu0 0.0
    %547 = vmatprep.subr.mxu0 0.0
    %548 = vmatpush1.msra.mxu0 0.0
    %549 = vmatprep.subr.mxu0 0.0
    %550 = vmatpush1.msra.mxu0 0.0
    %551 = vmatprep.subr.mxu0 0.0
    %552 = vmatpush1.msra.mxu0 0.0
    %553 = vmatprep.subr.mxu0 0.0
    %554 = vmatpush1.msra.mxu0 0.0
    %555 = vmatprep.subr.mxu0 0.0
    %556 = vmatpush1.msra.mxu0 0.0
    %557 = vmatprep.subr.mxu0 0.0
    %558 = vmatpush1.msra.mxu0 0.0
    %559 = vmatprep.subr.mxu0 0.0
    %560 = vmatpush1.msra.mxu0 0.0
    %561 = vmatprep.subr.mxu0 0.0
    %562 = vmatpush1.msra.mxu0 0.0
    %563 = vmatprep.subr.mxu0 0.0
    %564 = vmatpush1.msra.mxu0 0.0
    %565 = vmatprep.subr.mxu0 0.0
    %566 = vmatpush1.msra.mxu0 0.0
    %567 = vmatprep.subr.mxu0 0.0
    %568 = vmatpush1.msra.mxu0 0.0
    %569 = vmatprep.subr.mxu0 0.0
    %570 = vmatpush1.msra.mxu0 0.0
    %571 = vmatprep.subr.mxu0 0.0
    %572 = vmatpush1.msra.mxu0 0.0
    %573 = vmatprep.subr.mxu0 0.0
    %574 = vmatpush1.msra.mxu0 0.0
    %575 = vmatprep.subr.mxu0 0.0
    %576 = vmatpush1.msra.mxu0 0.0
    %577 = vmatprep.subr.mxu0 0.0
    %578 = vmatpush1.msra.mxu0 0.0
    %579 = vmatprep.subr.mxu0 0.0
    %580 = vmatpush1.msra.mxu0 0.0
    %581 = vmatprep.subr.mxu0 0.0
    %582 = vmatpush1.msra.mxu0 0.0
    %583 = vmatprep.subr.mxu0 0.0
    %584 = vmatpush1.msra.mxu0 0.0
    %585 = vmatprep.subr.mxu0 0.0
    %586 = vmatpush1.msra.mxu0 0.0
    %587 = vmatprep.subr.mxu0 0.0
    %588 = vmatpush1.msra.mxu0 0.0
    %589 = vmatprep.subr.mxu0 0.0
    %590 = vmatpush1.msra.mxu0 0.0
    %591 = vmatprep.subr.mxu0 0.0
    %592 = vmatpush1.msra.mxu0 0.0
    %593 = vmatprep.subr.mxu0 0.0
    %594 = vmatpush1.msra.mxu0 0.0
    %595 = vmatprep.subr.mxu0 0.0
    %596 = vmatpush1.msra.mxu0 0.0
    %597 = vmatprep.subr.mxu0 0.0
    %598 = vmatpush1.msra.mxu0 0.0
    %599 = vmatprep.subr.mxu0 0.0
    %600 = vmatpush1.msra.mxu0 0.0
    %601 = vmatprep.subr.mxu0 0.0
    %602 = vmatpush1.msra.mxu0 0.0
    %603 = vmatprep.mubr.f32.mxu0 0.0
    %604 = vmatmul.mubr.f32.gmra.mrb[0].mxu0 %v537
    %v605 = vpop.f32.mrb[0].mxu0
    %v606 = vadd.f32 0.0, %v605
    %v607 = vpop.f32.mrb[0].mxu0
    %608 = vdwg.mxu0
    %609 = vst.msk [vmem:[#allocation2] sm:$0xff] %vm441, %v606
    %v611 = vsel %vm441, %v426, 0
    %v614 = vsel %vm441, %v433, 0
    %616 = vmatprep.subr.mxu0 0.0
    %617 = vmatpush1.xpose.msra.mxu0 %v614
    %618 = vmatprep.subr.mxu0 0.0
    %619 = vmatpush1.xpose.msra.mxu0 0.0
    %620 = vmatprep.subr.mxu0 0.0
    %621 = vmatpush1.xpose.msra.mxu0 0.0
    %622 = vmatprep.subr.mxu0 0.0
    %623 = vmatpush1.xpose.msra.mxu0 0.0
    %624 = vmatprep.subr.mxu0 0.0
    %625 = vmatpush1.xpose.msra.mxu0 0.0
    %626 = vmatprep.subr.mxu0 0.0
    %627 = vmatpush1.xpose.msra.mxu0 0.0
    %628 = vmatprep.subr.mxu0 0.0
    %629 = vmatpush1.xpose.msra.mxu0 0.0
    %630 = vmatprep.subr.mxu0 0.0
    %631 = vmatpush1.xpose.msra.mxu0 0.0
    %632 = vmatprep.subr.mxu0 0.0
    %633 = vmatpush1.xpose.msra.mxu0 0.0
    %634 = vmatprep.subr.mxu0 0.0
    %635 = vmatpush1.xpose.msra.mxu0 0.0
    %636 = vmatprep.subr.mxu0 0.0
    %637 = vmatpush1.xpose.msra.mxu0 0.0
    %638 = vmatprep.subr.mxu0 0.0
    %639 = vmatpush1.xpose.msra.mxu0 0.0
    %640 = vmatprep.subr.mxu0 0.0
    %641 = vmatpush1.xpose.msra.mxu0 0.0
    %642 = vmatprep.subr.mxu0 0.0
    %643 = vmatpush1.xpose.msra.mxu0 0.0
    %644 = vmatprep.subr.mxu0 0.0
    %645 = vmatpush1.xpose.msra.mxu0 0.0
    %646 = vmatprep.subr.mxu0 0.0
    %647 = vmatpush1.xpose.msra.mxu0 0.0
    %648 = vmatprep.subr.mxu0 0.0
    %649 = vmatpush1.xpose.msra.mxu0 0.0
    %650 = vmatprep.subr.mxu0 0.0
    %651 = vmatpush1.xpose.msra.mxu0 0.0
    %652 = vmatprep.subr.mxu0 0.0
    %653 = vmatpush1.xpose.msra.mxu0 0.0
    %654 = vmatprep.subr.mxu0 0.0
    %655 = vmatpush1.xpose.msra.mxu0 0.0
    %656 = vmatprep.subr.mxu0 0.0
    %657 = vmatpush1.xpose.msra.mxu0 0.0
    %658 = vmatprep.subr.mxu0 0.0
    %659 = vmatpush1.xpose.msra.mxu0 0.0
    %660 = vmatprep.subr.mxu0 0.0
    %661 = vmatpush1.xpose.msra.mxu0 0.0
    %662 = vmatprep.subr.mxu0 0.0
    %663 = vmatpush1.xpose.msra.mxu0 0.0
    %664 = vmatprep.subr.mxu0 0.0
    %665 = vmatpush1.xpose.msra.mxu0 0.0
    %666 = vmatprep.subr.mxu0 0.0
    %667 = vmatpush1.xpose.msra.mxu0 0.0
    %668 = vmatprep.subr.mxu0 0.0
    %669 = vmatpush1.xpose.msra.mxu0 0.0
    %670 = vmatprep.subr.mxu0 0.0
    %671 = vmatpush1.xpose.msra.mxu0 0.0
    %672 = vmatprep.subr.mxu0 0.0
    %673 = vmatpush1.xpose.msra.mxu0 0.0
    %674 = vmatprep.subr.mxu0 0.0
    %675 = vmatpush1.xpose.msra.mxu0 0.0
    %676 = vmatprep.subr.mxu0 0.0
    %677 = vmatpush1.xpose.msra.mxu0 0.0
    %678 = vmatprep.subr.mxu0 0.0
    %679 = vmatpush1.xpose.msra.mxu0 0.0
    %680 = vmatprep.mubr.f32.mxu0 0.0
    %681 = vmatmul.mubr.f32.gmra.mrb[0].mxu0 %v611
    %v682 = vpop.f32.mrb[0].mxu0
    %v683 = vadd.f32 0.0, %v682
    %v684 = vpop.f32.mrb[0].mxu0
    %685 = vdwg.mxu0
    %v686 = vmul.f32 %v683, 0.25
    %v687 = vlaneseq
    %v688 = vshrl.u32 %v687, 7
    %v689 = vsub.s32 1, %v688
    %v690 = vrot.slane %v214, %v689
    %v691 = vadd.f32 %v686, %v690
    %v692 = vsel %vm524, %v691, -inf
    %693 = vmax.xlane.f32.xlu0 %v692
    %v694 = vpop.xlane.xlu0 %693
    %v695 = vsub.f32 %v691, %v694
    %v696 = vmul.f32 %v695, 1.442695
    %v697 = vpow.pop %v696
    %v698 = vsel %vm524, %v697, 0.0
    %699 = vadd.xlane.f32.xlu0 %v698
    %v700 = vpop.xlane.xlu0 %699
    %v701 = vrcp.pop %v700
    %v702 = vmul.f32 %v697, %v701
    %v704 = vsel %vm524, %v702, 0
    %706 = vmatprep.subr.mxu0 0.0
    %707 = vmatpush1.msra.mxu0 %v440
    %708 = vmatprep.subr.mxu0 0.0
    %709 = vmatpush1.msra.mxu0 0.0
    %710 = vmatprep.subr.mxu0 0.0
    %711 = vmatpush1.msra.mxu0 0.0
    %712 = vmatprep.subr.mxu0 0.0
    %713 = vmatpush1.msra.mxu0 0.0
    %714 = vmatprep.subr.mxu0 0.0
    %715 = vmatpush1.msra.mxu0 0.0
    %716 = vmatprep.subr.mxu0 0.0
    %717 = vmatpush1.msra.mxu0 0.0
    %718 = vmatprep.subr.mxu0 0.0
    %719 = vmatpush1.msra.mxu0 0.0
    %720 = vmatprep.subr.mxu0 0.0
    %721 = vmatpush1.msra.mxu0 0.0
    %722 = vmatprep.subr.mxu0 0.0
    %723 = vmatpush1.msra.mxu0 0.0
    %724 = vmatprep.subr.mxu0 0.0
    %725 = vmatpush1.msra.mxu0 0.0
    %726 = vmatprep.subr.mxu0 0.0
    %727 = vmatpush1.msra.mxu0 0.0
    %728 = vmatprep.subr.mxu0 0.0
    %729 = vmatpush1.msra.mxu0 0.0
    %730 = vmatprep.subr.mxu0 0.0
    %731 = vmatpush1.msra.mxu0 0.0
    %732 = vmatprep.subr.mxu0 0.0
    %733 = vmatpush1.msra.mxu0 0.0
    %734 = vmatprep.subr.mxu0 0.0
    %735 = vmatpush1.msra.mxu0 0.0
    %736 = vmatprep.subr.mxu0 0.0
    %737 = vmatpush1.msra.mxu0 0.0
    %738 = vmatprep.subr.mxu0 0.0
    %739 = vmatpush1.msra.mxu0 0.0
    %740 = vmatprep.subr.mxu0 0.0
    %741 = vmatpush1.msra.mxu0 0.0
    %742 = vmatprep.subr.mxu0 0.0
    %743 = vmatpush1.msra.mxu0 0.0
    %744 = vmatprep.subr.mxu0 0.0
    %745 = vmatpush1.msra.mxu0 0.0
    %746 = vmatprep.subr.mxu0 0.0
    %747 = vmatpush1.msra.mxu0 0.0
    %748 = vmatprep.subr.mxu0 0.0
    %749 = vmatpush1.msra.mxu0 0.0
    %750 = vmatprep.subr.mxu0 0.0
    %751 = vmatpush1.msra.mxu0 0.0
    %752 = vmatprep.subr.mxu0 0.0
    %753 = vmatpush1.msra.mxu0 0.0
    %754 = vmatprep.subr.mxu0 0.0
    %755 = vmatpush1.msra.mxu0 0.0
    %756 = vmatprep.subr.mxu0 0.0
    %757 = vmatpush1.msra.mxu0 0.0
    %758 = vmatprep.subr.mxu0 0.0
    %759 = vmatpush1.msra.mxu0 0.0
    %760 = vmatprep.subr.mxu0 0.0
    %761 = vmatpush1.msra.mxu0 0.0
    %762 = vmatprep.subr.mxu0 0.0
    %763 = vmatpush1.msra.mxu0 0.0
    %764 = vmatprep.subr.mxu0 0.0
    %765 = vmatpush1.msra.mxu0 0.0
    %766 = vmatprep.subr.mxu0 0.0
    %767 = vmatpush1.msra.mxu0 0.0
    %768 = vmatprep.subr.mxu0 0.0
    %769 = vmatpush1.msra.mxu0 0.0
    %770 = vmatprep.mubr.f32.mxu0 0.0
    %771 = vmatmul.mubr.f32.gmra.mrb[0].mxu0 %v704
    %v772 = vpop.f32.mrb[0].mxu0
    %v773 = vadd.f32 0.0, %v772
    %v774 = vpop.f32.mrb[0].mxu0
    %775 = vdwg.mxu0
    %776 = vst.msk [vmem:[#allocation2 + $0x8] sm:$0xff] %vm441, %v773
    %v777 = vld [vmem:[%s3 + $0x15] sm:$0x1]
    %v778 = vlaneseq
    %v779 = vshrl.u32 %v778, 7
    %v780 = vsub.s32 0, %v779
    %v781 = vrot.slane %v777, %v780
    %v782 = vadd.f32 %v371, %v781
    %v783 = vadd.f32 %v375, %v781
    %v784 = vld [vmem:[%s3 + $0x16] sm:$0x1]
    %v785 = vlaneseq
    %v786 = vshrl.u32 %v785, 7
    %v787 = vsub.s32 0, %v786
    %v788 = vrot.slane %v784, %v787
    %v789 = vadd.f32 %v412, %v788
    %v790 = vadd.f32 %v416, %v788
    %v791 = vld [vmem:[%s3 + $0x17] sm:$0x1]
    %v792 = vlaneseq
    %v793 = vshrl.u32 %v792, 7
    %v794 = vsub.s32 0, %v793
    %v795 = vrot.slane %v791, %v794
    %v796 = vadd.f32 %v414, %v795
    %v797 = vadd.f32 %v418, %v795
    %v799 = vsel %vm441, %v782, 0
    %v802 = vsel %vm441, %v789, 0
    %804 = vmatprep.subr.mxu0 0.0
    %805 = vmatpush1.xpose.msra.mxu0 %v802
    %806 = vmatprep.subr.mxu0 0.0
    %807 = vmatpush1.xpose.msra.mxu0 0.0
    %808 = vmatprep.subr.mxu0 0.0
    %809 = vmatpush1.xpose.msra.mxu0 0.0
    %810 = vmatprep.subr.mxu0 0.0
    %811 = vmatpush1.xpose.msra.mxu0 0.0
    %812 = vmatprep.subr.mxu0 0.0
    %813 = vmatpush1.xpose.msra.mxu0 0.0
    %814 = vmatprep.subr.mxu0 0.0
    %815 = vmatpush1.xpose.msra.mxu0 0.0
    %816 = vmatprep.subr.mxu0 0.0
    %817 = vmatpush1.xpose.msra.mxu0 0.0
    %818 = vmatprep.subr.mxu0 0.0
    %819 = vmatpush1.xpose.msra.mxu0 0.0
    %820 = vmatprep.subr.mxu0 0.0
    %821 = vmatpush1.xpose.msra.mxu0 0.0
    %822 = vmatprep.subr.mxu0 0.0
    %823 = vmatpush1.xpose.msra.mxu0 0.0
    %824 = vmatprep.subr.mxu0 0.0
    %825 = vmatpush1.xpose.msra.mxu0 0.0
    %826 = vmatprep.subr.mxu0 0.0
    %827 = vmatpush1.xpose.msra.mxu0 0.0
    %828 = vmatprep.subr.mxu0 0.0
    %829 = vmatpush1.xpose.msra.mxu0 0.0
    %830 = vmatprep.subr.mxu0 0.0
    %831 = vmatpush1.xpose.msra.mxu0 0.0
    %832 = vmatprep.subr.mxu0 0.0
    %833 = vmatpush1.xpose.msra.mxu0 0.0
    %834 = vmatprep.subr.mxu0 0.0
    %835 = vmatpush1.xpose.msra.mxu0 0.0
    %836 = vmatprep.subr.mxu0 0.0
    %837 = vmatpush1.xpose.msra.mxu0 0.0
    %838 = vmatprep.subr.mxu0 0.0
    %839 = vmatpush1.xpose.msra.mxu0 0.0
    %840 = vmatprep.subr.mxu0 0.0
    %841 = vmatpush1.xpose.msra.mxu0 0.0
    %842 = vmatprep.subr.mxu0 0.0
    %843 = vmatpush1.xpose.msra.mxu0 0.0
    %844 = vmatprep.subr.mxu0 0.0
    %845 = vmatpush1.xpose.msra.mxu0 0.0
    %846 = vmatprep.subr.mxu0 0.0
    %847 = vmatpush1.xpose.msra.mxu0 0.0
    %848 = vmatprep.subr.mxu0 0.0
    %849 = vmatpush1.xpose.msra.mxu0 0.0
    %850 = vmatprep.subr.mxu0 0.0
    %851 = vmatpush1.xpose.msra.mxu0 0.0
    %852 = vmatprep.subr.mxu0 0.0
    %853 = vmatpush1.xpose.msra.mxu0 0.0
    %854 = vmatprep.subr.mxu0 0.0
    %855 = vmatpush1.xpose.msra.mxu0 0.0
    %856 = vmatprep.subr.mxu0 0.0
    %857 = vmatpush1.xpose.msra.mxu0 0.0
    %858 = vmatprep.subr.mxu0 0.0
    %859 = vmatpush1.xpose.msra.mxu0 0.0
    %860 = vmatprep.subr.mxu0 0.0
    %861 = vmatpush1.xpose.msra.mxu0 0.0
    %862 = vmatprep.subr.mxu0 0.0
    %863 = vmatpush1.xpose.msra.mxu0 0.0
    %864 = vmatprep.subr.mxu0 0.0
    %865 = vmatpush1.xpose.msra.mxu0 0.0
    %866 = vmatprep.subr.mxu0 0.0
    %867 = vmatpush1.xpose.msra.mxu0 0.0
    %868 = vmatprep.mubr.f32.mxu0 0.0
    %869 = vmatmul.mubr.f32.gmra.mrb[0].mxu0 %v799
    %v870 = vpop.f32.mrb[0].mxu0
    %v871 = vadd.f32 0.0, %v870
    %v872 = vpop.f32.mrb[0].mxu0
    %873 = vdwg.mxu0
    %v874 = vmul.f32 %v871, 0.25
    %v875 = vadd.f32 %v874, %v522
    %v876 = vsel %vm524, %v875, -inf
    %877 = vmax.xlane.f32.xlu0 %v876
    %v878 = vpop.xlane.xlu0 %877
    %v879 = vsub.f32 %v875, %v878
    %v880 = vmul.f32 %v879, 1.442695
    %v881 = vpow.pop %v880
    %v882 = vsel %vm524, %v881, 0.0
    %883 = vadd.xlane.f32.xlu0 %v882
    %v884 = vpop.xlane.xlu0 %883
    %v885 = vrcp.pop %v884
    %v886 = vmul.f32 %v881, %v885
    %v888 = vsel %vm524, %v886, 0
    %890 = vmatprep.subr.mxu0 0.0
    %891 = vmatpush1.msra.mxu0 %v796
    %892 = vmatprep.subr.mxu0 0.0
    %893 = vmatpush1.msra.mxu0 0.0
    %894 = vmatprep.subr.mxu0 0.0
    %895 = vmatpush1.msra.mxu0 0.0
    %896 = vmatprep.subr.mxu0 0.0
    %897 = vmatpush1.msra.mxu0 0.0
    %898 = vmatprep.subr.mxu0 0.0
    %899 = vmatpush1.msra.mxu0 0.0
    %900 = vmatprep.subr.mxu0 0.0
    %901 = vmatpush1.msra.mxu0 0.0
    %902 = vmatprep.subr.mxu0 0.0
    %903 = vmatpush1.msra.mxu0 0.0
    %904 = vmatprep.subr.mxu0 0.0
    %905 = vmatpush1.msra.mxu0 0.0
    %906 = vmatprep.subr.mxu0 0.0
    %907 = vmatpush1.msra.mxu0 0.0
    %908 = vmatprep.subr.mxu0 0.0
    %909 = vmatpush1.msra.mxu0 0.0
    %910 = vmatprep.subr.mxu0 0.0
    %911 = vmatpush1.msra.mxu0 0.0
    %912 = vmatprep.subr.mxu0 0.0
    %913 = vmatpush1.msra.mxu0 0.0
    %914 = vmatprep.subr.mxu0 0.0
    %915 = vmatpush1.msra.mxu0 0.0
    %916 = vmatprep.subr.mxu0 0.0
    %917 = vmatpush1.msra.mxu0 0.0
    %918 = vmatprep.subr.mxu0 0.0
    %919 = vmatpush1.msra.mxu0 0.0
    %920 = vmatprep.subr.mxu0 0.0
    %921 = vmatpush1.msra.mxu0 0.0
    %922 = vmatprep.subr.mxu0 0.0
    %923 = vmatpush1.msra.mxu0 0.0
    %924 = vmatprep.subr.mxu0 0.0
    %925 = vmatpush1.msra.mxu0 0.0
    %926 = vmatprep.subr.mxu0 0.0
    %927 = vmatpush1.msra.mxu0 0.0
    %928 = vmatprep.subr.mxu0 0.0
    %929 = vmatpush1.msra.mxu0 0.0
    %930 = vmatprep.subr.mxu0 0.0
    %931 = vmatpush1.msra.mxu0 0.0
    %932 = vmatprep.subr.mxu0 0.0
    %933 = vmatpush1.msra.mxu0 0.0
    %934 = vmatprep.subr.mxu0 0.0
    %935 = vmatpush1.msra.mxu0 0.0
    %936 = vmatprep.subr.mxu0 0.0
    %937 = vmatpush1.msra.mxu0 0.0
    %938 = vmatprep.subr.mxu0 0.0
    %939 = vmatpush1.msra.mxu0 0.0
    %940 = vmatprep.subr.mxu0 0.0
    %941 = vmatpush1.msra.mxu0 0.0
    %942 = vmatprep.subr.mxu0 0.0
    %943 = vmatpush1.msra.mxu0 0.0
    %944 = vmatprep.subr.mxu0 0.0
    %945 = vmatpush1.msra.mxu0 0.0
    %946 = vmatprep.subr.mxu0 0.0
    %947 = vmatpush1.msra.mxu0 0.0
    %948 = vmatprep.subr.mxu0 0.0
    %949 = vmatpush1.msra.mxu0 0.0
    %950 = vmatprep.subr.mxu0 0.0
    %951 = vmatpush1.msra.mxu0 0.0
    %952 = vmatprep.subr.mxu0 0.0
    %953 = vmatpush1.msra.mxu0 0.0
    %954 = vmatprep.mubr.f32.mxu0 0.0
    %955 = vmatmul.mubr.f32.gmra.mrb[0].mxu0 %v888
    %v956 = vpop.f32.mrb[0].mxu0
    %v957 = vadd.f32 0.0, %v956
    %v958 = vpop.f32.mrb[0].mxu0
    %959 = vdwg.mxu0
    %961 = vrot.lane.b32.xlu0 %v957, 16
    %v962 = vpop.permute.xlu0 %961
    %vm964 = vcmask 261248
    %965 = vst.msk [vmem:[#allocation2] sm:$0xff] %vm964, %v962
    %v967 = vsel %vm441, %v783, 0
    %v970 = vsel %vm441, %v790, 0
    %972 = vmatprep.subr.mxu0 0.0
    %973 = vmatpush1.xpose.msra.mxu0 %v970
    %974 = vmatprep.subr.mxu0 0.0
    %975 = vmatpush1.xpose.msra.mxu0 0.0
    %976 = vmatprep.subr.mxu0 0.0
    %977 = vmatpush1.xpose.msra.mxu0 0.0
    %978 = vmatprep.subr.mxu0 0.0
    %979 = vmatpush1.xpose.msra.mxu0 0.0
    %980 = vmatprep.subr.mxu0 0.0
    %981 = vmatpush1.xpose.msra.mxu0 0.0
    %982 = vmatprep.subr.mxu0 0.0
    %983 = vmatpush1.xpose.msra.mxu0 0.0
    %984 = vmatprep.subr.mxu0 0.0
    %985 = vmatpush1.xpose.msra.mxu0 0.0
    %986 = vmatprep.subr.mxu0 0.0
    %987 = vmatpush1.xpose.msra.mxu0 0.0
    %988 = vmatprep.subr.mxu0 0.0
    %989 = vmatpush1.xpose.msra.mxu0 0.0
    %990 = vmatprep.subr.mxu0 0.0
    %991 = vmatpush1.xpose.msra.mxu0 0.0
    %992 = vmatprep.subr.mxu0 0.0
    %993 = vmatpush1.xpose.msra.mxu0 0.0
    %994 = vmatprep.subr.mxu0 0.0
    %995 = vmatpush1.xpose.msra.mxu0 0.0
    %996 = vmatprep.subr.mxu0 0.0
    %997 = vmatpush1.xpose.msra.mxu0 0.0
    %998 = vmatprep.subr.mxu0 0.0
    %999 = vmatpush1.xpose.msra.mxu0 0.0
    %1000 = vmatprep.subr.mxu0 0.0
    %1001 = vmatpush1.xpose.msra.mxu0 0.0
    %1002 = vmatprep.subr.mxu0 0.0
    %1003 = vmatpush1.xpose.msra.mxu0 0.0
    %1004 = vmatprep.subr.mxu0 0.0
    %1005 = vmatpush1.xpose.msra.mxu0 0.0
    %1006 = vmatprep.subr.mxu0 0.0
    %1007 = vmatpush1.xpose.msra.mxu0 0.0
    %1008 = vmatprep.subr.mxu0 0.0
    %1009 = vmatpush1.xpose.msra.mxu0 0.0
    %1010 = vmatprep.subr.mxu0 0.0
    %1011 = vmatpush1.xpose.msra.mxu0 0.0
    %1012 = vmatprep.subr.mxu0 0.0
    %1013 = vmatpush1.xpose.msra.mxu0 0.0
    %1014 = vmatprep.subr.mxu0 0.0
    %1015 = vmatpush1.xpose.msra.mxu0 0.0
    %1016 = vmatprep.subr.mxu0 0.0
    %1017 = vmatpush1.xpose.msra.mxu0 0.0
    %1018 = vmatprep.subr.mxu0 0.0
    %1019 = vmatpush1.xpose.msra.mxu0 0.0
    %1020 = vmatprep.subr.mxu0 0.0
    %1021 = vmatpush1.xpose.msra.mxu0 0.0
    %1022 = vmatprep.subr.mxu0 0.0
    %1023 = vmatpush1.xpose.msra.mxu0 0.0
    %1024 = vmatprep.subr.mxu0 0.0
    %1025 = vmatpush1.xpose.msra.mxu0 0.0
    %1026 = vmatprep.subr.mxu0 0.0
    %1027 = vmatpush1.xpose.msra.mxu0 0.0
    %1028 = vmatprep.subr.mxu0 0.0
    %1029 = vmatpush1.xpose.msra.mxu0 0.0
    %1030 = vmatprep.subr.mxu0 0.0
    %1031 = vmatpush1.xpose.msra.mxu0 0.0
    %1032 = vmatprep.subr.mxu0 0.0
    %1033 = vmatpush1.xpose.msra.mxu0 0.0
    %1034 = vmatprep.subr.mxu0 0.0
    %1035 = vmatpush1.xpose.msra.mxu0 0.0
    %1036 = vmatprep.mubr.f32.mxu0 0.0
    %1037 = vmatmul.mubr.f32.gmra.mrb[0].mxu0 %v967
    %v1038 = vpop.f32.mrb[0].mxu0
    %v1039 = vadd.f32 0.0, %v1038
    %v1040 = vpop.f32.mrb[0].mxu0
    %1041 = vdwg.mxu0
    %v1042 = vmul.f32 %v1039, 0.25
    %v1043 = vadd.f32 %v1042, %v690
    %v1044 = vsel %vm524, %v1043, -inf
    %1045 = vmax.xlane.f32.xlu0 %v1044
    %v1046 = vpop.xlane.xlu0 %1045
    %v1047 = vsub.f32 %v1043, %v1046
    %v1048 = vmul.f32 %v1047, 1.442695
    %v1049 = vpow.pop %v1048
    %v1050 = vsel %vm524, %v1049, 0.0
    %1051 = vadd.xlane.f32.xlu0 %v1050
    %v1052 = vpop.xlane.xlu0 %1051
    %v1053 = vrcp.pop %v1052
    %v1054 = vmul.f32 %v1049, %v1053
    %v1056 = vsel %vm524, %v1054, 0
    %1058 = vmatprep.subr.mxu0 0.0
    %1059 = vmatpush1.msra.mxu0 %v797
    %1060 = vmatprep.subr.mxu0 0.0
    %1061 = vmatpush1.msra.mxu0 0.0
    %1062 = vmatprep.subr.mxu0 0.0
    %1063 = vmatpush1.msra.mxu0 0.0
    %1064 = vmatprep.subr.mxu0 0.0
    %1065 = vmatpush1.msra.mxu0 0.0
    %1066 = vmatprep.subr.mxu0 0.0
    %1067 = vmatpush1.msra.mxu0 0.0
    %1068 = vmatprep.subr.mxu0 0.0
    %1069 = vmatpush1.msra.mxu0 0.0
    %1070 = vmatprep.subr.mxu0 0.0
    %1071 = vmatpush1.msra.mxu0 0.0
    %1072 = vmatprep.subr.mxu0 0.0
    %1073 = vmatpush1.msra.mxu0 0.0
    %1074 = vmatprep.subr.mxu0 0.0
    %1075 = vmatpush1.msra.mxu0 0.0
    %1076 = vmatprep.subr.mxu0 0.0
    %1077 = vmatpush1.msra.mxu0 0.0
    %1078 = vmatprep.subr.mxu0 0.0
    %1079 = vmatpush1.msra.mxu0 0.0
    %1080 = vmatprep.subr.mxu0 0.0
    %1081 = vmatpush1.msra.mxu0 0.0
    %1082 = vmatprep.subr.mxu0 0.0
    %1083 = vmatpush1.msra.mxu0 0.0
    %1084 = vmatprep.subr.mxu0 0.0
    %1085 = vmatpush1.msra.mxu0 0.0
    %1086 = vmatprep.subr.mxu0 0.0
    %1087 = vmatpush1.msra.mxu0 0.0
    %1088 = vmatprep.subr.mxu0 0.0
    %1089 = vmatpush1.msra.mxu0 0.0
    %1090 = vmatprep.subr.mxu0 0.0
    %1091 = vmatpush1.msra.mxu0 0.0
    %1092 = vmatprep.subr.mxu0 0.0
    %1093 = vmatpush1.msra.mxu0 0.0
    %1094 = vmatprep.subr.mxu0 0.0
    %1095 = vmatpush1.msra.mxu0 0.0
    %1096 = vmatprep.subr.mxu0 0.0
    %1097 = vmatpush1.msra.mxu0 0.0
    %1098 = vmatprep.subr.mxu0 0.0
    %1099 = vmatpush1.msra.mxu0 0.0
    %1100 = vmatprep.subr.mxu0 0.0
    %1101 = vmatpush1.msra.mxu0 0.0
    %1102 = vmatprep.subr.mxu0 0.0
    %1103 = vmatpush1.msra.mxu0 0.0
    %1104 = vmatprep.subr.mxu0 0.0
    %1105 = vmatpush1.msra.mxu0 0.0
    %1106 = vmatprep.subr.mxu0 0.0
    %1107 = vmatpush1.msra.mxu0 0.0
    %1108 = vmatprep.subr.mxu0 0.0
    %1109 = vmatpush1.msra.mxu0 0.0
    %1110 = vmatprep.subr.mxu0 0.0
    %1111 = vmatpush1.msra.mxu0 0.0
    %1112 = vmatprep.subr.mxu0 0.0
    %1113 = vmatpush1.msra.mxu0 0.0
    %1114 = vmatprep.subr.mxu0 0.0
    %1115 = vmatpush1.msra.mxu0 0.0
    %1116 = vmatprep.subr.mxu0 0.0
    %1117 = vmatpush1.msra.mxu0 0.0
    %1118 = vmatprep.subr.mxu0 0.0
    %1119 = vmatpush1.msra.mxu0 0.0
    %1120 = vmatprep.subr.mxu0 0.0
    %1121 = vmatpush1.msra.mxu0 0.0
    %1122 = vmatprep.mubr.f32.mxu0 0.0
    %1123 = vmatmul.mubr.f32.gmra.mrb[0].mxu0 %v1056
    %v1124 = vpop.f32.mrb[0].mxu0
    %v1125 = vadd.f32 0.0, %v1124
    %v1126 = vpop.f32.mrb[0].mxu0
    %1127 = vdwg.mxu0
    %1129 = vrot.lane.b32.xlu0 %v1125, 16
    %v1130 = vpop.permute.xlu0 %1129
    %1132 = vst.msk [vmem:[#allocation2 + $0x8] sm:$0xff] %vm964, %v1130
    %v1133 = vld [vmem:[#allocation6] sm:$0xf]
    %v1134 = vld [vmem:[#allocation6 + $0x4] sm:$0xf]
    %v1135 = vld [vmem:[#allocation6 + $0x8] sm:$0xf]
    %v1136 = vld [vmem:[#allocation6 + $0xc] sm:$0xf]
    %v1137 = vld [vmem:[#allocation2] sm:$0xff]
    %v1138 = vld [vmem:[#allocation2 + $0x8] sm:$0xff]
    %v1139 = vpack.c.bf16 %v1138, %v1137
    %v1140 = vld [vmem:[%s3 + $0x18] sm:$0x1]
    %v1141 = vlaneseq
    %v1142 = vshrl.u32 %v1141, 7
    %v1143 = vsub.s32 0, %v1142
    %v1144 = vrot.slane %v1140, %v1143
    %v1149 = vunpack.c.l.b16 %v1133
    %v1150 = vunpack.c.l.b16 %v1134
    %v1151 = vunpack.c.l.b16 %v1135
    %v1152 = vunpack.c.l.b16 %v1136
    %v1153 = vpack.c.b16 %v1150, %v1149
    %v1154 = vpack.c.b16 %v1152, %v1151
    %v1158 = vsel %vm171, %v1139, 0
    %1160 = vmatprep.subr.bf16.mxu0 0
    %1161 = vmatpush1.bf16.msra.mxu0 %v1153
    %1162 = vmatprep.subr.bf16.mxu0 0
    %1163 = vmatpush1.bf16.msra.mxu0 %v1154
    %1164 = vmatprep.subr.bf16.mxu0 0
    %1165 = vmatpush1.bf16.msra.mxu0 0
    %1166 = vmatprep.subr.bf16.mxu0 0
    %1167 = vmatpush1.bf16.msra.mxu0 0
    %1168 = vmatprep.subr.bf16.mxu0 0
    %1169 = vmatpush1.bf16.msra.mxu0 0
    %1170 = vmatprep.subr.bf16.mxu0 0
    %1171 = vmatpush1.bf16.msra.mxu0 0
    %1172 = vmatprep.subr.bf16.mxu0 0
    %1173 = vmatpush1.bf16.msra.mxu0 0
    %1174 = vmatprep.subr.bf16.mxu0 0
    %1175 = vmatpush1.bf16.msra.mxu0 0
    %1176 = vmatprep.subr.bf16.mxu0 0
    %1177 = vmatpush1.bf16.msra.mxu0 0
    %1178 = vmatprep.subr.bf16.mxu0 0
    %1179 = vmatpush1.bf16.msra.mxu0 0
    %1180 = vmatprep.subr.bf16.mxu0 0
    %1181 = vmatpush1.bf16.msra.mxu0 0
    %1182 = vmatprep.subr.bf16.mxu0 0
    %1183 = vmatpush1.bf16.msra.mxu0 0
    %1184 = vmatprep.subr.bf16.mxu0 0
    %1185 = vmatpush1.bf16.msra.mxu0 0
    %1186 = vmatprep.subr.bf16.mxu0 0
    %1187 = vmatpush1.bf16.msra.mxu0 0
    %1188 = vmatprep.subr.bf16.mxu0 0
    %1189 = vmatpush1.bf16.msra.mxu0 0
    %1190 = vmatprep.subr.bf16.mxu0 0
    %1191 = vmatpush1.bf16.msra.mxu0 0
    %1192 = vmatprep.mubr.bf16.mxu0 0
    %1193 = vmatmul.mubr.bf16.gmra.mrb[0].mxu0 %v1158
    %v1194 = vpop.f32.mrb[0].mxu0
    %v1195 = vadd.f32 %v1144, %v1194
    %v1196 = vpop.f32.mrb[0].mxu0
    %v1197 = vpop.f32.mrb[0].mxu0
    %v1198 = vadd.f32 %v1144, %v1197
    %v1199 = vpop.f32.mrb[0].mxu0
    %1200 = vdwg.mxu0
    %v1201 = vadd.f32 %v209, %v1195
    %v1202 = vadd.f32 %v210, %v1198
    %v1203 = vld [vmem:[%s3 + $0x19] sm:$0x1]
    %v1204 = vld [vmem:[%s3 + $0x1a] sm:$0x1]
    %v1205 = vsel %vm171, %v1201, 0.0
    %1206 = vadd.xlane.f32.xlu0 %v1205
    %v1207 = vpop.xlane.xlu0 %1206
    %v1208 = vsel %vm171, %v1202, 0.0
    %1209 = vadd.xlane.f32.xlu0 %v1208
    %v1210 = vpop.xlane.xlu0 %1209
    %v1211 = vmul.f32 %v1207, %v178
    %v1212 = vmul.f32 %v1210, %v178
    %v1213 = vsub.f32 %v1201, %v1211
    %v1214 = vsub.f32 %v1202, %v1212
    %v1215 = vmul.f32 %v1213, %v1213
    %v1216 = vmul.f32 %v1214, %v1214
    %v1217 = vsel %vm171, %v1215, 0.0
    %1218 = vadd.xlane.f32.xlu0 %v1217
    %v1219 = vpop.xlane.xlu0 %1218
    %v1220 = vsel %vm171, %v1216, 0.0
    %1221 = vadd.xlane.f32.xlu0 %v1220
    %v1222 = vpop.xlane.xlu0 %1221
    %v1223 = vmul.f32 %v1219, %v178
    %v1224 = vmul.f32 %v1222, %v178
    %v1225 = vadd.f32 %v1223, 1e-12
    %v1226 = vadd.f32 %v1224, 1e-12
    %v1227 = vrsqrt.pop %v1225
    %v1228 = vrsqrt.pop %v1226
    %v1229 = vmul.f32 %v1213, %v1227
    %v1230 = vmul.f32 %v1214, %v1228
    %v1231 = vlaneseq
    %v1232 = vshrl.u32 %v1231, 7
    %v1233 = vsub.s32 0, %v1232
    %v1234 = vrot.slane %v1203, %v1233
    %v1235 = vmul.f32 %v1229, %v1234
    %v1236 = vmul.f32 %v1230, %v1234
    %v1237 = vlaneseq
    %v1238 = vshrl.u32 %v1237, 7
    %v1239 = vsub.s32 0, %v1238
    %v1240 = vrot.slane %v1204, %v1239
    %v1241 = vadd.f32 %v1235, %v1240
    %v1242 = vadd.f32 %v1236, %v1240
    %v1243 = vld [vmem:[#allocation6 + $0x10] sm:$0xf]
    %v1244 = vld [vmem:[#allocation6 + $0x14] sm:$0xf]
    %v1245 = vld [vmem:[#allocation6 + $0x18] sm:$0xf]
    %v1246 = vld [vmem:[#allocation6 + $0x1c] sm:$0xf]
    %v1247 = vpack.c.bf16 %v1242, %v1241
    %v1248 = vld [vmem:[%s3 + $0x1b] sm:$0x1]
    %v1249 = vlaneseq
    %v1250 = vshrl.u32 %v1249, 7
    %v1251 = vsub.s32 0, %v1250
    %v1252 = vrot.slane %v1248, %v1251
    %v1257 = vunpack.c.l.b16 %v1243
    %v1258 = vunpack.c.l.b16 %v1244
    %v1259 = vunpack.c.l.b16 %v1245
    %v1260 = vunpack.c.l.b16 %v1246
    %v1261 = vpack.c.b16 %v1258, %v1257
    %v1262 = vpack.c.b16 %v1260, %v1259
    %v1266 = vsel %vm171, %v1247, 0
    %1268 = vmatprep.subr.bf16.mxu0 0
    %1269 = vmatpush1.bf16.msra.mxu0 %v1261
    %1270 = vmatprep.subr.bf16.mxu0 0
    %1271 = vmatpush1.bf16.msra.mxu0 %v1262
    %1272 = vmatprep.subr.bf16.mxu0 0
    %1273 = vmatpush1.bf16.msra.mxu0 0
    %1274 = vmatprep.subr.bf16.mxu0 0
    %1275 = vmatpush1.bf16.msra.mxu0 0
    %1276 = vmatprep.subr.bf16.mxu0 0
    %1277 = vmatpush1.bf16.msra.mxu0 0
    %1278 = vmatprep.subr.bf16.mxu0 0
    %1279 = vmatpush1.bf16.msra.mxu0 0
    %1280 = vmatprep.subr.bf16.mxu0 0
    %1281 = vmatpush1.bf16.msra.mxu0 0
    %1282 = vmatprep.subr.bf16.mxu0 0
    %1283 = vmatpush1.bf16.msra.mxu0 0
    %1284 = vmatprep.subr.bf16.mxu0 0
    %1285 = vmatpush1.bf16.msra.mxu0 0
    %1286 = vmatprep.subr.bf16.mxu0 0
    %1287 = vmatpush1.bf16.msra.mxu0 0
    %1288 = vmatprep.subr.bf16.mxu0 0
    %1289 = vmatpush1.bf16.msra.mxu0 0
    %1290 = vmatprep.subr.bf16.mxu0 0
    %1291 = vmatpush1.bf16.msra.mxu0 0
    %1292 = vmatprep.subr.bf16.mxu0 0
    %1293 = vmatpush1.bf16.msra.mxu0 0
    %1294 = vmatprep.subr.bf16.mxu0 0
    %1295 = vmatpush1.bf16.msra.mxu0 0
    %1296 = vmatprep.subr.bf16.mxu0 0
    %1297 = vmatpush1.bf16.msra.mxu0 0
    %1298 = vmatprep.subr.bf16.mxu0 0
    %1299 = vmatpush1.bf16.msra.mxu0 0
    %1300 = vmatprep.mubr.bf16.mxu0 0
    %1301 = vmatmul.mubr.bf16.gmra.mrb[0].mxu0 %v1266
    %v1302 = vpop.f32.mrb[0].mxu0
    %v1303 = vadd.f32 %v1252, %v1302
    %v1304 = vpop.f32.mrb[0].mxu0
    %v1305 = vpop.f32.mrb[0].mxu0
    %v1306 = vadd.f32 %v1252, %v1305
    %v1307 = vpop.f32.mrb[0].mxu0
    %1308 = vdwg.mxu0
    %v1309 = vmul.f32 %v1303, 0.5
    %v1310 = vmul.f32 %v1306, 0.5
    %v1311 = vmul.f32 %v1303, 0.044715
    %v1312 = vmul.f32 %v1306, 0.044715
    %v1313 = vmul.f32 %v1311, %v1303
    %v1314 = vmul.f32 %v1312, %v1306
    %v1315 = vmul.f32 %v1313, %v1303
    %v1316 = vmul.f32 %v1314, %v1306
    %v1317 = vadd.f32 %v1303, %v1315
    %v1318 = vadd.f32 %v1306, %v1316
    %v1319 = vmul.f32 %v1317, 0.7978846
    %v1320 = vmul.f32 %v1318, 0.7978846
    %v1321 = vtanh.pop %v1319
    %v1322 = vtanh.pop %v1320
    %v1323 = vadd.f32 %v1321, 1.0
    %v1324 = vadd.f32 %v1322, 1.0
    %v1325 = vmul.f32 %v1309, %v1323
    %v1326 = vmul.f32 %v1310, %v1324
    %v1327 = vld [vmem:[#allocation6 + $0x20] sm:$0xf]
    %v1328 = vld [vmem:[#allocation6 + $0x24] sm:$0xf]
    %v1329 = vld [vmem:[#allocation6 + $0x28] sm:$0xf]
    %v1330 = vld [vmem:[#allocation6 + $0x2c] sm:$0xf]
    %v1331 = vld [vmem:[#allocation6 + $0x30] sm:$0xf]
    %v1332 = vld [vmem:[#allocation6 + $0x34] sm:$0xf]
    %v1333 = vld [vmem:[#allocation6 + $0x38] sm:$0xf]
    %v1334 = vld [vmem:[#allocation6 + $0x3c] sm:$0xf]
    %v1335 = vpack.c.bf16 %v1326, %v1325
    %v1336 = vld [vmem:[%s3 + $0x1c] sm:$0x1]
    %v1337 = vlaneseq
    %v1338 = vshrl.u32 %v1337, 7
    %v1339 = vsub.s32 0, %v1338
    %v1340 = vrot.slane %v1336, %v1339
    %v1349 = vunpack.c.l.b16 %v1327
    %v1350 = vunpack.c.l.b16 %v1328
    %v1351 = vunpack.c.l.b16 %v1329
    %v1352 = vunpack.c.l.b16 %v1330
    %v1353 = vunpack.c.l.b16 %v1331
    %v1354 = vunpack.c.l.b16 %v1332
    %v1355 = vunpack.c.l.b16 %v1333
    %v1356 = vunpack.c.l.b16 %v1334
    %v1357 = vpack.c.b16 %v1350, %v1349
    %v1358 = vpack.c.b16 %v1352, %v1351
    %v1359 = vpack.c.b16 %v1354, %v1353
    %v1360 = vpack.c.b16 %v1356, %v1355
    %vm1365 = vcmask 523264
    %v1367 = vsel %vm1365, %v1335, 0
    %1369 = vmatprep.subr.bf16.mxu0 0
    %1370 = vmatpush1.bf16.msra.mxu0 %v1357
    %1371 = vmatprep.subr.bf16.mxu0 0
    %1372 = vmatpush1.bf16.msra.mxu0 %v1358
    %1373 = vmatprep.subr.bf16.mxu0 0
    %1374 = vmatpush1.bf16.msra.mxu0 %v1359
    %1375 = vmatprep.subr.bf16.mxu0 0
    %1376 = vmatpush1.bf16.msra.mxu0 %v1360
    %1377 = vmatprep.subr.bf16.mxu0 0
    %1378 = vmatpush1.bf16.msra.mxu0 0
    %1379 = vmatprep.subr.bf16.mxu0 0
    %1380 = vmatpush1.bf16.msra.mxu0 0
    %1381 = vmatprep.subr.bf16.mxu0 0
    %1382 = vmatpush1.bf16.msra.mxu0 0
    %1383 = vmatprep.subr.bf16.mxu0 0
    %1384 = vmatpush1.bf16.msra.mxu0 0
    %1385 = vmatprep.subr.bf16.mxu0 0
    %1386 = vmatpush1.bf16.msra.mxu0 0
    %1387 = vmatprep.subr.bf16.mxu0 0
    %1388 = vmatpush1.bf16.msra.mxu0 0
    %1389 = vmatprep.subr.bf16.mxu0 0
    %1390 = vmatpush1.bf16.msra.mxu0 0
    %1391 = vmatprep.subr.bf16.mxu0 0
    %1392 = vmatpush1.bf16.msra.mxu0 0
    %1393 = vmatprep.subr.bf16.mxu0 0
    %1394 = vmatpush1.bf16.msra.mxu0 0
    %1395 = vmatprep.subr.bf16.mxu0 0
    %1396 = vmatpush1.bf16.msra.mxu0 0
    %1397 = vmatprep.subr.bf16.mxu0 0
    %1398 = vmatpush1.bf16.msra.mxu0 0
    %1399 = vmatprep.subr.bf16.mxu0 0
    %1400 = vmatpush1.bf16.msra.mxu0 0
    %1401 = vmatprep.mubr.bf16.mxu0 0
    %1402 = vmatmul.mubr.bf16.gmra.mrb[0].mxu0 %v1367
    %v1403 = vpop.f32.mrb[0].mxu0
    %v1404 = vadd.f32 %v1340, %v1403
    %v1405 = vpop.f32.mrb[0].mxu0
    %v1406 = vpop.f32.mrb[0].mxu0
    %v1407 = vadd.f32 %v1340, %v1406
    %v1408 = vpop.f32.mrb[0].mxu0
    %1409 = vdwg.mxu0
    %v1410 = vadd.f32 %v1241, %v1404
    %v1411 = vadd.f32 %v1242, %v1407
    %v1412 = vld [vmem:[%s3 + $0x1d] sm:$0x1]
    %v1413 = vld [vmem:[%s3 + $0x1e] sm:$0x1]
    %v1414 = vsel %vm171, %v1410, 0.0
    %1415 = vadd.xlane.f32.xlu0 %v1414
    %v1416 = vpop.xlane.xlu0 %1415
    %v1417 = vsel %vm171, %v1411, 0.0
    %1418 = vadd.xlane.f32.xlu0 %v1417
    %v1419 = vpop.xlane.xlu0 %1418
    %v1420 = vmul.f32 %v1416, %v178
    %v1421 = vmul.f32 %v1419, %v178
    %v1422 = vsub.f32 %v1410, %v1420
    %v1423 = vsub.f32 %v1411, %v1421
    %v1424 = vmul.f32 %v1422, %v1422
    %v1425 = vmul.f32 %v1423, %v1423
    %v1426 = vsel %vm171, %v1424, 0.0
    %1427 = vadd.xlane.f32.xlu0 %v1426
    %v1428 = vpop.xlane.xlu0 %1427
    %v1429 = vsel %vm171, %v1425, 0.0
    %1430 = vadd.xlane.f32.xlu0 %v1429
    %v1431 = vpop.xlane.xlu0 %1430
    %v1432 = vmul.f32 %v1428, %v178
    %v1433 = vmul.f32 %v1431, %v178
    %v1434 = vadd.f32 %v1432, 1e-12
    %v1435 = vadd.f32 %v1433, 1e-12
    %v1436 = vrsqrt.pop %v1434
    %v1437 = vrsqrt.pop %v1435
    %v1438 = vmul.f32 %v1422, %v1436
    %v1439 = vmul.f32 %v1423, %v1437
    %v1440 = vlaneseq
    %v1441 = vshrl.u32 %v1440, 7
    %v1442 = vsub.s32 0, %v1441
    %v1443 = vrot.slane %v1412, %v1442
    %v1444 = vmul.f32 %v1438, %v1443
    %v1445 = vmul.f32 %v1439, %v1443
    %v1446 = vlaneseq
    %v1447 = vshrl.u32 %v1446, 7
    %v1448 = vsub.s32 0, %v1447
    %v1449 = vrot.slane %v1413, %v1448
    %v1450 = vadd.f32 %v1444, %v1449
    %v1451 = vadd.f32 %v1445, %v1449
    %v1452 = vld [vmem:[#allocation3 + $0x60] sm:$0xff]
    %v1453 = vld [vmem:[#allocation3 + $0x68] sm:$0xff]
    %v1454 = vld [vmem:[#allocation3 + $0x70] sm:$0xff]
    %v1455 = vld [vmem:[#allocation3 + $0x78] sm:$0xff]
    %v1456 = vld [vmem:[#allocation3 + $0x80] sm:$0xff]
    %v1457 = vld [vmem:[#allocation3 + $0x88] sm:$0xff]
    %v1458 = vld [vmem:[#allocation3 + $0x90] sm:$0xff]
    %v1459 = vld [vmem:[#allocation3 + $0x98] sm:$0xff]
    %v1460 = vld [vmem:[#allocation3 + $0xa0] sm:$0xff]
    %v1461 = vld [vmem:[#allocation3 + $0xa8] sm:$0xff]
    %v1462 = vld [vmem:[#allocation3 + $0xb0] sm:$0xff]
    %v1463 = vld [vmem:[#allocation3 + $0xb8] sm:$0xff]
    %v1464 = vpack.c.bf16 %v1451, %v1450
    %v1477 = vunpack.c.l.b16 %v1452
    %v1478 = vunpack.c.h.b16 %v1452
    %v1479 = vunpack.c.l.b16 %v1453
    %v1480 = vunpack.c.h.b16 %v1453
    %v1481 = vunpack.c.l.b16 %v1454
    %v1482 = vunpack.c.h.b16 %v1454
    %v1483 = vunpack.c.l.b16 %v1455
    %v1484 = vunpack.c.h.b16 %v1455
    %v1485 = vunpack.c.l.b16 %v1456
    %v1486 = vunpack.c.h.b16 %v1456
    %v1487 = vunpack.c.l.b16 %v1457
    %v1488 = vunpack.c.h.b16 %v1457
    %v1489 = vunpack.c.l.b16 %v1458
    %v1490 = vunpack.c.h.b16 %v1458
    %v1491 = vunpack.c.l.b16 %v1459
    %v1492 = vunpack.c.h.b16 %v1459
    %v1493 = vunpack.c.l.b16 %v1460
    %v1494 = vunpack.c.h.b16 %v1460
    %v1495 = vunpack.c.l.b16 %v1461
    %v1496 = vunpack.c.h.b16 %v1461
    %v1497 = vunpack.c.l.b16 %v1462
    %v1498 = vunpack.c.h.b16 %v1462
    %v1499 = vunpack.c.l.b16 %v1463
    %v1500 = vunpack.c.h.b16 %v1463
    %v1501 = vpack.c.b16 %v1483, %v1477
    %v1502 = vpack.c.b16 %v1484, %v1478
    %v1503 = vpack.c.b16 %v1485, %v1479
    %v1504 = vpack.c.b16 %v1486, %v1480
    %v1505 = vpack.c.b16 %v1487, %v1481
    %v1506 = vpack.c.b16 %v1488, %v1482
    %v1507 = vpack.c.b16 %v1495, %v1489
    %v1508 = vpack.c.b16 %v1496, %v1490
    %v1509 = vpack.c.b16 %v1497, %v1491
    %v1510 = vpack.c.b16 %v1498, %v1492
    %v1511 = vpack.c.b16 %v1499, %v1493
    %v1512 = vpack.c.b16 %v1500, %v1494
    %v1526 = vsel %vm171, %v1464, 0
    %1528 = vmatprep.subr.bf16.mxu0 %v1502
    %1529 = vmatpush1.bf16.msra.mxu0 %v1501
    %1530 = vmatprep.subr.bf16.mxu0 %v1508
    %1531 = vmatpush1.bf16.msra.mxu0 %v1507
    %1532 = vmatprep.subr.bf16.mxu0 0
    %1533 = vmatpush1.bf16.msra.mxu0 0
    %1534 = vmatprep.subr.bf16.mxu0 0
    %1535 = vmatpush1.bf16.msra.mxu0 0
    %1536 = vmatprep.subr.bf16.mxu0 0
    %1537 = vmatpush1.bf16.msra.mxu0 0
    %1538 = vmatprep.subr.bf16.mxu0 0
    %1539 = vmatpush1.bf16.msra.mxu0 0
    %1540 = vmatprep.subr.bf16.mxu0 0
    %1541 = vmatpush1.bf16.msra.mxu0 0
    %1542 = vmatprep.subr.bf16.mxu0 0
    %1543 = vmatpush1.bf16.msra.mxu0 0
    %1544 = vmatprep.subr.bf16.mxu0 0
    %1545 = vmatpush1.bf16.msra.mxu0 0
    %1546 = vmatprep.subr.bf16.mxu0 0
    %1547 = vmatpush1.bf16.msra.mxu0 0
    %1548 = vmatprep.subr.bf16.mxu0 0
    %1549 = vmatpush1.bf16.msra.mxu0 0
    %1550 = vmatprep.subr.bf16.mxu0 0
    %1551 = vmatpush1.bf16.msra.mxu0 0
    %1552 = vmatprep.subr.bf16.mxu0 0
    %1553 = vmatpush1.bf16.msra.mxu0 0
    %1554 = vmatprep.subr.bf16.mxu0 0
    %1555 = vmatpush1.bf16.msra.mxu0 0
    %1556 = vmatprep.subr.bf16.mxu0 0
    %1557 = vmatpush1.bf16.msra.mxu0 0
    %1558 = vmatprep.subr.bf16.mxu0 0
    %1559 = vmatpush1.bf16.msra.mxu0 0
    %1560 = vmatprep.mubr.bf16.mxu0 0
    %1561 = vmatmul.mubr.bf16.gmra.mrb[0].mxu0 %v1526
    %v1562 = vpop.f32.mrb[0].mxu0
    %v1563 = vadd.f32 0.0, %v1562
    %v1564 = vpop.f32.mrb[0].mxu0
    %v1565 = vadd.f32 0.0, %v1564
    %v1566 = vpop.f32.mrb[0].mxu0
    %v1567 = vadd.f32 0.0, %v1566
    %v1568 = vpop.f32.mrb[0].mxu0
    %v1569 = vadd.f32 0.0, %v1568
    %1570 = vdwg.mxu0
    %1571 = vmatprep.subr.bf16.mxu0 %v1504
    %1572 = vmatpush1.bf16.msra.mxu0 %v1503
    %1573 = vmatprep.subr.bf16.mxu0 %v1510
    %1574 = vmatpush1.bf16.msra.mxu0 %v1509
    %1575 = vmatprep.subr.bf16.mxu0 0
    %1576 = vmatpush1.bf16.msra.mxu0 0
    %1577 = vmatprep.subr.bf16.mxu0 0
    %1578 = vmatpush1.bf16.msra.mxu0 0
    %1579 = vmatprep.subr.bf16.mxu0 0
    %1580 = vmatpush1.bf16.msra.mxu0 0
    %1581 = vmatprep.subr.bf16.mxu0 0
    %1582 = vmatpush1.bf16.msra.mxu0 0
    %1583 = vmatprep.subr.bf16.mxu0 0
    %1584 = vmatpush1.bf16.msra.mxu0 0
    %1585 = vmatprep.subr.bf16.mxu0 0
    %1586 = vmatpush1.bf16.msra.mxu0 0
    %1587 = vmatprep.subr.bf16.mxu0 0
    %1588 = vmatpush1.bf16.msra.mxu0 0
    %1589 = vmatprep.subr.bf16.mxu0 0
    %1590 = vmatpush1.bf16.msra.mxu0 0
    %1591 = vmatprep.subr.bf16.mxu0 0
    %1592 = vmatpush1.bf16.msra.mxu0 0
    %1593 = vmatprep.subr.bf16.mxu0 0
    %1594 = vmatpush1.bf16.msra.mxu0 0
    %1595 = vmatprep.subr.bf16.mxu0 0
    %1596 = vmatpush1.bf16.msra.mxu0 0
    %1597 = vmatprep.subr.bf16.mxu0 0
    %1598 = vmatpush1.bf16.msra.mxu0 0
    %1599 = vmatprep.subr.bf16.mxu0 0
    %1600 = vmatpush1.bf16.msra.mxu0 0
    %1601 = vmatprep.subr.bf16.mxu0 0
    %1602 = vmatpush1.bf16.msra.mxu0 0
    %1603 = vmatprep.mubr.bf16.mxu0 0
    %1604 = vmatmul.mubr.bf16.gmra.mrb[0].mxu0 %v1526
    %v1605 = vpop.f32.mrb[0].mxu0
    %v1606 = vadd.f32 0.0, %v1605
    %v1607 = vpop.f32.mrb[0].mxu0
    %v1608 = vadd.f32 0.0, %v1607
    %v1609 = vpop.f32.mrb[0].mxu0
    %v1610 = vadd.f32 0.0, %v1609
    %v1611 = vpop.f32.mrb[0].mxu0
    %v1612 = vadd.f32 0.0, %v1611
    %1613 = vdwg.mxu0
    %1614 = vmatprep.subr.bf16.mxu0 %v1506
    %1615 = vmatpush1.bf16.msra.mxu0 %v1505
    %1616 = vmatprep.subr.bf16.mxu0 %v1512
    %1617 = vmatpush1.bf16.msra.mxu0 %v1511
    %1618 = vmatprep.subr.bf16.mxu0 0
    %1619 = vmatpush1.bf16.msra.mxu0 0
    %1620 = vmatprep.subr.bf16.mxu0 0
    %1621 = vmatpush1.bf16.msra.mxu0 0
    %1622 = vmatprep.subr.bf16.mxu0 0
    %1623 = vmatpush1.bf16.msra.mxu0 0
    %1624 = vmatprep.subr.bf16.mxu0 0
    %1625 = vmatpush1.bf16.msra.mxu0 0
    %1626 = vmatprep.subr.bf16.mxu0 0
    %1627 = vmatpush1.bf16.msra.mxu0 0
    %1628 = vmatprep.subr.bf16.mxu0 0
    %1629 = vmatpush1.bf16.msra.mxu0 0
    %1630 = vmatprep.subr.bf16.mxu0 0
    %1631 = vmatpush1.bf16.msra.mxu0 0
    %1632 = vmatprep.subr.bf16.mxu0 0
    %1633 = vmatpush1.bf16.msra.mxu0 0
    %1634 = vmatprep.subr.bf16.mxu0 0
    %1635 = vmatpush1.bf16.msra.mxu0 0
    %1636 = vmatprep.subr.bf16.mxu0 0
    %1637 = vmatpush1.bf16.msra.mxu0 0
    %1638 = vmatprep.subr.bf16.mxu0 0
    %1639 = vmatpush1.bf16.msra.mxu0 0
    %1640 = vmatprep.subr.bf16.mxu0 0
    %1641 = vmatpush1.bf16.msra.mxu0 0
    %1642 = vmatprep.subr.bf16.mxu0 0
    %1643 = vmatpush1.bf16.msra.mxu0 0
    %1644 = vmatprep.subr.bf16.mxu0 0
    %1645 = vmatpush1.bf16.msra.mxu0 0
    %1646 = vmatprep.mubr.bf16.mxu0 0
    %1647 = vmatmul.mubr.bf16.gmra.mrb[0].mxu0 %v1526
    %v1648 = vpop.f32.mrb[0].mxu0
    %v1649 = vadd.f32 0.0, %v1648
    %v1650 = vpop.f32.mrb[0].mxu0
    %v1651 = vadd.f32 0.0, %v1650
    %v1652 = vpop.f32.mrb[0].mxu0
    %v1653 = vadd.f32 0.0, %v1652
    %v1654 = vpop.f32.mrb[0].mxu0
    %v1655 = vadd.f32 0.0, %v1654
    %1656 = vdwg.mxu0
    %v1657 = vld [vmem:[%s3 + $0x1f] sm:$0x1]
    %v1658 = vlaneseq
    %v1659 = vshrl.u32 %v1658, 7
    %v1660 = vsub.s32 0, %v1659
    %v1661 = vrot.slane %v1657, %v1660
    %v1662 = vadd.f32 %v1563, %v1661
    %v1663 = vadd.f32 %v1567, %v1661
    %v1664 = vld [vmem:[%s3 + $0x20] sm:$0x1]
    %v1665 = vlaneseq
    %v1666 = vshrl.u32 %v1665, 7
    %v1667 = vsub.s32 0, %v1666
    %v1668 = vrot.slane %v1664, %v1667
    %v1669 = vadd.f32 %v1565, %v1668
    %v1670 = vadd.f32 %v1569, %v1668
    %v1671 = vld [vmem:[%s3 + $0x21] sm:$0x1]
    %v1672 = vlaneseq
    %v1673 = vshrl.u32 %v1672, 7
    %v1674 = vsub.s32 0, %v1673
    %v1675 = vrot.slane %v1671, %v1674
    %v1676 = vadd.f32 %v1606, %v1675
    %v1677 = vadd.f32 %v1610, %v1675
    %v1679 = vsel %vm441, %v1662, 0
    %v1682 = vsel %vm441, %v1669, 0
    %1684 = vmatprep.subr.mxu0 0.0
    %1685 = vmatpush1.xpose.msra.mxu0 %v1682
    %1686 = vmatprep.subr.mxu0 0.0
    %1687 = vmatpush1.xpose.msra.mxu0 0.0
    %1688 = vmatprep.subr.mxu0 0.0
    %1689 = vmatpush1.xpose.msra.mxu0 0.0
    %1690 = vmatprep.subr.mxu0 0.0
    %1691 = vmatpush1.xpose.msra.mxu0 0.0
    %1692 = vmatprep.subr.mxu0 0.0
    %1693 = vmatpush1.xpose.msra.mxu0 0.0
    %1694 = vmatprep.subr.mxu0 0.0
    %1695 = vmatpush1.xpose.msra.mxu0 0.0
    %1696 = vmatprep.subr.mxu0 0.0
    %1697 = vmatpush1.xpose.msra.mxu0 0.0
    %1698 = vmatprep.subr.mxu0 0.0
    %1699 = vmatpush1.xpose.msra.mxu0 0.0
    %1700 = vmatprep.subr.mxu0 0.0
    %1701 = vmatpush1.xpose.msra.mxu0 0.0
    %1702 = vmatprep.subr.mxu0 0.0
    %1703 = vmatpush1.xpose.msra.mxu0 0.0
    %1704 = vmatprep.subr.mxu0 0.0
    %1705 = vmatpush1.xpose.msra.mxu0 0.0
    %1706 = vmatprep.subr.mxu0 0.0
    %1707 = vmatpush1.xpose.msra.mxu0 0.0
    %1708 = vmatprep.subr.mxu0 0.0
    %1709 = vmatpush1.xpose.msra.mxu0 0.0
    %1710 = vmatprep.subr.mxu0 0.0
    %1711 = vmatpush1.xpose.msra.mxu0 0.0
    %1712 = vmatprep.subr.mxu0 0.0
    %1713 = vmatpush1.xpose.msra.mxu0 0.0
    %1714 = vmatprep.subr.mxu0 0.0
    %1715 = vmatpush1.xpose.msra.mxu0 0.0
    %1716 = vmatprep.subr.mxu0 0.0
    %1717 = vmatpush1.xpose.msra.mxu0 0.0
    %1718 = vmatprep.subr.mxu0 0.0
    %1719 = vmatpush1.xpose.msra.mxu0 0.0
    %1720 = vmatprep.subr.mxu0 0.0
    %1721 = vmatpush1.xpose.msra.mxu0 0.0
    %1722 = vmatprep.subr.mxu0 0.0
    %1723 = vmatpush1.xpose.msra.mxu0 0.0
    %1724 = vmatprep.subr.mxu0 0.0
    %1725 = vmatpush1.xpose.msra.mxu0 0.0
    %1726 = vmatprep.subr.mxu0 0.0
    %1727 = vmatpush1.xpose.msra.mxu0 0.0
    %1728 = vmatprep.subr.mxu0 0.0
    %1729 = vmatpush1.xpose.msra.mxu0 0.0
    %1730 = vmatprep.subr.mxu0 0.0
    %1731 = vmatpush1.xpose.msra.mxu0 0.0
    %1732 = vmatprep.subr.mxu0 0.0
    %1733 = vmatpush1.xpose.msra.mxu0 0.0
    %1734 = vmatprep.subr.mxu0 0.0
    %1735 = vmatpush1.xpose.msra.mxu0 0.0
    %1736 = vmatprep.subr.mxu0 0.0
    %1737 = vmatpush1.xpose.msra.mxu0 0.0
    %1738 = vmatprep.subr.mxu0 0.0
    %1739 = vmatpush1.xpose.msra.mxu0 0.0
    %1740 = vmatprep.subr.mxu0 0.0
    %1741 = vmatpush1.xpose.msra.mxu0 0.0
    %1742 = vmatprep.subr.mxu0 0.0
    %1743 = vmatpush1.xpose.msra.mxu0 0.0
    %1744 = vmatprep.subr.mxu0 0.0
    %1745 = vmatpush1.xpose.msra.mxu0 0.0
    %1746 = vmatprep.subr.mxu0 0.0
    %1747 = vmatpush1.xpose.msra.mxu0 0.0
    %1748 = vmatprep.mubr.f32.mxu0 0.0
    %1749 = vmatmul.mubr.f32.gmra.mrb[0].mxu0 %v1679
    %v1750 = vpop.f32.mrb[0].mxu0
    %v1751 = vadd.f32 0.0, %v1750
    %v1752 = vpop.f32.mrb[0].mxu0
    %1753 = vdwg.mxu0
    %v1754 = vmul.f32 %v1751, 0.25
    %v1755 = vadd.f32 %v1754, %v522
    %v1756 = vsel %vm524, %v1755, -inf
    %1757 = vmax.xlane.f32.xlu0 %v1756
    %v1758 = vpop.xlane.xlu0 %1757
    %v1759 = vsub.f32 %v1755, %v1758
    %v1760 = vmul.f32 %v1759, 1.442695
    %v1761 = vpow.pop %v1760
    %v1762 = vsel %vm524, %v1761, 0.0
    %1763 = vadd.xlane.f32.xlu0 %v1762
    %v1764 = vpop.xlane.xlu0 %1763
    %v1765 = vrcp.pop %v1764
    %v1766 = vmul.f32 %v1761, %v1765
    %v1768 = vsel %vm524, %v1766, 0
    %1770 = vmatprep.subr.mxu0 0.0
    %1771 = vmatpush1.msra.mxu0 %v1676
    %1772 = vmatprep.subr.mxu0 0.0
    %1773 = vmatpush1.msra.mxu0 0.0
    %1774 = vmatprep.subr.mxu0 0.0
    %1775 = vmatpush1.msra.mxu0 0.0
    %1776 = vmatprep.subr.mxu0 0.0
    %1777 = vmatpush1.msra.mxu0 0.0
    %1778 = vmatprep.subr.mxu0 0.0
    %1779 = vmatpush1.msra.mxu0 0.0
    %1780 = vmatprep.subr.mxu0 0.0
    %1781 = vmatpush1.msra.mxu0 0.0
    %1782 = vmatprep.subr.mxu0 0.0
    %1783 = vmatpush1.msra.mxu0 0.0
    %1784 = vmatprep.subr.mxu0 0.0
    %1785 = vmatpush1.msra.mxu0 0.0
    %1786 = vmatprep.subr.mxu0 0.0
    %1787 = vmatpush1.msra.mxu0 0.0
    %1788 = vmatprep.subr.mxu0 0.0
    %1789 = vmatpush1.msra.mxu0 0.0
    %1790 = vmatprep.subr.mxu0 0.0
    %1791 = vmatpush1.msra.mxu0 0.0
    %1792 = vmatprep.subr.mxu0 0.0
    %1793 = vmatpush1.msra.mxu0 0.0
    %1794 = vmatprep.subr.mxu0 0.0
    %1795 = vmatpush1.msra.mxu0 0.0
    %1796 = vmatprep.subr.mxu0 0.0
    %1797 = vmatpush1.msra.mxu0 0.0
    %1798 = vmatprep.subr.mxu0 0.0
    %1799 = vmatpush1.msra.mxu0 0.0
    %1800 = vmatprep.subr.mxu0 0.0
    %1801 = vmatpush1.msra.mxu0 0.0
    %1802 = vmatprep.subr.mxu0 0.0
    %1803 = vmatpush1.msra.mxu0 0.0
    %1804 = vmatprep.subr.mxu0 0.0
    %1805 = vmatpush1.msra.mxu0 0.0
    %1806 = vmatprep.subr.mxu0 0.0
    %1807 = vmatpush1.msra.mxu0 0.0
    %1808 = vmatprep.subr.mxu0 0.0
    %1809 = vmatpush1.msra.mxu0 0.0
    %1810 = vmatprep.subr.mxu0 0.0
    %1811 = vmatpush1.msra.mxu0 0.0
    %1812 = vmatprep.subr.mxu0 0.0
    %1813 = vmatpush1.msra.mxu0 0.0
    %1814 = vmatprep.subr.mxu0 0.0
    %1815 = vmatpush1.msra.mxu0 0.0
    %1816 = vmatprep.subr.mxu0 0.0
    %1817 = vmatpush1.msra.mxu0 0.0
    %1818 = vmatprep.subr.mxu0 0.0
    %1819 = vmatpush1.msra.mxu0 0.0
    %1820 = vmatprep.subr.mxu0 0.0
    %1821 = vmatpush1.msra.mxu0 0.0
    %1822 = vmatprep.subr.mxu0 0.0
    %1823 = vmatpush1.msra.mxu0 0.0
    %1824 = vmatprep.subr.mxu0 0.0
    %1825 = vmatpush1.msra.mxu0 0.0
    %1826 = vmatprep.subr.mxu0 0.0
    %1827 = vmatpush1.msra.mxu0 0.0
    %1828 = vmatprep.subr.mxu0 0.0
    %1829 = vmatpush1.msra.mxu0 0.0
    %1830 = vmatprep.subr.mxu0 0.0
    %1831 = vmatpush1.msra.mxu0 0.0
    %1832 = vmatprep.subr.mxu0 0.0
    %1833 = vmatpush1.msra.mxu0 0.0
    %1834 = vmatprep.mubr.f32.mxu0 0.0
    %1835 = vmatmul.mubr.f32.gmra.mrb[0].mxu0 %v1768
    %v1836 = vpop.f32.mrb[0].mxu0
    %v1837 = vadd.f32 0.0, %v1836
    %v1838 = vpop.f32.mrb[0].mxu0
    %1839 = vdwg.mxu0
    %1840 = vst.msk [vmem:[#allocation2] sm:$0xff] %vm441, %v1837
    %v1842 = vsel %vm441, %v1663, 0
    %v1845 = vsel %vm441, %v1670, 0
    %1847 = vmatprep.subr.mxu0 0.0
    %1848 = vmatpush1.xpose.msra.mxu0 %v1845
    %1849 = vmatprep.subr.mxu0 0.0
    %1850 = vmatpush1.xpose.msra.mxu0 0.0
    %1851 = vmatprep.subr.mxu0 0.0
    %1852 = vmatpush1.xpose.msra.mxu0 0.0
    %1853 = vmatprep.subr.mxu0 0.0
    %1854 = vmatpush1.xpose.msra.mxu0 0.0
    %1855 = vmatprep.subr.mxu0 0.0
    %1856 = vmatpush1.xpose.msra.mxu0 0.0
    %1857 = vmatprep.subr.mxu0 0.0
    %1858 = vmatpush1.xpose.msra.mxu0 0.0
    %1859 = vmatprep.subr.mxu0 0.0
    %1860 = vmatpush1.xpose.msra.mxu0 0.0
    %1861 = vmatprep.subr.mxu0 0.0
    %1862 = vmatpush1.xpose.msra.mxu0 0.0
    %1863 = vmatprep.subr.mxu0 0.0
    %1864 = vmatpush1.xpose.msra.mxu0 0.0
    %1865 = vmatprep.subr.mxu0 0.0
    %1866 = vmatpush1.xpose.msra.mxu0 0.0
    %1867 = vmatprep.subr.mxu0 0.0
    %1868 = vmatpush1.xpose.msra.mxu0 0.0
    %1869 = vmatprep.subr.mxu0 0.0
    %1870 = vmatpush1.xpose.msra.mxu0 0.0
    %1871 = vmatprep.subr.mxu0 0.0
    %1872 = vmatpush1.xpose.msra.mxu0 0.0
    %1873 = vmatprep.subr.mxu0 0.0
    %1874 = vmatpush1.xpose.msra.mxu0 0.0
    %1875 = vmatprep.subr.mxu0 0.0
    %1876 = vmatpush1.xpose.msra.mxu0 0.0
    %1877 = vmatprep.subr.mxu0 0.0
    %1878 = vmatpush1.xpose.msra.mxu0 0.0
    %1879 = vmatprep.subr.mxu0 0.0
    %1880 = vmatpush1.xpose.msra.mxu0 0.0
    %1881 = vmatprep.subr.mxu0 0.0
    %1882 = vmatpush1.xpose.msra.mxu0 0.0
    %1883 = vmatprep.subr.mxu0 0.0
    %1884 = vmatpush1.xpose.msra.mxu0 0.0
    %1885 = vmatprep.subr.mxu0 0.0
    %1886 = vmatpush1.xpose.msra.mxu0 0.0
    %1887 = vmatprep.subr.mxu0 0.0
    %1888 = vmatpush1.xpose.msra.mxu0 0.0
    %1889 = vmatprep.subr.mxu0 0.0
    %1890 = vmatpush1.xpose.msra.mxu0 0.0
    %1891 = vmatprep.subr.mxu0 0.0
    %1892 = vmatpush1.xpose.msra.mxu0 0.0
    %1893 = vmatprep.subr.mxu0 0.0
    %1894 = vmatpush1.xpose.msra.mxu0 0.0
    %1895 = vmatprep.subr.mxu0 0.0
    %1896 = vmatpush1.xpose.msra.mxu0 0.0
    %1897 = vmatprep.subr.mxu0 0.0
    %1898 = vmatpush1.xpose.msra.mxu0 0.0
    %1899 = vmatprep.subr.mxu0 0.0
    %1900 = vmatpush1.xpose.msra.mxu0 0.0
    %1901 = vmatprep.subr.mxu0 0.0
    %1902 = vmatpush1.xpose.msra.mxu0 0.0
    %1903 = vmatprep.subr.mxu0 0.0
    %1904 = vmatpush1.xpose.msra.mxu0 0.0
    %1905 = vmatprep.subr.mxu0 0.0
    %1906 = vmatpush1.xpose.msra.mxu0 0.0
    %1907 = vmatprep.subr.mxu0 0.0
    %1908 = vmatpush1.xpose.msra.mxu0 0.0
    %1909 = vmatprep.subr.mxu0 0.0
    %1910 = vmatpush1.xpose.msra.mxu0 0.0
    %1911 = vmatprep.mubr.f32.mxu0 0.0
    %1912 = vmatmul.mubr.f32.gmra.mrb[0].mxu0 %v1842
    %v1913 = vpop.f32.mrb[0].mxu0
    %v1914 = vadd.f32 0.0, %v1913
    %v1915 = vpop.f32.mrb[0].mxu0
    %1916 = vdwg.mxu0
    %v1917 = vmul.f32 %v1914, 0.25
    %v1918 = vadd.f32 %v1917, %v690
    %v1919 = vsel %vm524, %v1918, -inf
    %1920 = vmax.xlane.f32.xlu0 %v1919
    %v1921 = vpop.xlane.xlu0 %1920
    %v1922 = vsub.f32 %v1918, %v1921
    %v1923 = vmul.f32 %v1922, 1.442695
    %v1924 = vpow.pop %v1923
    %v1925 = vsel %vm524, %v1924, 0.0
    %1926 = vadd.xlane.f32.xlu0 %v1925
    %v1927 = vpop.xlane.xlu0 %1926
    %v1928 = vrcp.pop %v1927
    %v1929 = vmul.f32 %v1924, %v1928
    %v1931 = vsel %vm524, %v1929, 0
    %1933 = vmatprep.subr.mxu0 0.0
    %1934 = vmatpush1.msra.mxu0 %v1677
    %1935 = vmatprep.subr.mxu0 0.0
    %1936 = vmatpush1.msra.mxu0 0.0
    %1937 = vmatprep.subr.mxu0 0.0
    %1938 = vmatpush1.msra.mxu0 0.0
    %1939 = vmatprep.subr.mxu0 0.0
    %1940 = vmatpush1.msra.mxu0 0.0
    %1941 = vmatprep.subr.mxu0 0.0
    %1942 = vmatpush1.msra.mxu0 0.0
    %1943 = vmatprep.subr.mxu0 0.0
    %1944 = vmatpush1.msra.mxu0 0.0
    %1945 = vmatprep.subr.mxu0 0.0
    %1946 = vmatpush1.msra.mxu0 0.0
    %1947 = vmatprep.subr.mxu0 0.0
    %1948 = vmatpush1.msra.mxu0 0.0
    %1949 = vmatprep.subr.mxu0 0.0
    %1950 = vmatpush1.msra.mxu0 0.0
    %1951 = vmatprep.subr.mxu0 0.0
    %1952 = vmatpush1.msra.mxu0 0.0
    %1953 = vmatprep.subr.mxu0 0.0
    %1954 = vmatpush1.msra.mxu0 0.0
    %1955 = vmatprep.subr.mxu0 0.0
    %1956 = vmatpush1.msra.mxu0 0.0
    %1957 = vmatprep.subr.mxu0 0.0
    %1958 = vmatpush1.msra.mxu0 0.0
    %1959 = vmatprep.subr.mxu0 0.0
    %1960 = vmatpush1.msra.mxu0 0.0
    %1961 = vmatprep.subr.mxu0 0.0
    %1962 = vmatpush1.msra.mxu0 0.0
    %1963 = vmatprep.subr.mxu0 0.0
    %1964 = vmatpush1.msra.mxu0 0.0
    %1965 = vmatprep.subr.mxu0 0.0
    %1966 = vmatpush1.msra.mxu0 0.0
    %1967 = vmatprep.subr.mxu0 0.0
    %1968 = vmatpush1.msra.mxu0 0.0
    %1969 = vmatprep.subr.mxu0 0.0
    %1970 = vmatpush1.msra.mxu0 0.0
    %1971 = vmatprep.subr.mxu0 0.0
    %1972 = vmatpush1.msra.mxu0 0.0
    %1973 = vmatprep.subr.mxu0 0.0
    %1974 = vmatpush1.msra.mxu0 0.0
    %1975 = vmatprep.subr.mxu0 0.0
    %1976 = vmatpush1.msra.mxu0 0.0
    %1977 = vmatprep.subr.mxu0 0.0
    %1978 = vmatpush1.msra.mxu0 0.0
    %1979 = vmatprep.subr.mxu0 0.0
    %1980 = vmatpush1.msra.mxu0 0.0
    %1981 = vmatprep.subr.mxu0 0.0
    %1982 = vmatpush1.msra.mxu0 0.0
    %1983 = vmatprep.subr.mxu0 0.0
    %1984 = vmatpush1.msra.mxu0 0.0
    %1985 = vmatprep.subr.mxu0 0.0
    %1986 = vmatpush1.msra.mxu0 0.0
    %1987 = vmatprep.subr.mxu0 0.0
    %1988 = vmatpush1.msra.mxu0 0.0
    %1989 = vmatprep.subr.mxu0 0.0
    %1990 = vmatpush1.msra.mxu0 0.0
    %1991 = vmatprep.subr.mxu0 0.0
    %1992 = vmatpush1.msra.mxu0 0.0
    %1993 = vmatprep.subr.mxu0 0.0
    %1994 = vmatpush1.msra.mxu0 0.0
    %1995 = vmatprep.subr.mxu0 0.0
    %1996 = vmatpush1.msra.mxu0 0.0
    %1997 = vmatprep.mubr.f32.mxu0 0.0
    %1998 = vmatmul.mubr.f32.gmra.mrb[0].mxu0 %v1931
    %v1999 = vpop.f32.mrb[0].mxu0
    %v2000 = vadd.f32 0.0, %v1999
    %v2001 = vpop.f32.mrb[0].mxu0
    %2002 = vdwg.mxu0
    %2003 = vst.msk [vmem:[#allocation2 + $0x8] sm:$0xff] %vm441, %v2000
    %v2004 = vld [vmem:[%s3 + $0x22] sm:$0x1]
    %v2005 = vlaneseq
    %v2006 = vshrl.u32 %v2005, 7
    %v2007 = vsub.s32 0, %v2006
    %v2008 = vrot.slane %v2004, %v2007
    %v2009 = vadd.f32 %v1608, %v2008
    %v2010 = vadd.f32 %v1612, %v2008
    %v2011 = vld [vmem:[%s3 + $0x23] sm:$0x1]
    %v2012 = vlaneseq
    %v2013 = vshrl.u32 %v2012, 7
    %v2014 = vsub.s32 0, %v2013
    %v2015 = vrot.slane %v2011, %v2014
    %v2016 = vadd.f32 %v1649, %v2015
    %v2017 = vadd.f32 %v1653, %v2015
    %v2018 = vld [vmem:[%s3 + $0x24] sm:$0x1]
    %v2019 = vlaneseq
    %v2020 = vshrl.u32 %v2019, 7
    %v2021 = vsub.s32 0, %v2020
    %v2022 = vrot.slane %v2018, %v2021
    %v2023 = vadd.f32 %v1651, %v2022
    %v2024 = vadd.f32 %v1655, %v2022
    %v2026 = vsel %vm441, %v2009, 0
    %v2029 = vsel %vm441, %v2016, 0
    %2031 = vmatprep.subr.mxu0 0.0
    %2032 = vmatpush1.xpose.msra.mxu0 %v2029
    %2033 = vmatprep.subr.mxu0 0.0
    %2034 = vmatpush1.xpose.msra.mxu0 0.0
    %2035 = vmatprep.subr.mxu0 0.0
    %2036 = vmatpush1.xpose.msra.mxu0 0.0
    %2037 = vmatprep.subr.mxu0 0.0
    %2038 = vmatpush1.xpose.msra.mxu0 0.0
    %2039 = vmatprep.subr.mxu0 0.0
    %2040 = vmatpush1.xpose.msra.mxu0 0.0
    %2041 = vmatprep.subr.mxu0 0.0
    %2042 = vmatpush1.xpose.msra.mxu0 0.0
    %2043 = vmatprep.subr.mxu0 0.0
    %2044 = vmatpush1.xpose.msra.mxu0 0.0
    %2045 = vmatprep.subr.mxu0 0.0
    %2046 = vmatpush1.xpose.msra.mxu0 0.0
    %2047 = vmatprep.subr.mxu0 0.0
    %2048 = vmatpush1.xpose.msra.mxu0 0.0
    %2049 = vmatprep.subr.mxu0 0.0
    %2050 = vmatpush1.xpose.msra.mxu0 0.0
    %2051 = vmatprep.subr.mxu0 0.0
    %2052 = vmatpush1.xpose.msra.mxu0 0.0
    %2053 = vmatprep.subr.mxu0 0.0
    %2054 = vmatpush1.xpose.msra.mxu0 0.0
    %2055 = vmatprep.subr.mxu0 0.0
    %2056 = vmatpush1.xpose.msra.mxu0 0.0
    %2057 = vmatprep.subr.mxu0 0.0
    %2058 = vmatpush1.xpose.msra.mxu0 0.0
    %2059 = vmatprep.subr.mxu0 0.0
    %2060 = vmatpush1.xpose.msra.mxu0 0.0
    %2061 = vmatprep.subr.mxu0 0.0
    %2062 = vmatpush1.xpose.msra.mxu0 0.0
    %2063 = vmatprep.subr.mxu0 0.0
    %2064 = vmatpush1.xpose.msra.mxu0 0.0
    %2065 = vmatprep.subr.mxu0 0.0
    %2066 = vmatpush1.xpose.msra.mxu0 0.0
    %2067 = vmatprep.subr.mxu0 0.0
    %2068 = vmatpush1.xpose.msra.mxu0 0.0
    %2069 = vmatprep.subr.mxu0 0.0
    %2070 = vmatpush1.xpose.msra.mxu0 0.0
    %2071 = vmatprep.subr.mxu0 0.0
    %2072 = vmatpush1.xpose.msra.mxu0 0.0
    %2073 = vmatprep.subr.mxu0 0.0
    %2074 = vmatpush1.xpose.msra.mxu0 0.0
    %2075 = vmatprep.subr.mxu0 0.0
    %2076 = vmatpush1.xpose.msra.mxu0 0.0
    %2077 = vmatprep.subr.mxu0 0.0
    %2078 = vmatpush1.xpose.msra.mxu0 0.0
    %2079 = vmatprep.subr.mxu0 0.0
    %2080 = vmatpush1.xpose.msra.mxu0 0.0
    %2081 = vmatprep.subr.mxu0 0.0
    %2082 = vmatpush1.xpose.msra.mxu0 0.0
    %2083 = vmatprep.subr.mxu0 0.0
    %2084 = vmatpush1.xpose.msra.mxu0 0.0
    %2085 = vmatprep.subr.mxu0 0.0
    %2086 = vmatpush1.xpose.msra.mxu0 0.0
    %2087 = vmatprep.subr.mxu0 0.0
    %2088 = vmatpush1.xpose.msra.mxu0 0.0
    %2089 = vmatprep.subr.mxu0 0.0
    %2090 = vmatpush1.xpose.msra.mxu0 0.0
    %2091 = vmatprep.subr.mxu0 0.0
    %2092 = vmatpush1.xpose.msra.mxu0 0.0
    %2093 = vmatprep.subr.mxu0 0.0
    %2094 = vmatpush1.xpose.msra.mxu0 0.0
    %2095 = vmatprep.mubr.f32.mxu0 0.0
    %2096 = vmatmul.mubr.f32.gmra.mrb[0].mxu0 %v2026
    %v2097 = vpop.f32.mrb[0].mxu0
    %v2098 = vadd.f32 0.0, %v2097
    %v2099 = vpop.f32.mrb[0].mxu0
    %2100 = vdwg.mxu0
    %v2101 = vmul.f32 %v2098, 0.25
    %v2102 = vadd.f32 %v2101, %v522
    %v2103 = vsel %vm524, %v2102, -inf
    %2104 = vmax.xlane.f32.xlu0 %v2103
    %v2105 = vpop.xlane.xlu0 %2104
    %v2106 = vsub.f32 %v2102, %v2105
    %v2107 = vmul.f32 %v2106, 1.442695
    %v2108 = vpow.pop %v2107
    %v2109 = vsel %vm524, %v2108, 0.0
    %2110 = vadd.xlane.f32.xlu0 %v2109
    %v2111 = vpop.xlane.xlu0 %2110
    %v2112 = vrcp.pop %v2111
    %v2113 = vmul.f32 %v2108, %v2112
    %v2115 = vsel %vm524, %v2113, 0
    %2117 = vmatprep.subr.mxu0 0.0
    %2118 = vmatpush1.msra.mxu0 %v2023
    %2119 = vmatprep.subr.mxu0 0.0
    %2120 = vmatpush1.msra.mxu0 0.0
    %2121 = vmatprep.subr.mxu0 0.0
    %2122 = vmatpush1.msra.mxu0 0.0
    %2123 = vmatprep.subr.mxu0 0.0
    %2124 = vmatpush1.msra.mxu0 0.0
    %2125 = vmatprep.subr.mxu0 0.0
    %2126 = vmatpush1.msra.mxu0 0.0
    %2127 = vmatprep.subr.mxu0 0.0
    %2128 = vmatpush1.msra.mxu0 0.0
    %2129 = vmatprep.subr.mxu0 0.0
    %2130 = vmatpush1.msra.mxu0 0.0
    %2131 = vmatprep.subr.mxu0 0.0
    %2132 = vmatpush1.msra.mxu0 0.0
    %2133 = vmatprep.subr.mxu0 0.0
    %2134 = vmatpush1.msra.mxu0 0.0
    %2135 = vmatprep.subr.mxu0 0.0
    %2136 = vmatpush1.msra.mxu0 0.0
    %2137 = vmatprep.subr.mxu0 0.0
    %2138 = vmatpush1.msra.mxu0 0.0
    %2139 = vmatprep.subr.mxu0 0.0
    %2140 = vmatpush1.msra.mxu0 0.0
    %2141 = vmatprep.subr.mxu0 0.0
    %2142 = vmatpush1.msra.mxu0 0.0
    %2143 = vmatprep.subr.mxu0 0.0
    %2144 = vmatpush1.msra.mxu0 0.0
    %2145 = vmatprep.subr.mxu0 0.0
    %2146 = vmatpush1.msra.mxu0 0.0
    %2147 = vmatprep.subr.mxu0 0.0
    %2148 = vmatpush1.msra.mxu0 0.0
    %2149 = vmatprep.subr.mxu0 0.0
    %2150 = vmatpush1.msra.mxu0 0.0
    %2151 = vmatprep.subr.mxu0 0.0
    %2152 = vmatpush1.msra.mxu0 0.0
    %2153 = vmatprep.subr.mxu0 0.0
    %2154 = vmatpush1.msra.mxu0 0.0
    %2155 = vmatprep.subr.mxu0 0.0
    %2156 = vmatpush1.msra.mxu0 0.0
    %2157 = vmatprep.subr.mxu0 0.0
    %2158 = vmatpush1.msra.mxu0 0.0
    %2159 = vmatprep.subr.mxu0 0.0
    %2160 = vmatpush1.msra.mxu0 0.0
    %2161 = vmatprep.subr.mxu0 0.0
    %2162 = vmatpush1.msra.mxu0 0.0
    %2163 = vmatprep.subr.mxu0 0.0
    %2164 = vmatpush1.msra.mxu0 0.0
    %2165 = vmatprep.subr.mxu0 0.0
    %2166 = vmatpush1.msra.mxu0 0.0
    %2167 = vmatprep.subr.mxu0 0.0
    %2168 = vmatpush1.msra.mxu0 0.0
    %2169 = vmatprep.subr.mxu0 0.0
    %2170 = vmatpush1.msra.mxu0 0.0
    %2171 = vmatprep.subr.mxu0 0.0
    %2172 = vmatpush1.msra.mxu0 0.0
    %2173 = vmatprep.subr.mxu0 0.0
    %2174 = vmatpush1.msra.mxu0 0.0
    %2175 = vmatprep.subr.mxu0 0.0
    %2176 = vmatpush1.msra.mxu0 0.0
    %2177 = vmatprep.subr.mxu0 0.0
    %2178 = vmatpush1.msra.mxu0 0.0
    %2179 = vmatprep.subr.mxu0 0.0
    %2180 = vmatpush1.msra.mxu0 0.0
    %2181 = vmatprep.mubr.f32.mxu0 0.0
    %2182 = vmatmul.mubr.f32.gmra.mrb[0].mxu0 %v2115
    %v2183 = vpop.f32.mrb[0].mxu0
    %v2184 = vadd.f32 0.0, %v2183
    %v2185 = vpop.f32.mrb[0].mxu0
    %2186 = vdwg.mxu0
    %2188 = vrot.lane.b32.xlu0 %v2184, 16
    %v2189 = vpop.permute.xlu0 %2188
    %2191 = vst.msk [vmem:[#allocation2] sm:$0xff] %vm964, %v2189
    %v2193 = vsel %vm441, %v2010, 0
    %v2196 = vsel %vm441, %v2017, 0
    %2198 = vmatprep.subr.mxu0 0.0
    %2199 = vmatpush1.xpose.msra.mxu0 %v2196
    %2200 = vmatprep.subr.mxu0 0.0
    %2201 = vmatpush1.xpose.msra.mxu0 0.0
    %2202 = vmatprep.subr.mxu0 0.0
    %2203 = vmatpush1.xpose.msra.mxu0 0.0
    %2204 = vmatprep.subr.mxu0 0.0
    %2205 = vmatpush1.xpose.msra.mxu0 0.0
    %2206 = vmatprep.subr.mxu0 0.0
    %2207 = vmatpush1.xpose.msra.mxu0 0.0
    %2208 = vmatprep.subr.mxu0 0.0
    %2209 = vmatpush1.xpose.msra.mxu0 0.0
    %2210 = vmatprep.subr.mxu0 0.0
    %2211 = vmatpush1.xpose.msra.mxu0 0.0
    %2212 = vmatprep.subr.mxu0 0.0
    %2213 = vmatpush1.xpose.msra.mxu0 0.0
    %2214 = vmatprep.subr.mxu0 0.0
    %2215 = vmatpush1.xpose.msra.mxu0 0.0
    %2216 = vmatprep.subr.mxu0 0.0
    %2217 = vmatpush1.xpose.msra.mxu0 0.0
    %2218 = vmatprep.subr.mxu0 0.0
    %2219 = vmatpush1.xpose.msra.mxu0 0.0
    %2220 = vmatprep.subr.mxu0 0.0
    %2221 = vmatpush1.xpose.msra.mxu0 0.0
    %2222 = vmatprep.subr.mxu0 0.0
    %2223 = vmatpush1.xpose.msra.mxu0 0.0
    %2224 = vmatprep.subr.mxu0 0.0
    %2225 = vmatpush1.xpose.msra.mxu0 0.0
    %2226 = vmatprep.subr.mxu0 0.0
    %2227 = vmatpush1.xpose.msra.mxu0 0.0
    %2228 = vmatprep.subr.mxu0 0.0
    %2229 = vmatpush1.xpose.msra.mxu0 0.0
    %2230 = vmatprep.subr.mxu0 0.0
    %2231 = vmatpush1.xpose.msra.mxu0 0.0
    %2232 = vmatprep.subr.mxu0 0.0
    %2233 = vmatpush1.xpose.msra.mxu0 0.0
    %2234 = vmatprep.subr.mxu0 0.0
    %2235 = vmatpush1.xpose.msra.mxu0 0.0
    %2236 = vmatprep.subr.mxu0 0.0
    %2237 = vmatpush1.xpose.msra.mxu0 0.0
    %2238 = vmatprep.subr.mxu0 0.0
    %2239 = vmatpush1.xpose.msra.mxu0 0.0
    %2240 = vmatprep.subr.mxu0 0.0
    %2241 = vmatpush1.xpose.msra.mxu0 0.0
    %2242 = vmatprep.subr.mxu0 0.0
    %2243 = vmatpush1.xpose.msra.mxu0 0.0
    %2244 = vmatprep.subr.mxu0 0.0
    %2245 = vmatpush1.xpose.msra.mxu0 0.0
    %2246 = vmatprep.subr.mxu0 0.0
    %2247 = vmatpush1.xpose.msra.mxu0 0.0
    %2248 = vmatprep.subr.mxu0 0.0
    %2249 = vmatpush1.xpose.msra.mxu0 0.0
    %2250 = vmatprep.subr.mxu0 0.0
    %2251 = vmatpush1.xpose.msra.mxu0 0.0
    %2252 = vmatprep.subr.mxu0 0.0
    %2253 = vmatpush1.xpose.msra.mxu0 0.0
    %2254 = vmatprep.subr.mxu0 0.0
    %2255 = vmatpush1.xpose.msra.mxu0 0.0
    %2256 = vmatprep.subr.mxu0 0.0
    %2257 = vmatpush1.xpose.msra.mxu0 0.0
    %2258 = vmatprep.subr.mxu0 0.0
    %2259 = vmatpush1.xpose.msra.mxu0 0.0
    %2260 = vmatprep.subr.mxu0 0.0
    %2261 = vmatpush1.xpose.msra.mxu0 0.0
    %2262 = vmatprep.mubr.f32.mxu0 0.0
    %2263 = vmatmul.mubr.f32.gmra.mrb[0].mxu0 %v2193
    %v2264 = vpop.f32.mrb[0].mxu0
    %v2265 = vadd.f32 0.0, %v2264
    %v2266 = vpop.f32.mrb[0].mxu0
    %2267 = vdwg.mxu0
    %v2268 = vmul.f32 %v2265, 0.25
    %v2269 = vadd.f32 %v2268, %v690
    %v2270 = vsel %vm524, %v2269, -inf
    %2271 = vmax.xlane.f32.xlu0 %v2270
    %v2272 = vpop.xlane.xlu0 %2271
    %v2273 = vsub.f32 %v2269, %v2272
    %v2274 = vmul.f32 %v2273, 1.442695
    %v2275 = vpow.pop %v2274
    %v2276 = vsel %vm524, %v2275, 0.0
    %2277 = vadd.xlane.f32.xlu0 %v2276
    %v2278 = vpop.xlane.xlu0 %2277
    %v2279 = vrcp.pop %v2278
    %v2280 = vmul.f32 %v2275, %v2279
    %v2282 = vsel %vm524, %v2280, 0
    %2284 = vmatprep.subr.mxu0 0.0
    %2285 = vmatpush1.msra.mxu0 %v2024
    %2286 = vmatprep.subr.mxu0 0.0
    %2287 = vmatpush1.msra.mxu0 0.0
    %2288 = vmatprep.subr.mxu0 0.0
    %2289 = vmatpush1.msra.mxu0 0.0
    %2290 = vmatprep.subr.mxu0 0.0
    %2291 = vmatpush1.msra.mxu0 0.0
    %2292 = vmatprep.subr.mxu0 0.0
    %2293 = vmatpush1.msra.mxu0 0.0
    %2294 = vmatprep.subr.mxu0 0.0
    %2295 = vmatpush1.msra.mxu0 0.0
    %2296 = vmatprep.subr.mxu0 0.0
    %2297 = vmatpush1.msra.mxu0 0.0
    %2298 = vmatprep.subr.mxu0 0.0
    %2299 = vmatpush1.msra.mxu0 0.0
    %2300 = vmatprep.subr.mxu0 0.0
    %2301 = vmatpush1.msra.mxu0 0.0
    %2302 = vmatprep.subr.mxu0 0.0
    %2303 = vmatpush1.msra.mxu0 0.0
    %2304 = vmatprep.subr.mxu0 0.0
    %2305 = vmatpush1.msra.mxu0 0.0
    %2306 = vmatprep.subr.mxu0 0.0
    %2307 = vmatpush1.msra.mxu0 0.0
    %2308 = vmatprep.subr.mxu0 0.0
    %2309 = vmatpush1.msra.mxu0 0.0
    %2310 = vmatprep.subr.mxu0 0.0
    %2311 = vmatpush1.msra.mxu0 0.0
    %2312 = vmatprep.subr.mxu0 0.0
    %2313 = vmatpush1.msra.mxu0 0.0
    %2314 = vmatprep.subr.mxu0 0.0
    %2315 = vmatpush1.msra.mxu0 0.0
    %2316 = vmatprep.subr.mxu0 0.0
    %2317 = vmatpush1.msra.mxu0 0.0
    %2318 = vmatprep.subr.mxu0 0.0
    %2319 = vmatpush1.msra.mxu0 0.0
    %2320 = vmatprep.subr.mxu0 0.0
    %2321 = vmatpush1.msra.mxu0 0.0
    %2322 = vmatprep.subr.mxu0 0.0
    %2323 = vmatpush1.msra.mxu0 0.0
    %2324 = vmatprep.subr.mxu0 0.0
    %2325 = vmatpush1.msra.mxu0 0.0
    %2326 = vmatprep.subr.mxu0 0.0
    %2327 = vmatpush1.msra.mxu0 0.0
    %2328 = vmatprep.subr.mxu0 0.0
    %2329 = vmatpush1.msra.mxu0 0.0
    %2330 = vmatprep.subr.mxu0 0.0
    %2331 = vmatpush1.msra.mxu0 0.0
    %2332 = vmatprep.subr.mxu0 0.0
    %2333 = vmatpush1.msra.mxu0 0.0
    %2334 = vmatprep.subr.mxu0 0.0
    %2335 = vmatpush1.msra.mxu0 0.0
    %2336 = vmatprep.subr.mxu0 0.0
    %2337 = vmatpush1.msra.mxu0 0.0
    %2338 = vmatprep.subr.mxu0 0.0
    %2339 = vmatpush1.msra.mxu0 0.0
    %2340 = vmatprep.subr.mxu0 0.0
    %2341 = vmatpush1.msra.mxu0 0.0
    %2342 = vmatprep.subr.mxu0 0.0
    %2343 = vmatpush1.msra.mxu0 0.0
    %2344 = vmatprep.subr.mxu0 0.0
    %2345 = vmatpush1.msra.mxu0 0.0
    %2346 = vmatprep.subr.mxu0 0.0
    %2347 = vmatpush1.msra.mxu0 0.0
    %2348 = vmatprep.mubr.f32.mxu0 0.0
    %2349 = vmatmul.mubr.f32.gmra.mrb[0].mxu0 %v2282
    %v2350 = vpop.f32.mrb[0].mxu0
    %v2351 = vadd.f32 0.0, %v2350
    %v2352 = vpop.f32.mrb[0].mxu0
    %2353 = vdwg.mxu0
    %2355 = vrot.lane.b32.xlu0 %v2351, 16
    %v2356 = vpop.permute.xlu0 %2355
    %2358 = vst.msk [vmem:[#allocation2 + $0x8] sm:$0xff] %vm964, %v2356
    %v2359 = vld [vmem:[#allocation6 + $0x40] sm:$0xf]
    %v2360 = vld [vmem:[#allocation6 + $0x44] sm:$0xf]
    %v2361 = vld [vmem:[#allocation6 + $0x48] sm:$0xf]
    %v2362 = vld [vmem:[#allocation6 + $0x4c] sm:$0xf]
    %v2363 = vld [vmem:[#allocation2] sm:$0xff]
    %v2364 = vld [vmem:[#allocation2 + $0x8] sm:$0xff]
    %v2365 = vpack.c.bf16 %v2364, %v2363
    %v2366 = vld [vmem:[%s3 + $0x25] sm:$0x1]
    %v2367 = vlaneseq
    %v2368 = vshrl.u32 %v2367, 7
    %v2369 = vsub.s32 0, %v2368
    %v2370 = vrot.slane %v2366, %v2369
    %v2375 = vunpack.c.l.b16 %v2359
    %v2376 = vunpack.c.l.b16 %v2360
    %v2377 = vunpack.c.l.b16 %v2361
    %v2378 = vunpack.c.l.b16 %v2362
    %v2379 = vpack.c.b16 %v2376, %v2375
    %v2380 = vpack.c.b16 %v2378, %v2377
    %v2384 = vsel %vm171, %v2365, 0
    %2386 = vmatprep.subr.bf16.mxu0 0
    %2387 = vmatpush1.bf16.msra.mxu0 %v2379
    %2388 = vmatprep.subr.bf16.mxu0 0
    %2389 = vmatpush1.bf16.msra.mxu0 %v2380
    %2390 = vmatprep.subr.bf16.mxu0 0
    %2391 = vmatpush1.bf16.msra.mxu0 0
    %2392 = vmatprep.subr.bf16.mxu0 0
    %2393 = vmatpush1.bf16.msra.mxu0 0
    %2394 = vmatprep.subr.bf16.mxu0 0
    %2395 = vmatpush1.bf16.msra.mxu0 0
    %2396 = vmatprep.subr.bf16.mxu0 0
    %2397 = vmatpush1.bf16.msra.mxu0 0
    %2398 = vmatprep.subr.bf16.mxu0 0
    %2399 = vmatpush1.bf16.msra.mxu0 0
    %2400 = vmatprep.subr.bf16.mxu0 0
    %2401 = vmatpush1.bf16.msra.mxu0 0
    %2402 = vmatprep.subr.bf16.mxu0 0
    %2403 = vmatpush1.bf16.msra.mxu0 0
    %2404 = vmatprep.subr.bf16.mxu0 0
    %2405 = vmatpush1.bf16.msra.mxu0 0
    %2406 = vmatprep.subr.bf16.mxu0 0
    %2407 = vmatpush1.bf16.msra.mxu0 0
    %2408 = vmatprep.subr.bf16.mxu0 0
    %2409 = vmatpush1.bf16.msra.mxu0 0
    %2410 = vmatprep.subr.bf16.mxu0 0
    %2411 = vmatpush1.bf16.msra.mxu0 0
    %2412 = vmatprep.subr.bf16.mxu0 0
    %2413 = vmatpush1.bf16.msra.mxu0 0
    %2414 = vmatprep.subr.bf16.mxu0 0
    %2415 = vmatpush1.bf16.msra.mxu0 0
    %2416 = vmatprep.subr.bf16.mxu0 0
    %2417 = vmatpush1.bf16.msra.mxu0 0
    %2418 = vmatprep.mubr.bf16.mxu0 0
    %2419 = vmatmul.mubr.bf16.gmra.mrb[0].mxu0 %v2384
    %v2420 = vpop.f32.mrb[0].mxu0
    %v2421 = vadd.f32 %v2370, %v2420
    %v2422 = vpop.f32.mrb[0].mxu0
    %v2423 = vpop.f32.mrb[0].mxu0
    %v2424 = vadd.f32 %v2370, %v2423
    %v2425 = vpop.f32.mrb[0].mxu0
    %2426 = vdwg.mxu0
    %v2427 = vadd.f32 %v1450, %v2421
    %v2428 = vadd.f32 %v1451, %v2424
    %v2429 = vld [vmem:[%s3 + $0x26] sm:$0x1]
    %v2430 = vld [vmem:[%s3 + $0x27] sm:$0x1]
    %v2431 = vsel %vm171, %v2427, 0.0
    %2432 = vadd.xlane.f32.xlu0 %v2431
    %v2433 = vpop.xlane.xlu0 %2432
    %v2434 = vsel %vm171, %v2428, 0.0
    %2435 = vadd.xlane.f32.xlu0 %v2434
    %v2436 = vpop.xlane.xlu0 %2435
    %v2437 = vmul.f32 %v2433, %v178
    %v2438 = vmul.f32 %v2436, %v178
    %v2439 = vsub.f32 %v2427, %v2437
    %v2440 = vsub.f32 %v2428, %v2438
    %v2441 = vmul.f32 %v2439, %v2439
    %v2442 = vmul.f32 %v2440, %v2440
    %v2443 = vsel %vm171, %v2441, 0.0
    %2444 = vadd.xlane.f32.xlu0 %v2443
    %v2445 = vpop.xlane.xlu0 %2444
    %v2446 = vsel %vm171, %v2442, 0.0
    %2447 = vadd.xlane.f32.xlu0 %v2446
    %v2448 = vpop.xlane.xlu0 %2447
    %v2449 = vmul.f32 %v2445, %v178
    %v2450 = vmul.f32 %v2448, %v178
    %v2451 = vadd.f32 %v2449, 1e-12
    %v2452 = vadd.f32 %v2450, 1e-12
    %v2453 = vrsqrt.pop %v2451
    %v2454 = vrsqrt.pop %v2452
    %v2455 = vmul.f32 %v2439, %v2453
    %v2456 = vmul.f32 %v2440, %v2454
    %v2457 = vlaneseq
    %v2458 = vshrl.u32 %v2457, 7
    %v2459 = vsub.s32 0, %v2458
    %v2460 = vrot.slane %v2429, %v2459
    %v2461 = vmul.f32 %v2455, %v2460
    %v2462 = vmul.f32 %v2456, %v2460
    %v2463 = vlaneseq
    %v2464 = vshrl.u32 %v2463, 7
    %v2465 = vsub.s32 0, %v2464
    %v2466 = vrot.slane %v2430, %v2465
    %v2467 = vadd.f32 %v2461, %v2466
    %v2468 = vadd.f32 %v2462, %v2466
    %v2469 = vld [vmem:[#allocation6 + $0x50] sm:$0xf]
    %v2470 = vld [vmem:[#allocation6 + $0x54] sm:$0xf]
    %v2471 = vld [vmem:[#allocation6 + $0x58] sm:$0xf]
    %v2472 = vld [vmem:[#allocation6 + $0x5c] sm:$0xf]
    %v2473 = vpack.c.bf16 %v2468, %v2467
    %v2474 = vld [vmem:[%s3 + $0x28] sm:$0x1]
    %v2475 = vlaneseq
    %v2476 = vshrl.u32 %v2475, 7
    %v2477 = vsub.s32 0, %v2476
    %v2478 = vrot.slane %v2474, %v2477
    %v2483 = vunpack.c.l.b16 %v2469
    %v2484 = vunpack.c.l.b16 %v2470
    %v2485 = vunpack.c.l.b16 %v2471
    %v2486 = vunpack.c.l.b16 %v2472
    %v2487 = vpack.c.b16 %v2484, %v2483
    %v2488 = vpack.c.b16 %v2486, %v2485
    %v2492 = vsel %vm171, %v2473, 0
    %2494 = vmatprep.subr.bf16.mxu0 0
    %2495 = vmatpush1.bf16.msra.mxu0 %v2487
    %2496 = vmatprep.subr.bf16.mxu0 0
    %2497 = vmatpush1.bf16.msra.mxu0 %v2488
    %2498 = vmatprep.subr.bf16.mxu0 0
    %2499 = vmatpush1.bf16.msra.mxu0 0
    %2500 = vmatprep.subr.bf16.mxu0 0
    %2501 = vmatpush1.bf16.msra.mxu0 0
    %2502 = vmatprep.subr.bf16.mxu0 0
    %2503 = vmatpush1.bf16.msra.mxu0 0
    %2504 = vmatprep.subr.bf16.mxu0 0
    %2505 = vmatpush1.bf16.msra.mxu0 0
    %2506 = vmatprep.subr.bf16.mxu0 0
    %2507 = vmatpush1.bf16.msra.mxu0 0
    %2508 = vmatprep.subr.bf16.mxu0 0
    %2509 = vmatpush1.bf16.msra.mxu0 0
    %2510 = vmatprep.subr.bf16.mxu0 0
    %2511 = vmatpush1.bf16.msra.mxu0 0
    %2512 = vmatprep.subr.bf16.mxu0 0
    %2513 = vmatpush1.bf16.msra.mxu0 0
    %2514 = vmatprep.subr.bf16.mxu0 0
    %2515 = vmatpush1.bf16.msra.mxu0 0
    %2516 = vmatprep.subr.bf16.mxu0 0
    %2517 = vmatpush1.bf16.msra.mxu0 0
    %2518 = vmatprep.subr.bf16.mxu0 0
    %2519 = vmatpush1.bf16.msra.mxu0 0
    %2520 = vmatprep.subr.bf16.mxu0 0
    %2521 = vmatpush1.bf16.msra.mxu0 0
    %2522 = vmatprep.subr.bf16.mxu0 0
    %2523 = vmatpush1.bf16.msra.mxu0 0
    %2524 = vmatprep.subr.bf16.mxu0 0
    %2525 = vmatpush1.bf16.msra.mxu0 0
    %2526 = vmatprep.mubr.bf16.mxu0 0
    %2527 = vmatmul.mubr.bf16.gmra.mrb[0].mxu0 %v2492
    %v2528 = vpop.f32.mrb[0].mxu0
    %v2529 = vadd.f32 %v2478, %v2528
    %v2530 = vpop.f32.mrb[0].mxu0
    %v2531 = vpop.f32.mrb[0].mxu0
    %v2532 = vadd.f32 %v2478, %v2531
    %v2533 = vpop.f32.mrb[0].mxu0
    %2534 = vdwg.mxu0
    %v2535 = vmul.f32 %v2529, 0.5
    %v2536 = vmul.f32 %v2532, 0.5
    %v2537 = vmul.f32 %v2529, 0.044715
    %v2538 = vmul.f32 %v2532, 0.044715
    %v2539 = vmul.f32 %v2537, %v2529
    %v2540 = vmul.f32 %v2538, %v2532
    %v2541 = vmul.f32 %v2539, %v2529
    %v2542 = vmul.f32 %v2540, %v2532
    %v2543 = vadd.f32 %v2529, %v2541
    %v2544 = vadd.f32 %v2532, %v2542
    %v2545 = vmul.f32 %v2543, 0.7978846
    %v2546 = vmul.f32 %v2544, 0.7978846
    %v2547 = vtanh.pop %v2545
    %v2548 = vtanh.pop %v2546
    %v2549 = vadd.f32 %v2547, 1.0
    %v2550 = vadd.f32 %v2548, 1.0
    %v2551 = vmul.f32 %v2535, %v2549
    %v2552 = vmul.f32 %v2536, %v2550
    %v2553 = vld [vmem:[#allocation6 + $0x60] sm:$0xf]
    %v2554 = vld [vmem:[#allocation6 + $0x64] sm:$0xf]
    %v2555 = vld [vmem:[#allocation6 + $0x68] sm:$0xf]
    %v2556 = vld [vmem:[#allocation6 + $0x6c] sm:$0xf]
    %v2557 = vld [vmem:[#allocation6 + $0x70] sm:$0xf]
    %v2558 = vld [vmem:[#allocation6 + $0x74] sm:$0xf]
    %v2559 = vld [vmem:[#allocation6 + $0x78] sm:$0xf]
    %v2560 = vld [vmem:[#allocation6 + $0x7c] sm:$0xf]
    %v2561 = vpack.c.bf16 %v2552, %v2551
    %v2562 = vld [vmem:[%s3 + $0x29] sm:$0x1]
    %v2563 = vlaneseq
    %v2564 = vshrl.u32 %v2563, 7
    %v2565 = vsub.s32 0, %v2564
    %v2566 = vrot.slane %v2562, %v2565
    %v2575 = vunpack.c.l.b16 %v2553
    %v2576 = vunpack.c.l.b16 %v2554
    %v2577 = vunpack.c.l.b16 %v2555
    %v2578 = vunpack.c.l.b16 %v2556
    %v2579 = vunpack.c.l.b16 %v2557
    %v2580 = vunpack.c.l.b16 %v2558
    %v2581 = vunpack.c.l.b16 %v2559
    %v2582 = vunpack.c.l.b16 %v2560
    %v2583 = vpack.c.b16 %v2576, %v2575
    %v2584 = vpack.c.b16 %v2578, %v2577
    %v2585 = vpack.c.b16 %v2580, %v2579
    %v2586 = vpack.c.b16 %v2582, %v2581
    %v2592 = vsel %vm1365, %v2561, 0
    %2594 = vmatprep.subr.bf16.mxu0 0
    %2595 = vmatpush1.bf16.msra.mxu0 %v2583
    %2596 = vmatprep.subr.bf16.mxu0 0
    %2597 = vmatpush1.bf16.msra.mxu0 %v2584
    %2598 = vmatprep.subr.bf16.mxu0 0
    %2599 = vmatpush1.bf16.msra.mxu0 %v2585
    %2600 = vmatprep.subr.bf16.mxu0 0
    %2601 = vmatpush1.bf16.msra.mxu0 %v2586
    %2602 = vmatprep.subr.bf16.mxu0 0
    %2603 = vmatpush1.bf16.msra.mxu0 0
    %2604 = vmatprep.subr.bf16.mxu0 0
    %2605 = vmatpush1.bf16.msra.mxu0 0
    %2606 = vmatprep.subr.bf16.mxu0 0
    %2607 = vmatpush1.bf16.msra.mxu0 0
    %2608 = vmatprep.subr.bf16.mxu0 0
    %2609 = vmatpush1.bf16.msra.mxu0 0
    %2610 = vmatprep.subr.bf16.mxu0 0
    %2611 = vmatpush1.bf16.msra.mxu0 0
    %2612 = vmatprep.subr.bf16.mxu0 0
    %2613 = vmatpush1.bf16.msra.mxu0 0
    %2614 = vmatprep.subr.bf16.mxu0 0
    %2615 = vmatpush1.bf16.msra.mxu0 0
    %2616 = vmatprep.subr.bf16.mxu0 0
    %2617 = vmatpush1.bf16.msra.mxu0 0
    %2618 = vmatprep.subr.bf16.mxu0 0
    %2619 = vmatpush1.bf16.msra.mxu0 0
    %2620 = vmatprep.subr.bf16.mxu0 0
    %2621 = vmatpush1.bf16.msra.mxu0 0
    %2622 = vmatprep.subr.bf16.mxu0 0
    %2623 = vmatpush1.bf16.msra.mxu0 0
    %2624 = vmatprep.subr.bf16.mxu0 0
    %2625 = vmatpush1.bf16.msra.mxu0 0
    %2626 = vmatprep.mubr.bf16.mxu0 0
    %2627 = vmatmul.mubr.bf16.gmra.mrb[0].mxu0 %v2592
    %v2628 = vpop.f32.mrb[0].mxu0
    %v2629 = vadd.f32 %v2566, %v2628
    %v2630 = vpop.f32.mrb[0].mxu0
    %v2631 = vpop.f32.mrb[0].mxu0
    %v2632 = vadd.f32 %v2566, %v2631
    %v2633 = vpop.f32.mrb[0].mxu0
    %2634 = vdwg.mxu0
    %v2635 = vadd.f32 %v2467, %v2629
    %v2636 = vadd.f32 %v2468, %v2632
    %v2637 = vld [vmem:[%s3 + $0x2a] sm:$0x1]
    %v2638 = vld [vmem:[%s3 + $0x2b] sm:$0x1]
    %v2639 = vsel %vm171, %v2635, 0.0
    %2640 = vadd.xlane.f32.xlu0 %v2639
    %v2641 = vpop.xlane.xlu0 %2640
    %v2642 = vsel %vm171, %v2636, 0.0
    %2643 = vadd.xlane.f32.xlu0 %v2642
    %v2644 = vpop.xlane.xlu0 %2643
    %v2645 = vmul.f32 %v2641, %v178
    %v2646 = vmul.f32 %v2644, %v178
    %v2647 = vsub.f32 %v2635, %v2645
    %v2648 = vsub.f32 %v2636, %v2646
    %v2649 = vmul.f32 %v2647, %v2647
    %v2650 = vmul.f32 %v2648, %v2648
    %v2651 = vsel %vm171, %v2649, 0.0
    %2652 = vadd.xlane.f32.xlu0 %v2651
    %v2653 = vpop.xlane.xlu0 %2652
    %v2654 = vsel %vm171, %v2650, 0.0
    %2655 = vadd.xlane.f32.xlu0 %v2654
    %v2656 = vpop.xlane.xlu0 %2655
    %v2657 = vmul.f32 %v2653, %v178
    %v2658 = vmul.f32 %v2656, %v178
    %v2659 = vadd.f32 %v2657, 1e-12
    %v2660 = vadd.f32 %v2658, 1e-12
    %v2661 = vrsqrt.pop %v2659
    %v2662 = vrsqrt.pop %v2660
    %v2663 = vmul.f32 %v2647, %v2661
    %v2664 = vmul.f32 %v2648, %v2662
    %v2665 = vlaneseq
    %v2666 = vshrl.u32 %v2665, 7
    %v2667 = vsub.s32 0, %v2666
    %v2668 = vrot.slane %v2637, %v2667
    %v2669 = vmul.f32 %v2663, %v2668
    %v2670 = vmul.f32 %v2664, %v2668
    %v2671 = vlaneseq
    %v2672 = vshrl.u32 %v2671, 7
    %v2673 = vsub.s32 0, %v2672
    %v2674 = vrot.slane %v2638, %v2673
    %v2675 = vadd.f32 %v2669, %v2674
    %v2676 = vadd.f32 %v2670, %v2674
    %2677 = vst.msk [vmem:[#allocation2] sm:$0xff] %vm171, %v2675
    %2678 = vst.msk [vmem:[#allocation2 + $0x8] sm:$0xff] %vm171, %v2676
    %v2679 = vld [vmem:[#allocation2] ss:$8 sm:$0x3]
    %v2680 = vld [vmem:[#allocation6 + $0x80] sm:$0xf]
    %v2681 = vld [vmem:[#allocation6 + $0x84] sm:$0xf]
    %v2682 = vld [vmem:[#allocation6 + $0x88] sm:$0xf]
    %v2683 = vld [vmem:[#allocation6 + $0x8c] sm:$0xf]
    %v2684 = vpack.c.bf16 %v2679, %v2679
    %v2685 = vld [vmem:[%s3 + $0x2c] sm:$0x1]
    %v2686 = vlaneseq
    %v2687 = vshrl.u32 %v2686, 7
    %v2688 = vsub.s32 0, %v2687
    %v2689 = vrot.slane %v2685, %v2688
    %v2694 = vunpack.c.l.b16 %v2680
    %v2695 = vunpack.c.l.b16 %v2681
    %v2696 = vunpack.c.l.b16 %v2682
    %v2697 = vunpack.c.l.b16 %v2683
    %v2698 = vpack.c.b16 %v2695, %v2694
    %v2699 = vpack.c.b16 %v2697, %v2696
    %v2703 = vsel %vm171, %v2684, 0
    %2705 = vmatprep.subr.bf16.mxu0 0
    %2706 = vmatpush1.bf16.msra.mxu0 %v2698
    %2707 = vmatprep.subr.bf16.mxu0 0
    %2708 = vmatpush1.bf16.msra.mxu0 %v2699
    %2709 = vmatprep.subr.bf16.mxu0 0
    %2710 = vmatpush1.bf16.msra.mxu0 0
    %2711 = vmatprep.subr.bf16.mxu0 0
    %2712 = vmatpush1.bf16.msra.mxu0 0
    %2713 = vmatprep.subr.bf16.mxu0 0
    %2714 = vmatpush1.bf16.msra.mxu0 0
    %2715 = vmatprep.subr.bf16.mxu0 0
    %2716 = vmatpush1.bf16.msra.mxu0 0
    %2717 = vmatprep.subr.bf16.mxu0 0
    %2718 = vmatpush1.bf16.msra.mxu0 0
    %2719 = vmatprep.subr.bf16.mxu0 0
    %2720 = vmatpush1.bf16.msra.mxu0 0
    %2721 = vmatprep.subr.bf16.mxu0 0
    %2722 = vmatpush1.bf16.msra.mxu0 0
    %2723 = vmatprep.subr.bf16.mxu0 0
    %2724 = vmatpush1.bf16.msra.mxu0 0
    %2725 = vmatprep.subr.bf16.mxu0 0
    %2726 = vmatpush1.bf16.msra.mxu0 0
    %2727 = vmatprep.subr.bf16.mxu0 0
    %2728 = vmatpush1.bf16.msra.mxu0 0
    %2729 = vmatprep.subr.bf16.mxu0 0
    %2730 = vmatpush1.bf16.msra.mxu0 0
    %2731 = vmatprep.subr.bf16.mxu0 0
    %2732 = vmatpush1.bf16.msra.mxu0 0
    %2733 = vmatprep.subr.bf16.mxu0 0
    %2734 = vmatpush1.bf16.msra.mxu0 0
    %2735 = vmatprep.subr.bf16.mxu0 0
    %2736 = vmatpush1.bf16.msra.mxu0 0
    %2737 = vmatprep.mubr.bf16.mxu0 0
    %2738 = vmatmul.mubr.bf16.gmra.mrb[0].mxu0 %v2703
    %v2739 = vpop.f32.mrb[0].mxu0
    %v2740 = vadd.f32 %v2689, %v2739
    %v2741 = vpop.f32.mrb[0].mxu0
    %v2742 = vpop.f32.mrb[0].mxu0
    %v2743 = vpop.f32.mrb[0].mxu0
    %2744 = vdwg.mxu0
    %v2745 = vtanh.pop %v2740
    %v2746 = vld [vmem:[#allocation6 + $0x90] sm:$0xf]
    %v2747 = vld [vmem:[#allocation6 + $0x94] sm:$0xf]
    %v2748 = vld [vmem:[#allocation6 + $0x98] sm:$0xf]
    %v2749 = vld [vmem:[#allocation6 + $0x9c] sm:$0xf]
    %v2750 = vpack.c.bf16 %v2745, %v2745
    %v2751 = vld [vmem:[%s3 + $0x2d] sm:$0x1]
    %v2752 = vlaneseq
    %v2753 = vshrl.u32 %v2752, 7
    %v2754 = vsub.s32 0, %v2753
    %v2755 = vrot.slane %v2751, %v2754
    %v2760 = vunpack.c.l.b16 %v2746
    %v2761 = vunpack.c.l.b16 %v2747
    %v2762 = vunpack.c.l.b16 %v2748
    %v2763 = vunpack.c.l.b16 %v2749
    %v2764 = vpack.c.b16 %v2761, %v2760
    %v2765 = vpack.c.b16 %v2763, %v2762
    %v2769 = vsel %vm171, %v2750, 0
    %2771 = vmatprep.subr.bf16.mxu0 0
    %2772 = vmatpush1.bf16.msra.mxu0 %v2764
    %2773 = vmatprep.subr.bf16.mxu0 0
    %2774 = vmatpush1.bf16.msra.mxu0 %v2765
    %2775 = vmatprep.subr.bf16.mxu0 0
    %2776 = vmatpush1.bf16.msra.mxu0 0
    %2777 = vmatprep.subr.bf16.mxu0 0
    %2778 = vmatpush1.bf16.msra.mxu0 0
    %2779 = vmatprep.subr.bf16.mxu0 0
    %2780 = vmatpush1.bf16.msra.mxu0 0
    %2781 = vmatprep.subr.bf16.mxu0 0
    %2782 = vmatpush1.bf16.msra.mxu0 0
    %2783 = vmatprep.subr.bf16.mxu0 0
    %2784 = vmatpush1.bf16.msra.mxu0 0
    %2785 = vmatprep.subr.bf16.mxu0 0
    %2786 = vmatpush1.bf16.msra.mxu0 0
    %2787 = vmatprep.subr.bf16.mxu0 0
    %2788 = vmatpush1.bf16.msra.mxu0 0
    %2789 = vmatprep.subr.bf16.mxu0 0
    %2790 = vmatpush1.bf16.msra.mxu0 0
    %2791 = vmatprep.subr.bf16.mxu0 0
    %2792 = vmatpush1.bf16.msra.mxu0 0
    %2793 = vmatprep.subr.bf16.mxu0 0
    %2794 = vmatpush1.bf16.msra.mxu0 0
    %2795 = vmatprep.subr.bf16.mxu0 0
    %2796 = vmatpush1.bf16.msra.mxu0 0
    %2797 = vmatprep.subr.bf16.mxu0 0
    %2798 = vmatpush1.bf16.msra.mxu0 0
    %2799 = vmatprep.subr.bf16.mxu0 0
    %2800 = vmatpush1.bf16.msra.mxu0 0
    %2801 = vmatprep.subr.bf16.mxu0 0
    %2802 = vmatpush1.bf16.msra.mxu0 0
    %2803 = vmatprep.mubr.bf16.mxu0 0
    %2804 = vmatmul.mubr.bf16.gmra.mrb[0].mxu0 %v2769
    %v2805 = vpop.f32.mrb[0].mxu0
    %v2806 = vadd.f32 %v2755, %v2805
    %v2807 = vpop.f32.mrb[0].mxu0
    %v2808 = vpop.f32.mrb[0].mxu0
    %v2809 = vpop.f32.mrb[0].mxu0
    %2810 = vdwg.mxu0
    %vm2811 = vcmask 17408
    %2812 = vst.msk [vmem:[#allocation8] sm:$0x3] %vm2811, %v2806
    // Predicated region
    $region34: #{bert_sequence_classifier.1} parent=1 // pred_check
      _
    $region35: #{bert_sequence_classifier.1} parent=1 // pred_check_branch
      %2814 = sbr.rel (0) target = $region37
    $region36: #{bert_sequence_classifier.1} parent=1 // pred_region
      %s2816 = ssub.s32 32, 32
      %2817 = vsyncadd [#allocation5], %s2816
      %s2819 = sshll.u32 [#allocation8], 4
      %s2820 = int_to_ptr.vmem [resolvable:$true] %s2819
      %2822 = dma.vmem_to_hbm [thread:$0]  %s2820, 32, %s6, [#allocation5]
    $region37: #{bert_sequence_classifier.1} parent=1 // pred_fallthru
      _
    // Predicated region
    $region38: #{bert_sequence_classifier.1} parent=1 // pred_check
      _
    $region39: #{bert_sequence_classifier.1} parent=1 // pred_check_branch
      %2824 = sbr.rel (0) target = $region41
    $region40: #{bert_sequence_classifier.1} parent=1 // pred_region
      %2825 = dma.done [#allocation5], 32
    $region41: #{bert_sequence_classifier.1} parent=1 // pred_fallthru
      _
    %2826 = vsyncpa [#allocation4], 1
    %2827 = vsyncpa [#allocation7], 1
    %2828 = vsyncpa [#allocation5], 1

</llo_original>
